<compile_context>
chip_gen: v5e
topology: v5e:2x2
jax: 0.10.0
libtpu: 0.0.40
codegen_flags: <defaults>
</compile_context>

<pallas_src>
import functools
import math

import jax
import jax.numpy as jnp
from jax.experimental import pallas as pl
from jax.experimental.pallas import tpu as pltpu


def _pick_tile(dim, candidates):
    """Largest candidate that evenly tiles `dim`, else the full dim (always legal).
    TODO(synk): dims that share no divisor with the candidates fall back to one
    full-size block; pad or cdiv+mask if such shapes appear in practice."""
    for c in candidates:
        if dim % c == 0:
            return c
    return dim


def _nbytes(shape, dtype):
    return int(math.prod(shape)) * jnp.dtype(dtype).itemsize


def _compiler_params(semantics, need_bytes):
    # Footprint-aware VMEM request: ~2x the live block bytes (double buffering)
    # plus margin, floored at the 32 MiB scoped default.  For this model's
    # shapes (largest resident weight: W x 4W bf16) this stays well inside
    # v7x's 64 MiB physical VMEM while still allowing larger requests if the
    # shapes grow.
    limit = int(max(32 * 1024 * 1024, 2 * need_bytes + 4 * 1024 * 1024))
    return pltpu.CompilerParams(dimension_semantics=semantics,
                                vmem_limit_bytes=limit)


# ----------------------------------------------------------------------------
# Fused (optional LayerNorm) -> GEMM(s) -> bias (-> GELU) (-> +residual)
# Resident weights, M-only grid, no accumulator scratch.
# ----------------------------------------------------------------------------
def _gemm_kernel(*refs, ln, gelu, has_res, n_out, eps):
    it = iter(refs)
    x_ref = next(it)
    if ln:
        g_ref = next(it)
        beta_ref = next(it)
    wb = [(next(it), next(it)) for _ in range(n_out)]
    res_ref = next(it) if has_res else None
    o_refs = [next(it) for _ in range(n_out)]

    if ln:
        # LayerNorm needs the full feature row; K is untiled (weight resident).
        x = x_ref[...].astype(jnp.float32)
        mu = jnp.mean(x, axis=-1, keepdims=True)
        xc = x - mu
        var = jnp.mean(xc * xc, axis=-1, keepdims=True)
        x = (xc * jax.lax.rsqrt(var + eps)) * g_ref[...] + beta_ref[...]
        x_bf = x.astype(jnp.bfloat16)
    else:
        x_bf = x_ref[...].astype(jnp.bfloat16)

    for (w_ref, b_ref), o_ref in zip(wb, o_refs):
        # bf16 x bf16 on the MXU, f32 accumulation in registers.
        y = jnp.dot(x_bf, w_ref[...], preferred_element_type=jnp.float32)
        y = y + b_ref[...].astype(jnp.float32)
        if gelu:
            # tanh-GELU routes through EUP; PyTorch uses exact erf (~1e-3 rel).
            y = jax.nn.gelu(y, approximate=True)
        if res_ref is not None:
            y = y + res_ref[...].astype(jnp.float32)
        o_ref[...] = y.astype(o_ref.dtype)


def fused_gemm(x, weights, biases, *, ln_params=None, gelu=False, residual=None,
               out_dtype=None, eps=1e-5):
    """out_i = [LN(x)] @ W_i + b_i [-> GELU] [+ residual].

    `weights`/`biases` may be a single matrix/vector or a list (multi-output,
    e.g. fused Q/K/V).  Each weight panel is VMEM-resident for the whole call
    (constant index_map); only M is tiled."""
    single = not isinstance(weights, (list, tuple))
    if single:
        weights, biases = [weights], [biases]
    m, k = x.shape
    n_out = len(weights)
    out_dtype = out_dtype or x.dtype
    ln = ln_params is not None
    has_res = residual is not None

    tm = _pick_tile(m, (512, 256, 128, 64, 32, 16, 8))
    grid = (m // tm,)

    args = [x]
    in_specs = [pl.BlockSpec((tm, k), lambda i: (i, 0))]
    need = _nbytes((tm, k), x.dtype)
    if ln:
        g, beta = ln_params
        args += [g.reshape(1, k), beta.reshape(1, k)]
        in_specs += [pl.BlockSpec((1, k), lambda i: (0, 0)),
                     pl.BlockSpec((1, k), lambda i: (0, 0))]
        need += 2 * _nbytes((1, k), jnp.float32)

    out_shapes, out_specs = [], []
    for w, b in zip(weights, biases):
        kw, nw = w.shape
        assert kw == k
        args += [w, b.reshape(1, nw)]
        # Constant block index -> the weight/bias stay resident across M tiles.
        in_specs += [pl.BlockSpec((k, nw), lambda i: (0, 0)),
                     pl.BlockSpec((1, nw), lambda i: (0, 0))]
        out_shapes.append(jax.ShapeDtypeStruct((m, nw), out_dtype))
        out_specs.append(pl.BlockSpec((tm, nw), lambda i: (i, 0)))
        need += (_nbytes((k, nw), w.dtype) + _nbytes((1, nw), jnp.float32)
                 + _nbytes((tm, nw), out_dtype) + _nbytes((tm, nw), jnp.float32))
    if has_res:
        args.append(residual)
        in_specs.append(pl.BlockSpec((tm, residual.shape[1]), lambda i: (i, 0)))
        need += _nbytes((tm, residual.shape[1]), residual.dtype)

    kernel = functools.partial(_gemm_kernel, ln=ln, gelu=gelu,
                               has_res=has_res, n_out=n_out, eps=eps)
    outs = pl.pallas_call(
        kernel,
        out_shape=tuple(out_shapes),
        grid=grid,
        in_specs=in_specs,
        out_specs=tuple(out_specs),
        compiler_params=_compiler_params(("parallel",), need),
    )(*args)
    return outs[0] if single else tuple(outs)


# ----------------------------------------------------------------------------
# Standalone row-tiled LayerNorm (ln_pre, whose output is the residual stream)
# ----------------------------------------------------------------------------
def _ln_kernel(x_ref, g_ref, b_ref, o_ref, *, eps):
    x = x_ref[...].astype(jnp.float32)
    mu = jnp.mean(x, axis=-1, keepdims=True)
    xc = x - mu
    var = jnp.mean(xc * xc, axis=-1, keepdims=True)
    o_ref[...] = ((xc * jax.lax.rsqrt(var + eps)) * g_ref[...]
                  + b_ref[...]).astype(o_ref.dtype)


def layernorm(x2d, gamma, beta, eps=1e-5):
    m, d = x2d.shape
    tm = _pick_tile(m, (512, 256, 128, 64, 32, 16, 8))
    need = 2 * _nbytes((tm, d), jnp.float32) + 2 * _nbytes((1, d), jnp.float32)
    return pl.pallas_call(
        functools.partial(_ln_kernel, eps=eps),
        out_shape=jax.ShapeDtypeStruct((m, d), x2d.dtype),
        grid=(m // tm,),
        in_specs=[pl.BlockSpec((tm, d), lambda i: (i, 0)),
                  pl.BlockSpec((1, d), lambda i: (0, 0)),
                  pl.BlockSpec((1, d), lambda i: (0, 0))],
        out_specs=pl.BlockSpec((tm, d), lambda i: (i, 0)),
        compiler_params=_compiler_params(("parallel",), need),
    )(x2d, gamma.reshape(1, d), beta.reshape(1, d))


# ----------------------------------------------------------------------------
# Flash attention (online softmax), heads packed per grid step.
# Softmax scale is pre-folded into the Q projection weights.
# ----------------------------------------------------------------------------
def _flash_kernel(q_ref, k_ref, v_ref, o_ref, m_sc, l_sc, acc_sc,
                  *, heads_per_block, head_dim):
    kv = pl.program_id(3)

    @pl.when(kv == 0)
    def _():
        m_sc[...] = jnp.full(m_sc.shape, -jnp.inf, dtype=m_sc.dtype)
        l_sc[...] = jnp.zeros(l_sc.shape, dtype=l_sc.dtype)
        acc_sc[...] = jnp.zeros(acc_sc.shape, dtype=acc_sc.dtype)

    for h in range(heads_per_block):
        sl = slice(h * head_dim, (h + 1) * head_dim)
        q = q_ref[:, sl]                                        # [tq, c] bf16
        k = k_ref[:, sl]                                        # [tk, c] bf16
        v = v_ref[:, sl]                                        # [tk, c] bf16
        s = jax.lax.dot_general(q, k, (((1,), (1,)), ((), ())),
                                preferred_element_type=jnp.float32)
        m_prev = m_sc[h]                                        # [tq, 1]
        m_new = jnp.maximum(m_prev, jnp.max(s, axis=-1, keepdims=True))
        alpha = jnp.exp(m_prev - m_new)
        p = jnp.exp(s - m_new)
        l_sc[h] = alpha * l_sc[h] + jnp.sum(p, axis=-1, keepdims=True)
        acc_sc[h] = alpha * acc_sc[h] + jnp.dot(
            p.astype(jnp.bfloat16), v, preferred_element_type=jnp.float32)
        m_sc[h] = m_new

    @pl.when(kv == pl.num_programs(3) - 1)
    def _():
        # Assemble all heads and write ONE lane-dense store (no per-head
        # sub-128-lane masked stores).
        pieces = [acc_sc[h] * pl.reciprocal(l_sc[h], approx=True)
                  for h in range(heads_per_block)]
        o_ref[...] = jnp.concatenate(pieces, axis=-1).astype(o_ref.dtype)


def flash_attention(q, k, v, *, heads):
    """q, k, v: [N, S, heads*head_dim] with head-contiguous channels, bf16."""
    n, s, w = q.shape
    c = w // heads
    # Pack heads so the lane (last) block dim is a multiple of 128, else the
    # full width.  (On v7x, prefer even "parallel" grid extents for the 2 TCs.)
    hb = heads
    for cand in range(1, heads + 1):
        if heads % cand == 0 and (cand * c) % 128 == 0:
            hb = cand
            break
    blk = hb * c
    tq = _pick_tile(s, (512, 256, 128))
    tk = _pick_tile(s, (512, 256, 128))

    def q_map(b, hg, qi, ki):
        return (b, qi, hg)

    def kv_map(b, hg, qi, ki):
        return (b, ki, hg)

    need = (_nbytes((tq, blk), q.dtype) + 2 * _nbytes((tk, blk), k.dtype)
            + _nbytes((tq, blk), q.dtype)
            + 3 * hb * tq * max(c, 128) * 4)          # scratch (lane-padded)
    return pl.pallas_call(
        functools.partial(_flash_kernel, heads_per_block=hb, head_dim=c),
        out_shape=jax.ShapeDtypeStruct((n, s, w), q.dtype),
        grid=(n, heads // hb, s // tq, s // tk),
        in_specs=[pl.BlockSpec((None, tq, blk), q_map),
                  pl.BlockSpec((None, tk, blk), kv_map),
                  pl.BlockSpec((None, tk, blk), kv_map)],
        out_specs=pl.BlockSpec((None, tq, blk), q_map),
        scratch_shapes=[pltpu.VMEM((hb, tq, 1), jnp.float32),
                        pltpu.VMEM((hb, tq, 1), jnp.float32),
                        pltpu.VMEM((hb, tq, c), jnp.float32)],
        compiler_params=_compiler_params(
            ("parallel", "parallel", "parallel", "arbitrary"), need),
    )(q, k, v)


# ----------------------------------------------------------------------------
# Model glue (plain JAX; reshapes only — no transposes between pallas_calls)
# ----------------------------------------------------------------------------
def timestep_embedding(t, dim, max_period=10000.0):
    half = dim // 2
    freqs = jnp.exp(-math.log(max_period)
                    * jnp.arange(half, dtype=jnp.float32) / half)
    args = t[:, None].astype(jnp.float32) * freqs[None]
    return jnp.concatenate([jnp.cos(args), jnp.sin(args)], axis=-1)


def resblock(hf, n, s, p, heads):
    w = hf.shape[-1]
    # One LN-fused GEMM produces Q, K, V: x read + LayerNorm'd once, one launch
    # instead of three.  Softmax scale is already folded into wq/bq.
    q, k, v = fused_gemm(hf, [p["wq"], p["wk"], p["wv"]],
                         [p["bq"], p["bk"], p["bv"]],
                         ln_params=(p["ln1_g"], p["ln1_b"]),
                         out_dtype=jnp.bfloat16)
    att = flash_attention(q.reshape(n, s, w), k.reshape(n, s, w),
                          v.reshape(n, s, w), heads=heads)
    hf = fused_gemm(att.reshape(n * s, w), p["attn_proj_w"], p["attn_proj_b"],
                    residual=hf, out_dtype=jnp.float32)
    mid = fused_gemm(hf, p["fc_w"], p["fc_b"],
                     ln_params=(p["ln2_g"], p["ln2_b"]),
                     gelu=True, out_dtype=jnp.bfloat16)
    hf = fused_gemm(mid, p["mlp_proj_w"], p["mlp_proj_b"],
                    residual=hf, out_dtype=jnp.float32)
    return hf


def forward(params, x, t, low_res, cfg):
    """x: [N, C1, n_ctx] ; t: [N] ; low_res: [N, C2, cond_ctx] -> [N, C_out, n_ctx]."""
    n, c_in, n_ctx = x.shape
    _, c_cond, cond_ctx = low_res.shape
    w, heads = cfg["width"], cfg["heads"]
    assert n_ctx == cfg["n_ctx"]

    # Tiny time-embedding MLP (M == batch) stays in plain XLA: a pallas_call
    # at ~2 rows would be pure launch overhead.
    te = timestep_embedding(t, w)
    h1 = jax.nn.gelu(te @ params["time_fc_w"] + params["time_fc_b"],
                     approximate=True)
    t_embed = h1 @ params["time_proj_w"] + params["time_proj_b"]          # [N, W]

    # low_res_embed = cond_point_proj(low_res.permute(0, 2, 1))
    lr = low_res
    if params.get("channel_scales") is not None:
        lr = lr * params["channel_scales"][None, :, None]
    if params.get("channel_biases") is not None:
        lr = lr + params["channel_biases"][None, :, None]
    lr = jnp.transpose(lr, (0, 2, 1)).reshape(n * cond_ctx, c_cond)
    low_res_embed = fused_gemm(lr, params["cond_w"], params["cond_b"],
                               out_dtype=jnp.float32).reshape(n, cond_ctx, w)

    # input_proj(x.permute(0, 2, 1))
    h = fused_gemm(jnp.transpose(x, (0, 2, 1)).reshape(n * n_ctx, c_in),
                   params["input_w"], params["input_b"],
                   out_dtype=jnp.float32).reshape(n, n_ctx, w)

    # time_token_cond=False -> broadcast-add the time embedding to every token.
    h = h + t_embed[:, None, :]
    # use_pos_emb=False in this configuration.

    # low-res conditioning tokens are prepended as extra tokens.
    h = jnp.concatenate([low_res_embed, h], axis=1)                        # [N, S, W]
    s = h.shape[1]

    hf = layernorm(h.reshape(n * s, w), params["ln_pre_g"], params["ln_pre_b"])

    for lp in params["layers"]:
        hf = resblock(hf, n, s, lp, heads)

    # drop conditioning tokens, then fused ln_post + lane-dense output projection
    h = hf.reshape(n, s, w)[:, cond_ctx:].reshape(n * n_ctx, w)
    out = fused_gemm(h, params["out_w_pad"], params["out_b_pad"],
                     ln_params=(params["ln_post_g"], params["ln_post_b"]),
                     out_dtype=jnp.float32)                                # [M, 128k]
    out = out[:, :cfg["output_channels"]].reshape(n, n_ctx, cfg["output_channels"])
    return jnp.transpose(out, (0, 2, 1))                                   # [N, C_out, T]


# ----------------------------------------------------------------------------
# Parameter init (PyTorch layouts) + one-time layout/precision prep
# ----------------------------------------------------------------------------
def init_params(key, cfg):
    w, n_layers = cfg["width"], cfg["layers"]
    block_std = 0.25 * math.sqrt(1.0 / w)
    keys = iter(jax.random.split(key, 5 + 4 * n_layers))

    def lin(fan_in, fan_out, std):
        return (std * jax.random.normal(next(keys), (fan_in, fan_out), jnp.float32),
                jnp.zeros((fan_out,), jnp.float32))

    p = {}
    p["time_fc_w"], p["time_fc_b"] = lin(w, 4 * w, block_std)
    p["time_proj_w"], p["time_proj_b"] = lin(4 * w, w, block_std)
    p["input_w"], p["input_b"] = lin(cfg["input_channels"], w, 0.02)
    p["cond_w"], p["cond_b"] = lin(cfg["cond_input_channels"], w, 0.02)
    # NOTE: the PyTorch module zero-inits output_proj; small random values are
    # used here so the synthetic demo output is non-trivial.
    p["out_w"], p["out_b"] = lin(w, cfg["output_channels"], 0.02)
    for name in ("ln_pre", "ln_post"):
        p[name + "_g"] = jnp.ones((w,), jnp.float32)
        p[name + "_b"] = jnp.zeros((w,), jnp.float32)

    layers = []
    for _ in range(n_layers):
        lp = {}
        for name in ("ln1", "ln2"):
            lp[name + "_g"] = jnp.ones((w,), jnp.float32)
            lp[name + "_b"] = jnp.zeros((w,), jnp.float32)
        lp["qkv_w"], lp["qkv_b"] = lin(w, 3 * w, block_std)   # PyTorch col layout
        lp["attn_proj_w"], lp["attn_proj_b"] = lin(w, w, block_std)
        lp["fc_w"], lp["fc_b"] = lin(w, 4 * w, block_std)
        lp["mlp_proj_w"], lp["mlp_proj_b"] = lin(4 * w, w, block_std)
        layers.append(lp)
    p["layers"] = layers
    return p


def prepare_params(raw, cfg):
    """One-time host-side prep: split the PyTorch-layout QKV projection into
    per-head-contiguous Q/K/V matrices (with the 1/sqrt(head_dim) softmax scale
    folded into wq/bq), zero-pad the output projection to a lane-dense width,
    and cast GEMM weights to bf16 (f32 accumulation happens in-kernel).
    Loading real PyTorch weights would additionally need an [out,in]->[in,out]
    transpose of each nn.Linear weight."""
    w, heads = cfg["width"], cfg["heads"]
    c = w // heads
    bf = lambda a: a.astype(jnp.bfloat16)

    p = {}
    # time MLP stays in XLA -> keep f32
    for k_ in ("time_fc_w", "time_fc_b", "time_proj_w", "time_proj_b",
               "ln_pre_g", "ln_pre_b", "ln_post_g", "ln_post_b"):
        p[k_] = raw[k_]
    p["input_w"], p["input_b"] = bf(raw["input_w"]), raw["input_b"]
    p["cond_w"], p["cond_b"] = bf(raw["cond_w"]), raw["cond_b"]

    c_out = cfg["output_channels"]
    n_pad = ((c_out + 127) // 128) * 128
    p["out_w_pad"] = bf(jnp.pad(raw["out_w"], ((0, 0), (0, n_pad - c_out))))
    p["out_b_pad"] = jnp.pad(raw["out_b"], (0, n_pad - c_out))

    sm_scale = 1.0 / math.sqrt(c)      # == (1/sqrt(sqrt(c)))**2 from the reference
    layers = []
    for lr in raw["layers"]:
        lp = {k_: lr[k_] for k_ in ("ln1_g", "ln1_b", "ln2_g", "ln2_b")}
        # PyTorch qkv output columns are [head][q|k|v][ch]; regroup so each of
        # Q/K/V is a [W, W] matrix with head-contiguous output columns (the
        # layout the flash kernel slices by head group via its index_map), and
        # fold the softmax scale into the Q projection.
        wr = lr["qkv_w"].reshape(w, heads, 3, c)
        br = lr["qkv_b"].reshape(heads, 3, c)
        lp["wq"] = bf(wr[:, :, 0, :].reshape(w, w) * sm_scale)
        lp["bq"] = br[:, 0, :].reshape(w) * sm_scale
        lp["wk"], lp["bk"] = bf(wr[:, :, 1, :].reshape(w, w)), br[:, 1, :].reshape(w)
        lp["wv"], lp["bv"] = bf(wr[:, :, 2, :].reshape(w, w)), br[:, 2, :].reshape(w)
        lp["attn_proj_w"], lp["attn_proj_b"] = bf(lr["attn_proj_w"]), lr["attn_proj_b"]
        lp["fc_w"], lp["fc_b"] = bf(lr["fc_w"]), lr["fc_b"]
        lp["mlp_proj_w"], lp["mlp_proj_b"] = bf(lr["mlp_proj_w"]), lr["mlp_proj_b"]
        layers.append(lp)
    p["layers"] = layers
    # channel_scales / channel_biases buffers are None in this configuration.
    p["channel_scales"] = None
    p["channel_biases"] = None
    return p


# ----------------------------------------------------------------------------
if __name__ == "__main__":
    # Small config consistent with UpsamplePointDiffusionTransformer:
    #   upsampled points n_ctx = 8, conditioning points cond_ctx = 8,
    #   width = 32, heads = 4, layers = 2, time_token_cond = False,
    #   use_pos_emb = False, channel_scales/biases = None, eval mode.
    cfg = dict(width=32, heads=4, layers=2, n_ctx=8, cond_ctx=8,
               input_channels=3, cond_input_channels=3, output_channels=3)

    key = jax.random.PRNGKey(0)
    kparam, kx, kt, kl = jax.random.split(key, 4)

    params = prepare_params(init_params(kparam, cfg), cfg)

    x = jax.random.normal(kx, (2, cfg["input_channels"], cfg["n_ctx"]), jnp.float32)
    t = jax.random.uniform(kt, (2,), jnp.float32) * 1000.0
    low_res = jax.random.normal(
        kl, (2, cfg["cond_input_channels"], cfg["cond_ctx"]), jnp.float32)

    fwd = jax.jit(functools.partial(forward, cfg=cfg))
    out = jax.block_until_ready(fwd(params, x, t, low_res))

    assert out.shape == (2, cfg["output_channels"], cfg["n_ctx"]), out.shape
    assert bool(jnp.all(jnp.isfinite(out)))
    print("KERNEL_OK")
</pallas_src>

<mosaic_0001>
module attributes {stable_mosaic.version = 11 : i64} {
  func.func @_gemm_kernel(%arg0: i32, %arg1: memref<16x3xf32, #tpu.memory_space<vmem>>, %arg2: memref<3x32xbf16, #tpu.memory_space<vmem>>, %arg3: memref<1x32xf32, #tpu.memory_space<vmem>>, %arg4: memref<16x32xf32, #tpu.memory_space<vmem>>) attributes {dimension_semantics = [#tpu.dimension_semantics<parallel>], iteration_bounds = array<i64: 1>, scalar_prefetch = 0 : i64, scratch_operands = 0 : i64, tpu.core_type = #tpu.core_type<tc>, window_params = [{transform_indices = @transform_0, window_bounds = array<i64: 16, 3>}, {pipeline_mode = #tpu.pipeline_mode<synchronous>, transform_indices = @transform_1, window_bounds = array<i64: 3, 32>}, {pipeline_mode = #tpu.pipeline_mode<synchronous>, transform_indices = @transform_2, window_bounds = array<i64: 1, 32>}, {transform_indices = @transform_3, window_bounds = array<i64: 16, 32>}]} {
    %c0 = arith.constant 0 : index
    %c0_0 = arith.constant 0 : index
    %0 = vector.load %arg1[%c0, %c0_0] : memref<16x3xf32, #tpu.memory_space<vmem>>, vector<16x3xf32>
    %1 = arith.truncf %0 : vector<16x3xf32> to vector<16x3xbf16>
    %c0_1 = arith.constant 0 : index
    %c0_2 = arith.constant 0 : index
    %2 = vector.load %arg2[%c0_1, %c0_2] : memref<3x32xbf16, #tpu.memory_space<vmem>>, vector<3x32xbf16>
    %cst = arith.constant dense<0.000000e+00> : vector<16x32xf32>
    %3 = tpu.matmul %1, %2, %cst {dimension_numbers = #tpu.dot_dimension_numbers<[1], [0], [0], [1], [0, 0, 1, 1], [], []>} : vector<16x3xbf16>, vector<3x32xbf16>, vector<16x32xf32> -> vector<16x32xf32>
    %c0_3 = arith.constant 0 : index
    %c0_4 = arith.constant 0 : index
    %4 = vector.load %arg3[%c0_3, %c0_4] : memref<1x32xf32, #tpu.memory_space<vmem>>, vector<1x32xf32>
    %5 = vector.broadcast %4 : vector<1x32xf32> to vector<16x32xf32>
    %6 = arith.addf %3, %5 : vector<16x32xf32>
    %c0_5 = arith.constant 0 : index
    %c0_6 = arith.constant 0 : index
    %7 = vector.load %arg4[%c0_5, %c0_6] : memref<16x32xf32, #tpu.memory_space<vmem>>, vector<16x32xf32>
    tpu.vector_store %arg4[%c0_5, %c0_6], %6 {strides = array<i32>} : memref<16x32xf32, #tpu.memory_space<vmem>>, vector<16x32xf32>,
    return
  }
  func.func @transform_0(%arg0: i32) -> (i32, i32) {
    %c0_i32 = arith.constant 0 : i32
    %c0_i32_0 = arith.constant 0 : i32
    return %arg0, %c0_i32 : i32, i32
  }
  func.func @transform_1(%arg0: i32) -> (i32, i32) {
    %c0_i32 = arith.constant 0 : i32
    %c0_i32_0 = arith.constant 0 : i32
    %c0_i32_1 = arith.constant 0 : i32
    return %c0_i32, %c0_i32_0 : i32, i32
  }
  func.func @transform_2(%arg0: i32) -> (i32, i32) {
    %c0_i32 = arith.constant 0 : i32
    %c0_i32_0 = arith.constant 0 : i32
    %c0_i32_1 = arith.constant 0 : i32
    return %c0_i32, %c0_i32_0 : i32, i32
  }
  func.func @transform_3(%arg0: i32) -> (i32, i32) {
    %c0_i32 = arith.constant 0 : i32
    %c0_i32_0 = arith.constant 0 : i32
    return %arg0, %c0_i32 : i32, i32
  }
}

module attributes {stable_mosaic.version = 11 : i64} {
  func.func @_gemm_kernel(%arg0: i32, %arg1: memref<32x32xf32, #tpu.memory_space<vmem>>, %arg2: memref<1x32xf32, #tpu.memory_space<vmem>>, %arg3: memref<1x32xf32, #tpu.memory_space<vmem>>, %arg4: memref<32x32xbf16, #tpu.memory_space<vmem>>, %arg5: memref<1x32xf32, #tpu.memory_space<vmem>>, %arg6: memref<32x32xbf16, #tpu.memory_space<vmem>>, %arg7: memref<1x32xf32, #tpu.memory_space<vmem>>, %arg8: memref<32x32xbf16, #tpu.memory_space<vmem>>, %arg9: memref<1x32xf32, #tpu.memory_space<vmem>>, %arg10: memref<32x32xbf16, #tpu.memory_space<vmem>>, %arg11: memref<32x32xbf16, #tpu.memory_space<vmem>>, %arg12: memref<32x32xbf16, #tpu.memory_space<vmem>>) attributes {dimension_semantics = [#tpu.dimension_semantics<parallel>], iteration_bounds = array<i64: 1>, scalar_prefetch = 0 : i64, scratch_operands = 0 : i64, tpu.core_type = #tpu.core_type<tc>, window_params = [{transform_indices = @transform_0, window_bounds = array<i64: 32, 32>}, {pipeline_mode = #tpu.pipeline_mode<synchronous>, transform_indices = @transform_1, window_bounds = array<i64: 1, 32>}, {pipeline_mode = #tpu.pipeline_mode<synchronous>, transform_indices = @transform_2, window_bounds = array<i64: 1, 32>}, {pipeline_mode = #tpu.pipeline_mode<synchronous>, transform_indices = @transform_3, window_bounds = array<i64: 32, 32>}, {pipeline_mode = #tpu.pipeline_mode<synchronous>, transform_indices = @transform_4, window_bounds = array<i64: 1, 32>}, {pipeline_mode = #tpu.pipeline_mode<synchronous>, transform_indices = @transform_5, window_bounds = array<i64: 32, 32>}, {pipeline_mode = #tpu.pipeline_mode<synchronous>, transform_indices = @transform_6, window_bounds = array<i64: 1, 32>}, {pipeline_mode = #tpu.pipeline_mode<synchronous>, transform_indices = @transform_7, window_bounds = array<i64: 32, 32>}, {pipeline_mode = #tpu.pipeline_mode<synchronous>, transform_indices = @transform_8, window_bounds = array<i64: 1, 32>}, {transform_indices = @transform_9, window_bounds = array<i64: 32, 32>}, {transform_indices = @transform_10, window_bounds = array<i64: 32, 32>}, {transform_indices = @transform_11, window_bounds = array<i64: 32, 32>}]} {
    %c0 = arith.constant 0 : index
    %c0_0 = arith.constant 0 : index
    %0 = vector.load %arg1[%c0, %c0_0] : memref<32x32xf32, #tpu.memory_space<vmem>>, vector<32x32xf32>
    %cst = arith.constant dense<0.000000e+00> : vector<32xf32>
    %1 = vector.multi_reduction <add>, %0, %cst [1] : vector<32x32xf32> to vector<32xf32>
    %2 = vector.shape_cast %1 : vector<32xf32> to vector<32x1xf32>
    %cst_1 = arith.constant 3.200000e+01 : f32
    %3 = vector.broadcast %cst_1 : f32 to vector<32x1xf32>
    %4 = arith.divf %2, %3 : vector<32x1xf32>
    %5 = vector.broadcast %4 : vector<32x1xf32> to vector<32x32xf32>
    %6 = arith.subf %0, %5 : vector<32x32xf32>
    %7 = arith.mulf %6, %6 : vector<32x32xf32>
    %cst_2 = arith.constant dense<0.000000e+00> : vector<32xf32>
    %8 = vector.multi_reduction <add>, %7, %cst_2 [1] : vector<32x32xf32> to vector<32xf32>
    %9 = vector.shape_cast %8 : vector<32xf32> to vector<32x1xf32>
    %cst_3 = arith.constant 3.200000e+01 : f32
    %10 = vector.broadcast %cst_3 : f32 to vector<32x1xf32>
    %11 = arith.divf %9, %10 : vector<32x1xf32>
    %cst_4 = arith.constant 9.99999974E-6 : f32
    %12 = vector.broadcast %cst_4 : f32 to vector<32x1xf32>
    %13 = arith.addf %11, %12 : vector<32x1xf32>
    %14 = math.rsqrt %13 : vector<32x1xf32>
    %15 = vector.broadcast %14 : vector<32x1xf32> to vector<32x32xf32>
    %16 = arith.mulf %6, %15 : vector<32x32xf32>
    %c0_5 = arith.constant 0 : index
    %c0_6 = arith.constant 0 : index
    %17 = vector.load %arg2[%c0_5, %c0_6] : memref<1x32xf32, #tpu.memory_space<vmem>>, vector<1x32xf32>
    %18 = vector.broadcast %17 : vector<1x32xf32> to vector<32x32xf32>
    %19 = arith.mulf %16, %18 : vector<32x32xf32>
    %c0_7 = arith.constant 0 : index
    %c0_8 = arith.constant 0 : index
    %20 = vector.load %arg3[%c0_7, %c0_8] : memref<1x32xf32, #tpu.memory_space<vmem>>, vector<1x32xf32>
    %21 = vector.broadcast %20 : vector<1x32xf32> to vector<32x32xf32>
    %22 = arith.addf %19, %21 : vector<32x32xf32>
    %23 = arith.truncf %22 : vector<32x32xf32> to vector<32x32xbf16>
    %c0_9 = arith.constant 0 : index
    %c0_10 = arith.constant 0 : index
    %24 = vector.load %arg4[%c0_9, %c0_10] : memref<32x32xbf16, #tpu.memory_space<vmem>>, vector<32x32xbf16>
    %cst_11 = arith.constant dense<0.000000e+00> : vector<32x32xf32>
    %25 = tpu.matmul %23, %24, %cst_11 {dimension_numbers = #tpu.dot_dimension_numbers<[1], [0], [0], [1], [0, 0, 1, 1], [], []>} : vector<32x32xbf16>, vector<32x32xbf16>, vector<32x32xf32> -> vector<32x32xf32>
    %c0_12 = arith.constant 0 : index
    %c0_13 = arith.constant 0 : index
    %26 = vector.load %arg5[%c0_12, %c0_13] : memref<1x32xf32, #tpu.memory_space<vmem>>, vector<1x32xf32>
    %27 = vector.broadcast %26 : vector<1x32xf32> to vector<32x32xf32>
    %28 = arith.addf %25, %27 : vector<32x32xf32>
    %29 = arith.truncf %28 : vector<32x32xf32> to vector<32x32xbf16>
    %c0_14 = arith.constant 0 : index
    %c0_15 = arith.constant 0 : index
    %30 = vector.load %arg10[%c0_14, %c0_15] : memref<32x32xbf16, #tpu.memory_space<vmem>>, vector<32x32xbf16>
    tpu.vector_store %arg10[%c0_14, %c0_15], %29 {strides = array<i32>} : memref<32x32xbf16, #tpu.memory_space<vmem>>, vector<32x32xbf16>,
    %c0_16 = arith.constant 0 : index
    %c0_17 = arith.constant 0 : index
    %31 = vector.load %arg6[%c0_16, %c0_17] : memref<32x32xbf16, #tpu.memory_space<vmem>>, vector<32x32xbf16>
    %cst_18 = arith.constant dense<0.000000e+00> : vector<32x32xf32>
    %32 = tpu.matmul %23, %31, %cst_18 {dimension_numbers = #tpu.dot_dimension_numbers<[1], [0], [0], [1], [0, 0, 1, 1], [], []>} : vector<32x32xbf16>, vector<32x32xbf16>, vector<32x32xf32> -> vector<32x32xf32>
    %c0_19 = arith.constant 0 : index
    %c0_20 = arith.constant 0 : index
    %33 = vector.load %arg7[%c0_19, %c0_20] : memref<1x32xf32, #tpu.memory_space<vmem>>, vector<1x32xf32>
    %34 = vector.broadcast %33 : vector<1x32xf32> to vector<32x32xf32>
    %35 = arith.addf %32, %34 : vector<32x32xf32>
    %36 = arith.truncf %35 : vector<32x32xf32> to vector<32x32xbf16>
    %c0_21 = arith.constant 0 : index
    %c0_22 = arith.constant 0 : index
    %37 = vector.load %arg11[%c0_21, %c0_22] : memref<32x32xbf16, #tpu.memory_space<vmem>>, vector<32x32xbf16>
    tpu.vector_store %arg11[%c0_21, %c0_22], %36 {strides = array<i32>} : memref<32x32xbf16, #tpu.memory_space<vmem>>, vector<32x32xbf16>,
    %c0_23 = arith.constant 0 : index
    %c0_24 = arith.constant 0 : index
    %38 = vector.load %arg8[%c0_23, %c0_24] : memref<32x32xbf16, #tpu.memory_space<vmem>>, vector<32x32xbf16>
    %cst_25 = arith.constant dense<0.000000e+00> : vector<32x32xf32>
    %39 = tpu.matmul %23, %38, %cst_25 {dimension_numbers = #tpu.dot_dimension_numbers<[1], [0], [0], [1], [0, 0, 1, 1], [], []>} : vector<32x32xbf16>, vector<32x32xbf16>, vector<32x32xf32> -> vector<32x32xf32>
    %c0_26 = arith.constant 0 : index
    %c0_27 = arith.constant 0 : index
    %40 = vector.load %arg9[%c0_26, %c0_27] : memref<1x32xf32, #tpu.memory_space<vmem>>, vector<1x32xf32>
    %41 = vector.broadcast %40 : vector<1x32xf32> to vector<32x32xf32>
    %42 = arith.addf %39, %41 : vector<32x32xf32>
    %43 = arith.truncf %42 : vector<32x32xf32> to vector<32x32xbf16>
    %c0_28 = arith.constant 0 : index
    %c0_29 = arith.constant 0 : index
    %44 = vector.load %arg12[%c0_28, %c0_29] : memref<32x32xbf16, #tpu.memory_space<vmem>>, vector<32x32xbf16>
    tpu.vector_store %arg12[%c0_28, %c0_29], %43 {strides = array<i32>} : memref<32x32xbf16, #tpu.memory_space<vmem>>, vector<32x32xbf16>,
    return
  }
  func.func @transform_0(%arg0: i32) -> (i32, i32) {
    %c0_i32 = arith.constant 0 : i32
    %c0_i32_0 = arith.constant 0 : i32
    return %arg0, %c0_i32 : i32, i32
  }
  func.func @transform_1(%arg0: i32) -> (i32, i32) {
    %c0_i32 = arith.constant 0 : i32
    %c0_i32_0 = arith.constant 0 : i32
    %c0_i32_1 = arith.constant 0 : i32
    return %c0_i32, %c0_i32_0 : i32, i32
  }
  func.func @transform_2(%arg0: i32) -> (i32, i32) {
    %c0_i32 = arith.constant 0 : i32
    %c0_i32_0 = arith.constant 0 : i32
    %c0_i32_1 = arith.constant 0 : i32
    return %c0_i32, %c0_i32_0 : i32, i32
  }
  func.func @transform_3(%arg0: i32) -> (i32, i32) {
    %c0_i32 = arith.constant 0 : i32
    %c0_i32_0 = arith.constant 0 : i32
    %c0_i32_1 = arith.constant 0 : i32
    return %c0_i32, %c0_i32_0 : i32, i32
  }
  func.func @transform_4(%arg0: i32) -> (i32, i32) {
    %c0_i32 = arith.constant 0 : i32
    %c0_i32_0 = arith.constant 0 : i32
    %c0_i32_1 = arith.constant 0 : i32
    return %c0_i32, %c0_i32_0 : i32, i32
  }
  func.func @transform_5(%arg0: i32) -> (i32, i32) {
    %c0_i32 = arith.constant 0 : i32
    %c0_i32_0 = arith.constant 0 : i32
    %c0_i32_1 = arith.constant 0 : i32
    return %c0_i32, %c0_i32_0 : i32, i32
  }
  func.func @transform_6(%arg0: i32) -> (i32, i32) {
    %c0_i32 = arith.constant 0 : i32
    %c0_i32_0 = arith.constant 0 : i32
    %c0_i32_1 = arith.constant 0 : i32
    return %c0_i32, %c0_i32_0 : i32, i32
  }
  func.func @transform_7(%arg0: i32) -> (i32, i32) {
    %c0_i32 = arith.constant 0 : i32
    %c0_i32_0 = arith.constant 0 : i32
    %c0_i32_1 = arith.constant 0 : i32
    return %c0_i32, %c0_i32_0 : i32, i32
  }
  func.func @transform_8(%arg0: i32) -> (i32, i32) {
    %c0_i32 = arith.constant 0 : i32
    %c0_i32_0 = arith.constant 0 : i32
    %c0_i32_1 = arith.constant 0 : i32
    return %c0_i32, %c0_i32_0 : i32, i32
  }
  func.func @transform_9(%arg0: i32) -> (i32, i32) {
    %c0_i32 = arith.constant 0 : i32
    %c0_i32_0 = arith.constant 0 : i32
    return %arg0, %c0_i32 : i32, i32
  }
  func.func @transform_10(%arg0: i32) -> (i32, i32) {
    %c0_i32 = arith.constant 0 : i32
    %c0_i32_0 = arith.constant 0 : i32
    return %arg0, %c0_i32 : i32, i32
  }
  func.func @transform_11(%arg0: i32) -> (i32, i32) {
    %c0_i32 = arith.constant 0 : i32
    %c0_i32_0 = arith.constant 0 : i32
    return %arg0, %c0_i32 : i32, i32
  }
}

module attributes {stable_mosaic.version = 11 : i64} {
  func.func @_ln_kernel(%arg0: i32, %arg1: memref<32x32xf32, #tpu.memory_space<vmem>>, %arg2: memref<1x32xf32, #tpu.memory_space<vmem>>, %arg3: memref<1x32xf32, #tpu.memory_space<vmem>>, %arg4: memref<32x32xf32, #tpu.memory_space<vmem>>) attributes {dimension_semantics = [#tpu.dimension_semantics<parallel>], iteration_bounds = array<i64: 1>, scalar_prefetch = 0 : i64, scratch_operands = 0 : i64, tpu.core_type = #tpu.core_type<tc>, window_params = [{transform_indices = @transform_0, window_bounds = array<i64: 32, 32>}, {pipeline_mode = #tpu.pipeline_mode<synchronous>, transform_indices = @transform_1, window_bounds = array<i64: 1, 32>}, {pipeline_mode = #tpu.pipeline_mode<synchronous>, transform_indices = @transform_2, window_bounds = array<i64: 1, 32>}, {transform_indices = @transform_3, window_bounds = array<i64: 32, 32>}]} {
    %c0 = arith.constant 0 : index
    %c0_0 = arith.constant 0 : index
    %0 = vector.load %arg1[%c0, %c0_0] : memref<32x32xf32, #tpu.memory_space<vmem>>, vector<32x32xf32>
    %cst = arith.constant dense<0.000000e+00> : vector<32xf32>
    %1 = vector.multi_reduction <add>, %0, %cst [1] : vector<32x32xf32> to vector<32xf32>
    %2 = vector.shape_cast %1 : vector<32xf32> to vector<32x1xf32>
    %cst_1 = arith.constant 3.200000e+01 : f32
    %3 = vector.broadcast %cst_1 : f32 to vector<32x1xf32>
    %4 = arith.divf %2, %3 : vector<32x1xf32>
    %5 = vector.broadcast %4 : vector<32x1xf32> to vector<32x32xf32>
    %6 = arith.subf %0, %5 : vector<32x32xf32>
    %7 = arith.mulf %6, %6 : vector<32x32xf32>
    %cst_2 = arith.constant dense<0.000000e+00> : vector<32xf32>
    %8 = vector.multi_reduction <add>, %7, %cst_2 [1] : vector<32x32xf32> to vector<32xf32>
    %9 = vector.shape_cast %8 : vector<32xf32> to vector<32x1xf32>
    %cst_3 = arith.constant 3.200000e+01 : f32
    %10 = vector.broadcast %cst_3 : f32 to vector<32x1xf32>
    %11 = arith.divf %9, %10 : vector<32x1xf32>
    %cst_4 = arith.constant 9.99999974E-6 : f32
    %12 = vector.broadcast %cst_4 : f32 to vector<32x1xf32>
    %13 = arith.addf %11, %12 : vector<32x1xf32>
    %14 = math.rsqrt %13 : vector<32x1xf32>
    %15 = vector.broadcast %14 : vector<32x1xf32> to vector<32x32xf32>
    %16 = arith.mulf %6, %15 : vector<32x32xf32>
    %c0_5 = arith.constant 0 : index
    %c0_6 = arith.constant 0 : index
    %17 = vector.load %arg2[%c0_5, %c0_6] : memref<1x32xf32, #tpu.memory_space<vmem>>, vector<1x32xf32>
    %18 = vector.broadcast %17 : vector<1x32xf32> to vector<32x32xf32>
    %19 = arith.mulf %16, %18 : vector<32x32xf32>
    %c0_7 = arith.constant 0 : index
    %c0_8 = arith.constant 0 : index
    %20 = vector.load %arg3[%c0_7, %c0_8] : memref<1x32xf32, #tpu.memory_space<vmem>>, vector<1x32xf32>
    %21 = vector.broadcast %20 : vector<1x32xf32> to vector<32x32xf32>
    %22 = arith.addf %19, %21 : vector<32x32xf32>
    %c0_9 = arith.constant 0 : index
    %c0_10 = arith.constant 0 : index
    %23 = vector.load %arg4[%c0_9, %c0_10] : memref<32x32xf32, #tpu.memory_space<vmem>>, vector<32x32xf32>
    tpu.vector_store %arg4[%c0_9, %c0_10], %22 {strides = array<i32>} : memref<32x32xf32, #tpu.memory_space<vmem>>, vector<32x32xf32>,
    return
  }
  func.func @transform_0(%arg0: i32) -> (i32, i32) {
    %c0_i32 = arith.constant 0 : i32
    %c0_i32_0 = arith.constant 0 : i32
    return %arg0, %c0_i32 : i32, i32
  }
  func.func @transform_1(%arg0: i32) -> (i32, i32) {
    %c0_i32 = arith.constant 0 : i32
    %c0_i32_0 = arith.constant 0 : i32
    %c0_i32_1 = arith.constant 0 : i32
    return %c0_i32, %c0_i32_0 : i32, i32
  }
  func.func @transform_2(%arg0: i32) -> (i32, i32) {
    %c0_i32 = arith.constant 0 : i32
    %c0_i32_0 = arith.constant 0 : i32
    %c0_i32_1 = arith.constant 0 : i32
    return %c0_i32, %c0_i32_0 : i32, i32
  }
  func.func @transform_3(%arg0: i32) -> (i32, i32) {
    %c0_i32 = arith.constant 0 : i32
    %c0_i32_0 = arith.constant 0 : i32
    return %arg0, %c0_i32 : i32, i32
  }
}

module attributes {stable_mosaic.version = 11 : i64} {
  func.func @_flash_kernel(%arg0: i32, %arg1: i32, %arg2: i32, %arg3: i32, %arg4: memref<1x16x32xbf16, #tpu.memory_space<vmem>>, %arg5: memref<1x16x32xbf16, #tpu.memory_space<vmem>>, %arg6: memref<1x16x32xbf16, #tpu.memory_space<vmem>>, %arg7: memref<1x16x32xbf16, #tpu.memory_space<vmem>>, %arg8: memref<4x16x1xf32, #tpu.memory_space<vmem>>, %arg9: memref<4x16x1xf32, #tpu.memory_space<vmem>>, %arg10: memref<4x16x8xf32, #tpu.memory_space<vmem>>) attributes {dimension_semantics = [#tpu.dimension_semantics<parallel>, #tpu.dimension_semantics<parallel>, #tpu.dimension_semantics<parallel>, #tpu.dimension_semantics<arbitrary>], iteration_bounds = array<i64: 2, 1, 1, 1>, scalar_prefetch = 0 : i64, scratch_operands = 3 : i64, tpu.core_type = #tpu.core_type<tc>, window_params = [{transform_indices = @transform_0, window_bounds = array<i64: 1, 16, 32>}, {transform_indices = @transform_1, window_bounds = array<i64: 1, 16, 32>}, {transform_indices = @transform_2, window_bounds = array<i64: 1, 16, 32>}, {transform_indices = @transform_3, window_bounds = array<i64: 1, 16, 32>}]} {
    %c0_i32 = arith.constant 0 : i32
    %0 = arith.cmpi eq, %arg3, %c0_i32 : i32
    %1 = arith.extui %0 : i1 to i32
    %c0_i32_0 = arith.constant 0 : i32
    %2 = arith.cmpi ne, %1, %c0_i32_0 : i32
    scf.if %2 {
      %cst_119 = arith.constant 0xFF800000 : f32
      %162 = vector.broadcast %cst_119 : f32 to vector<4x16x1xf32>
      %c0_120 = arith.constant 0 : index
      %c0_121 = arith.constant 0 : index
      %c0_122 = arith.constant 0 : index
      %163 = vector.load %arg8[%c0_120, %c0_121, %c0_122] : memref<4x16x1xf32, #tpu.memory_space<vmem>>, vector<4x16x1xf32>
      tpu.vector_store %arg8[%c0_120, %c0_121, %c0_122], %162 {strides = array<i32>} : memref<4x16x1xf32, #tpu.memory_space<vmem>>, vector<4x16x1xf32>,
      %cst_123 = arith.constant 0.000000e+00 : f32
      %164 = vector.broadcast %cst_123 : f32 to vector<4x16x1xf32>
      %c0_124 = arith.constant 0 : index
      %c0_125 = arith.constant 0 : index
      %c0_126 = arith.constant 0 : index
      %165 = vector.load %arg9[%c0_124, %c0_125, %c0_126] : memref<4x16x1xf32, #tpu.memory_space<vmem>>, vector<4x16x1xf32>
      tpu.vector_store %arg9[%c0_124, %c0_125, %c0_126], %164 {strides = array<i32>} : memref<4x16x1xf32, #tpu.memory_space<vmem>>, vector<4x16x1xf32>,
      %cst_127 = arith.constant 0.000000e+00 : f32
      %166 = vector.broadcast %cst_127 : f32 to vector<4x16x8xf32>
      %c0_128 = arith.constant 0 : index
      %c0_129 = arith.constant 0 : index
      %c0_130 = arith.constant 0 : index
      %167 = vector.load %arg10[%c0_128, %c0_129, %c0_130] : memref<4x16x8xf32, #tpu.memory_space<vmem>>, vector<4x16x8xf32>
      tpu.vector_store %arg10[%c0_128, %c0_129, %c0_130], %166 {strides = array<i32>} : memref<4x16x8xf32, #tpu.memory_space<vmem>>, vector<4x16x8xf32>,
    } else {
    }
    %c0 = arith.constant 0 : index
    %c0_1 = arith.constant 0 : index
    %c0_2 = arith.constant 0 : index
    %3 = vector.load %arg4[%c0, %c0_1, %c0_2] : memref<1x16x32xbf16, #tpu.memory_space<vmem>>, vector<1x16x8xbf16>
    %4 = vector.shape_cast %3 : vector<1x16x8xbf16> to vector<16x8xbf16>
    %c0_3 = arith.constant 0 : index
    %c0_4 = arith.constant 0 : index
    %c0_5 = arith.constant 0 : index
    %5 = vector.load %arg5[%c0_3, %c0_4, %c0_5] : memref<1x16x32xbf16, #tpu.memory_space<vmem>>, vector<1x16x8xbf16>
    %6 = vector.shape_cast %5 : vector<1x16x8xbf16> to vector<16x8xbf16>
    %c0_6 = arith.constant 0 : index
    %c0_7 = arith.constant 0 : index
    %c0_8 = arith.constant 0 : index
    %7 = vector.load %arg6[%c0_6, %c0_7, %c0_8] : memref<1x16x32xbf16, #tpu.memory_space<vmem>>, vector<1x16x8xbf16>
    %8 = vector.shape_cast %7 : vector<1x16x8xbf16> to vector<16x8xbf16>
    %cst = arith.constant dense<0.000000e+00> : vector<16x16xf32>
    %9 = tpu.matmul %4, %6, %cst {dimension_numbers = #tpu.dot_dimension_numbers<[1], [1], [0], [0], [0, 0, 1, 0], [], []>} : vector<16x8xbf16>, vector<16x8xbf16>, vector<16x16xf32> -> vector<16x16xf32>
    %c0_9 = arith.constant 0 : index
    %c0_10 = arith.constant 0 : index
    %c0_11 = arith.constant 0 : index
    %10 = vector.load %arg8[%c0_9, %c0_10, %c0_11] : memref<4x16x1xf32, #tpu.memory_space<vmem>>, vector<1x16x1xf32>
    %11 = vector.shape_cast %10 : vector<1x16x1xf32> to vector<16x1xf32>
    %cst_12 = arith.constant dense<0xFF800000> : vector<16xf32>
    %12 = vector.multi_reduction <maximumf>, %9, %cst_12 [1] : vector<16x16xf32> to vector<16xf32>
    %13 = vector.shape_cast %12 : vector<16xf32> to vector<16x1xf32>
    %14 = arith.maximumf %11, %13 : vector<16x1xf32>
    %15 = arith.subf %11, %14 : vector<16x1xf32>
    %16 = math.exp %15 : vector<16x1xf32>
    %17 = vector.broadcast %14 : vector<16x1xf32> to vector<16x16xf32>
    %18 = arith.subf %9, %17 : vector<16x16xf32>
    %19 = math.exp %18 : vector<16x16xf32>
    %c0_13 = arith.constant 0 : index
    %c0_14 = arith.constant 0 : index
    %c0_15 = arith.constant 0 : index
    %20 = vector.load %arg9[%c0_13, %c0_14, %c0_15] : memref<4x16x1xf32, #tpu.memory_space<vmem>>, vector<1x16x1xf32>
    %21 = vector.shape_cast %20 : vector<1x16x1xf32> to vector<16x1xf32>
    %22 = arith.mulf %16, %21 : vector<16x1xf32>
    %cst_16 = arith.constant dense<0.000000e+00> : vector<16xf32>
    %23 = vector.multi_reduction <add>, %19, %cst_16 [1] : vector<16x16xf32> to vector<16xf32>
    %24 = vector.shape_cast %23 : vector<16xf32> to vector<16x1xf32>
    %25 = arith.addf %22, %24 : vector<16x1xf32>
    %c0_17 = arith.constant 0 : index
    %c0_18 = arith.constant 0 : index
    %c0_19 = arith.constant 0 : index
    %26 = vector.load %arg9[%c0_17, %c0_18, %c0_19] : memref<4x16x1xf32, #tpu.memory_space<vmem>>, vector<1x16x1xf32>
    %27 = vector.shape_cast %26 : vector<1x16x1xf32> to vector<16x1xf32>
    %28 = vector.shape_cast %25 : vector<16x1xf32> to vector<1x16x1xf32>
    tpu.vector_store %arg9[%c0_17, %c0_18, %c0_19], %28 {strides = array<i32>} : memref<4x16x1xf32, #tpu.memory_space<vmem>>, vector<1x16x1xf32>,
    %c0_20 = arith.constant 0 : index
    %c0_21 = arith.constant 0 : index
    %c0_22 = arith.constant 0 : index
    %29 = vector.load %arg10[%c0_20, %c0_21, %c0_22] : memref<4x16x8xf32, #tpu.memory_space<vmem>>, vector<1x16x8xf32>
    %30 = vector.shape_cast %29 : vector<1x16x8xf32> to vector<16x8xf32>
    %31 = vector.broadcast %16 : vector<16x1xf32> to vector<16x8xf32>
    %32 = arith.mulf %31, %30 : vector<16x8xf32>
    %33 = arith.truncf %19 : vector<16x16xf32> to vector<16x16xbf16>
    %cst_23 = arith.constant dense<0.000000e+00> : vector<16x8xf32>
    %34 = tpu.matmul %33, %8, %cst_23 {dimension_numbers = #tpu.dot_dimension_numbers<[1], [0], [0], [1], [0, 0, 1, 1], [], []>} : vector<16x16xbf16>, vector<16x8xbf16>, vector<16x8xf32> -> vector<16x8xf32>
    %35 = arith.addf %32, %34 : vector<16x8xf32>
    %c0_24 = arith.constant 0 : index
    %c0_25 = arith.constant 0 : index
    %c0_26 = arith.constant 0 : index
    %36 = vector.load %arg10[%c0_24, %c0_25, %c0_26] : memref<4x16x8xf32, #tpu.memory_space<vmem>>, vector<1x16x8xf32>
    %37 = vector.shape_cast %36 : vector<1x16x8xf32> to vector<16x8xf32>
    %38 = vector.shape_cast %35 : vector<16x8xf32> to vector<1x16x8xf32>
    tpu.vector_store %arg10[%c0_24, %c0_25, %c0_26], %38 {strides = array<i32>} : memref<4x16x8xf32, #tpu.memory_space<vmem>>, vector<1x16x8xf32>,
    %c0_27 = arith.constant 0 : index
    %c0_28 = arith.constant 0 : index
    %c0_29 = arith.constant 0 : index
    %39 = vector.load %arg8[%c0_27, %c0_28, %c0_29] : memref<4x16x1xf32, #tpu.memory_space<vmem>>, vector<1x16x1xf32>
    %40 = vector.shape_cast %39 : vector<1x16x1xf32> to vector<16x1xf32>
    %41 = vector.shape_cast %14 : vector<16x1xf32> to vector<1x16x1xf32>
    tpu.vector_store %arg8[%c0_27, %c0_28, %c0_29], %41 {strides = array<i32>} : memref<4x16x1xf32, #tpu.memory_space<vmem>>, vector<1x16x1xf32>,
    %c0_30 = arith.constant 0 : index
    %c0_31 = arith.constant 0 : index
    %c8 = arith.constant 8 : index
    %42 = vector.load %arg4[%c0_30, %c0_31, %c8] : memref<1x16x32xbf16, #tpu.memory_space<vmem>>, vector<1x16x8xbf16>
    %43 = vector.shape_cast %42 : vector<1x16x8xbf16> to vector<16x8xbf16>
    %c0_32 = arith.constant 0 : index
    %c0_33 = arith.constant 0 : index
    %c8_34 = arith.constant 8 : index
    %44 = vector.load %arg5[%c0_32, %c0_33, %c8_34] : memref<1x16x32xbf16, #tpu.memory_space<vmem>>, vector<1x16x8xbf16>
    %45 = vector.shape_cast %44 : vector<1x16x8xbf16> to vector<16x8xbf16>
    %c0_35 = arith.constant 0 : index
    %c0_36 = arith.constant 0 : index
    %c8_37 = arith.constant 8 : index
    %46 = vector.load %arg6[%c0_35, %c0_36, %c8_37] : memref<1x16x32xbf16, #tpu.memory_space<vmem>>, vector<1x16x8xbf16>
    %47 = vector.shape_cast %46 : vector<1x16x8xbf16> to vector<16x8xbf16>
    %cst_38 = arith.constant dense<0.000000e+00> : vector<16x16xf32>
    %48 = tpu.matmul %43, %45, %cst_38 {dimension_numbers = #tpu.dot_dimension_numbers<[1], [1], [0], [0], [0, 0, 1, 0], [], []>} : vector<16x8xbf16>, vector<16x8xbf16>, vector<16x16xf32> -> vector<16x16xf32>
    %c1 = arith.constant 1 : index
    %c0_39 = arith.constant 0 : index
    %c0_40 = arith.constant 0 : index
    %49 = vector.load %arg8[%c1, %c0_39, %c0_40] : memref<4x16x1xf32, #tpu.memory_space<vmem>>, vector<1x16x1xf32>
    %50 = vector.shape_cast %49 : vector<1x16x1xf32> to vector<16x1xf32>
    %cst_41 = arith.constant dense<0xFF800000> : vector<16xf32>
    %51 = vector.multi_reduction <maximumf>, %48, %cst_41 [1] : vector<16x16xf32> to vector<16xf32>
    %52 = vector.shape_cast %51 : vector<16xf32> to vector<16x1xf32>
    %53 = arith.maximumf %50, %52 : vector<16x1xf32>
    %54 = arith.subf %50, %53 : vector<16x1xf32>
    %55 = math.exp %54 : vector<16x1xf32>
    %56 = vector.broadcast %53 : vector<16x1xf32> to vector<16x16xf32>
    %57 = arith.subf %48, %56 : vector<16x16xf32>
    %58 = math.exp %57 : vector<16x16xf32>
    %c1_42 = arith.constant 1 : index
    %c0_43 = arith.constant 0 : index
    %c0_44 = arith.constant 0 : index
    %59 = vector.load %arg9[%c1_42, %c0_43, %c0_44] : memref<4x16x1xf32, #tpu.memory_space<vmem>>, vector<1x16x1xf32>
    %60 = vector.shape_cast %59 : vector<1x16x1xf32> to vector<16x1xf32>
    %61 = arith.mulf %55, %60 : vector<16x1xf32>
    %cst_45 = arith.constant dense<0.000000e+00> : vector<16xf32>
    %62 = vector.multi_reduction <add>, %58, %cst_45 [1] : vector<16x16xf32> to vector<16xf32>
    %63 = vector.shape_cast %62 : vector<16xf32> to vector<16x1xf32>
    %64 = arith.addf %61, %63 : vector<16x1xf32>
    %c1_46 = arith.constant 1 : index
    %c0_47 = arith.constant 0 : index
    %c0_48 = arith.constant 0 : index
    %65 = vector.load %arg9[%c1_46, %c0_47, %c0_48] : memref<4x16x1xf32, #tpu.memory_space<vmem>>, vector<1x16x1xf32>
    %66 = vector.shape_cast %65 : vector<1x16x1xf32> to vector<16x1xf32>
    %67 = vector.shape_cast %64 : vector<16x1xf32> to vector<1x16x1xf32>
    tpu.vector_store %arg9[%c1_46, %c0_47, %c0_48], %67 {strides = array<i32>} : memref<4x16x1xf32, #tpu.memory_space<vmem>>, vector<1x16x1xf32>,
    %c1_49 = arith.constant 1 : index
    %c0_50 = arith.constant 0 : index
    %c0_51 = arith.constant 0 : index
    %68 = vector.load %arg10[%c1_49, %c0_50, %c0_51] : memref<4x16x8xf32, #tpu.memory_space<vmem>>, vector<1x16x8xf32>
    %69 = vector.shape_cast %68 : vector<1x16x8xf32> to vector<16x8xf32>
    %70 = vector.broadcast %55 : vector<16x1xf32> to vector<16x8xf32>
    %71 = arith.mulf %70, %69 : vector<16x8xf32>
    %72 = arith.truncf %58 : vector<16x16xf32> to vector<16x16xbf16>
    %cst_52 = arith.constant dense<0.000000e+00> : vector<16x8xf32>
    %73 = tpu.matmul %72, %47, %cst_52 {dimension_numbers = #tpu.dot_dimension_numbers<[1], [0], [0], [1], [0, 0, 1, 1], [], []>} : vector<16x16xbf16>, vector<16x8xbf16>, vector<16x8xf32> -> vector<16x8xf32>
    %74 = arith.addf %71, %73 : vector<16x8xf32>
    %c1_53 = arith.constant 1 : index
    %c0_54 = arith.constant 0 : index
    %c0_55 = arith.constant 0 : index
    %75 = vector.load %arg10[%c1_53, %c0_54, %c0_55] : memref<4x16x8xf32, #tpu.memory_space<vmem>>, vector<1x16x8xf32>
    %76 = vector.shape_cast %75 : vector<1x16x8xf32> to vector<16x8xf32>
    %77 = vector.shape_cast %74 : vector<16x8xf32> to vector<1x16x8xf32>
    tpu.vector_store %arg10[%c1_53, %c0_54, %c0_55], %77 {strides = array<i32>} : memref<4x16x8xf32, #tpu.memory_space<vmem>>, vector<1x16x8xf32>,
    %c1_56 = arith.constant 1 : index
    %c0_57 = arith.constant 0 : index
    %c0_58 = arith.constant 0 : index
    %78 = vector.load %arg8[%c1_56, %c0_57, %c0_58] : memref<4x16x1xf32, #tpu.memory_space<vmem>>, vector<1x16x1xf32>
    %79 = vector.shape_cast %78 : vector<1x16x1xf32> to vector<16x1xf32>
    %80 = vector.shape_cast %53 : vector<16x1xf32> to vector<1x16x1xf32>
    tpu.vector_store %arg8[%c1_56, %c0_57, %c0_58], %80 {strides = array<i32>} : memref<4x16x1xf32, #tpu.memory_space<vmem>>, vector<1x16x1xf32>,
    %c0_59 = arith.constant 0 : index
    %c0_60 = arith.constant 0 : index
    %c16 = arith.constant 16 : index
    %81 = vector.load %arg4[%c0_59, %c0_60, %c16] : memref<1x16x32xbf16, #tpu.memory_space<vmem>>, vector<1x16x8xbf16>
    %82 = vector.shape_cast %81 : vector<1x16x8xbf16> to vector<16x8xbf16>
    %c0_61 = arith.constant 0 : index
    %c0_62 = arith.constant 0 : index
    %c16_63 = arith.constant 16 : index
    %83 = vector.load %arg5[%c0_61, %c0_62, %c16_63] : memref<1x16x32xbf16, #tpu.memory_space<vmem>>, vector<1x16x8xbf16>
    %84 = vector.shape_cast %83 : vector<1x16x8xbf16> to vector<16x8xbf16>
    %c0_64 = arith.constant 0 : index
    %c0_65 = arith.constant 0 : index
    %c16_66 = arith.constant 16 : index
    %85 = vector.load %arg6[%c0_64, %c0_65, %c16_66] : memref<1x16x32xbf16, #tpu.memory_space<vmem>>, vector<1x16x8xbf16>
    %86 = vector.shape_cast %85 : vector<1x16x8xbf16> to vector<16x8xbf16>
    %cst_67 = arith.constant dense<0.000000e+00> : vector<16x16xf32>
    %87 = tpu.matmul %82, %84, %cst_67 {dimension_numbers = #tpu.dot_dimension_numbers<[1], [1], [0], [0], [0, 0, 1, 0], [], []>} : vector<16x8xbf16>, vector<16x8xbf16>, vector<16x16xf32> -> vector<16x16xf32>
    %c2 = arith.constant 2 : index
    %c0_68 = arith.constant 0 : index
    %c0_69 = arith.constant 0 : index
    %88 = vector.load %arg8[%c2, %c0_68, %c0_69] : memref<4x16x1xf32, #tpu.memory_space<vmem>>, vector<1x16x1xf32>
    %89 = vector.shape_cast %88 : vector<1x16x1xf32> to vector<16x1xf32>
    %cst_70 = arith.constant dense<0xFF800000> : vector<16xf32>
    %90 = vector.multi_reduction <maximumf>, %87, %cst_70 [1] : vector<16x16xf32> to vector<16xf32>
    %91 = vector.shape_cast %90 : vector<16xf32> to vector<16x1xf32>
    %92 = arith.maximumf %89, %91 : vector<16x1xf32>
    %93 = arith.subf %89, %92 : vector<16x1xf32>
    %94 = math.exp %93 : vector<16x1xf32>
    %95 = vector.broadcast %92 : vector<16x1xf32> to vector<16x16xf32>
    %96 = arith.subf %87, %95 : vector<16x16xf32>
    %97 = math.exp %96 : vector<16x16xf32>
    %c2_71 = arith.constant 2 : index
    %c0_72 = arith.constant 0 : index
    %c0_73 = arith.constant 0 : index
    %98 = vector.load %arg9[%c2_71, %c0_72, %c0_73] : memref<4x16x1xf32, #tpu.memory_space<vmem>>, vector<1x16x1xf32>
    %99 = vector.shape_cast %98 : vector<1x16x1xf32> to vector<16x1xf32>
    %100 = arith.mulf %94, %99 : vector<16x1xf32>
    %cst_74 = arith.constant dense<0.000000e+00> : vector<16xf32>
    %101 = vector.multi_reduction <add>, %97, %cst_74 [1] : vector<16x16xf32> to vector<16xf32>
    %102 = vector.shape_cast %101 : vector<16xf32> to vector<16x1xf32>
    %103 = arith.addf %100, %102 : vector<16x1xf32>
    %c2_75 = arith.constant 2 : index
    %c0_76 = arith.constant 0 : index
    %c0_77 = arith.constant 0 : index
    %104 = vector.load %arg9[%c2_75, %c0_76, %c0_77] : memref<4x16x1xf32, #tpu.memory_space<vmem>>, vector<1x16x1xf32>
    %105 = vector.shape_cast %104 : vector<1x16x1xf32> to vector<16x1xf32>
    %106 = vector.shape_cast %103 : vector<16x1xf32> to vector<1x16x1xf32>
    tpu.vector_store %arg9[%c2_75, %c0_76, %c0_77], %106 {strides = array<i32>} : memref<4x16x1xf32, #tpu.memory_space<vmem>>, vector<1x16x1xf32>,
    %c2_78 = arith.constant 2 : index
    %c0_79 = arith.constant 0 : index
    %c0_80 = arith.constant 0 : index
    %107 = vector.load %arg10[%c2_78, %c0_79, %c0_80] : memref<4x16x8xf32, #tpu.memory_space<vmem>>, vector<1x16x8xf32>
    %108 = vector.shape_cast %107 : vector<1x16x8xf32> to vector<16x8xf32>
    %109 = vector.broadcast %94 : vector<16x1xf32> to vector<16x8xf32>
    %110 = arith.mulf %109, %108 : vector<16x8xf32>
    %111 = arith.truncf %97 : vector<16x16xf32> to vector<16x16xbf16>
    %cst_81 = arith.constant dense<0.000000e+00> : vector<16x8xf32>
    %112 = tpu.matmul %111, %86, %cst_81 {dimension_numbers = #tpu.dot_dimension_numbers<[1], [0], [0], [1], [0, 0, 1, 1], [], []>} : vector<16x16xbf16>, vector<16x8xbf16>, vector<16x8xf32> -> vector<16x8xf32>
    %113 = arith.addf %110, %112 : vector<16x8xf32>
    %c2_82 = arith.constant 2 : index
    %c0_83 = arith.constant 0 : index
    %c0_84 = arith.constant 0 : index
    %114 = vector.load %arg10[%c2_82, %c0_83, %c0_84] : memref<4x16x8xf32, #tpu.memory_space<vmem>>, vector<1x16x8xf32>
    %115 = vector.shape_cast %114 : vector<1x16x8xf32> to vector<16x8xf32>
    %116 = vector.shape_cast %113 : vector<16x8xf32> to vector<1x16x8xf32>
    tpu.vector_store %arg10[%c2_82, %c0_83, %c0_84], %116 {strides = array<i32>} : memref<4x16x8xf32, #tpu.memory_space<vmem>>, vector<1x16x8xf32>,
    %c2_85 = arith.constant 2 : index
    %c0_86 = arith.constant 0 : index
    %c0_87 = arith.constant 0 : index
    %117 = vector.load %arg8[%c2_85, %c0_86, %c0_87] : memref<4x16x1xf32, #tpu.memory_space<vmem>>, vector<1x16x1xf32>
    %118 = vector.shape_cast %117 : vector<1x16x1xf32> to vector<16x1xf32>
    %119 = vector.shape_cast %92 : vector<16x1xf32> to vector<1x16x1xf32>
    tpu.vector_store %arg8[%c2_85, %c0_86, %c0_87], %119 {strides = array<i32>} : memref<4x16x1xf32, #tpu.memory_space<vmem>>, vector<1x16x1xf32>,
    %c0_88 = arith.constant 0 : index
    %c0_89 = arith.constant 0 : index
    %c24 = arith.constant 24 : index
    %120 = vector.load %arg4[%c0_88, %c0_89, %c24] : memref<1x16x32xbf16, #tpu.memory_space<vmem>>, vector<1x16x8xbf16>
    %121 = vector.shape_cast %120 : vector<1x16x8xbf16> to vector<16x8xbf16>
    %c0_90 = arith.constant 0 : index
    %c0_91 = arith.constant 0 : index
    %c24_92 = arith.constant 24 : index
    %122 = vector.load %arg5[%c0_90, %c0_91, %c24_92] : memref<1x16x32xbf16, #tpu.memory_space<vmem>>, vector<1x16x8xbf16>
    %123 = vector.shape_cast %122 : vector<1x16x8xbf16> to vector<16x8xbf16>
    %c0_93 = arith.constant 0 : index
    %c0_94 = arith.constant 0 : index
    %c24_95 = arith.constant 24 : index
    %124 = vector.load %arg6[%c0_93, %c0_94, %c24_95] : memref<1x16x32xbf16, #tpu.memory_space<vmem>>, vector<1x16x8xbf16>
    %125 = vector.shape_cast %124 : vector<1x16x8xbf16> to vector<16x8xbf16>
    %cst_96 = arith.constant dense<0.000000e+00> : vector<16x16xf32>
    %126 = tpu.matmul %121, %123, %cst_96 {dimension_numbers = #tpu.dot_dimension_numbers<[1], [1], [0], [0], [0, 0, 1, 0], [], []>} : vector<16x8xbf16>, vector<16x8xbf16>, vector<16x16xf32> -> vector<16x16xf32>
    %c3 = arith.constant 3 : index
    %c0_97 = arith.constant 0 : index
    %c0_98 = arith.constant 0 : index
    %127 = vector.load %arg8[%c3, %c0_97, %c0_98] : memref<4x16x1xf32, #tpu.memory_space<vmem>>, vector<1x16x1xf32>
    %128 = vector.shape_cast %127 : vector<1x16x1xf32> to vector<16x1xf32>
    %cst_99 = arith.constant dense<0xFF800000> : vector<16xf32>
    %129 = vector.multi_reduction <maximumf>, %126, %cst_99 [1] : vector<16x16xf32> to vector<16xf32>
    %130 = vector.shape_cast %129 : vector<16xf32> to vector<16x1xf32>
    %131 = arith.maximumf %128, %130 : vector<16x1xf32>
    %132 = arith.subf %128, %131 : vector<16x1xf32>
    %133 = math.exp %132 : vector<16x1xf32>
    %134 = vector.broadcast %131 : vector<16x1xf32> to vector<16x16xf32>
    %135 = arith.subf %126, %134 : vector<16x16xf32>
    %136 = math.exp %135 : vector<16x16xf32>
    %c3_100 = arith.constant 3 : index
    %c0_101 = arith.constant 0 : index
    %c0_102 = arith.constant 0 : index
    %137 = vector.load %arg9[%c3_100, %c0_101, %c0_102] : memref<4x16x1xf32, #tpu.memory_space<vmem>>, vector<1x16x1xf32>
    %138 = vector.shape_cast %137 : vector<1x16x1xf32> to vector<16x1xf32>
    %139 = arith.mulf %133, %138 : vector<16x1xf32>
    %cst_103 = arith.constant dense<0.000000e+00> : vector<16xf32>
    %140 = vector.multi_reduction <add>, %136, %cst_103 [1] : vector<16x16xf32> to vector<16xf32>
    %141 = vector.shape_cast %140 : vector<16xf32> to vector<16x1xf32>
    %142 = arith.addf %139, %141 : vector<16x1xf32>
    %c3_104 = arith.constant 3 : index
    %c0_105 = arith.constant 0 : index
    %c0_106 = arith.constant 0 : index
    %143 = vector.load %arg9[%c3_104, %c0_105, %c0_106] : memref<4x16x1xf32, #tpu.memory_space<vmem>>, vector<1x16x1xf32>
    %144 = vector.shape_cast %143 : vector<1x16x1xf32> to vector<16x1xf32>
    %145 = vector.shape_cast %142 : vector<16x1xf32> to vector<1x16x1xf32>
    tpu.vector_store %arg9[%c3_104, %c0_105, %c0_106], %145 {strides = array<i32>} : memref<4x16x1xf32, #tpu.memory_space<vmem>>, vector<1x16x1xf32>,
    %c3_107 = arith.constant 3 : index
    %c0_108 = arith.constant 0 : index
    %c0_109 = arith.constant 0 : index
    %146 = vector.load %arg10[%c3_107, %c0_108, %c0_109] : memref<4x16x8xf32, #tpu.memory_space<vmem>>, vector<1x16x8xf32>
    %147 = vector.shape_cast %146 : vector<1x16x8xf32> to vector<16x8xf32>
    %148 = vector.broadcast %133 : vector<16x1xf32> to vector<16x8xf32>
    %149 = arith.mulf %148, %147 : vector<16x8xf32>
    %150 = arith.truncf %136 : vector<16x16xf32> to vector<16x16xbf16>
    %cst_110 = arith.constant dense<0.000000e+00> : vector<16x8xf32>
    %151 = tpu.matmul %150, %125, %cst_110 {dimension_numbers = #tpu.dot_dimension_numbers<[1], [0], [0], [1], [0, 0, 1, 1], [], []>} : vector<16x16xbf16>, vector<16x8xbf16>, vector<16x8xf32> -> vector<16x8xf32>
    %152 = arith.addf %149, %151 : vector<16x8xf32>
    %c3_111 = arith.constant 3 : index
    %c0_112 = arith.constant 0 : index
    %c0_113 = arith.constant 0 : index
    %153 = vector.load %arg10[%c3_111, %c0_112, %c0_113] : memref<4x16x8xf32, #tpu.memory_space<vmem>>, vector<1x16x8xf32>
    %154 = vector.shape_cast %153 : vector<1x16x8xf32> to vector<16x8xf32>
    %155 = vector.shape_cast %152 : vector<16x8xf32> to vector<1x16x8xf32>
    tpu.vector_store %arg10[%c3_111, %c0_112, %c0_113], %155 {strides = array<i32>} : memref<4x16x8xf32, #tpu.memory_space<vmem>>, vector<1x16x8xf32>,
    %c3_114 = arith.constant 3 : index
    %c0_115 = arith.constant 0 : index
    %c0_116 = arith.constant 0 : index
    %156 = vector.load %arg8[%c3_114, %c0_115, %c0_116] : memref<4x16x1xf32, #tpu.memory_space<vmem>>, vector<1x16x1xf32>
    %157 = vector.shape_cast %156 : vector<1x16x1xf32> to vector<16x1xf32>
    %158 = vector.shape_cast %131 : vector<16x1xf32> to vector<1x16x1xf32>
    tpu.vector_store %arg8[%c3_114, %c0_115, %c0_116], %158 {strides = array<i32>} : memref<4x16x1xf32, #tpu.memory_space<vmem>>, vector<1x16x1xf32>,
    %c0_i32_117 = arith.constant 0 : i32
    %159 = arith.cmpi eq, %arg3, %c0_i32_117 : i32
    %160 = arith.extui %159 : i1 to i32
    %c0_i32_118 = arith.constant 0 : i32
    %161 = arith.cmpi ne, %160, %c0_i32_118 : i32
    scf.if %161 {
      %c0_119 = arith.constant 0 : index
      %c0_120 = arith.constant 0 : index
      %c0_121 = arith.constant 0 : index
      %162 = vector.load %arg10[%c0_119, %c0_120, %c0_121] : memref<4x16x8xf32, #tpu.memory_space<vmem>>, vector<1x16x8xf32>
      %163 = vector.shape_cast %162 : vector<1x16x8xf32> to vector<16x8xf32>
      %c0_122 = arith.constant 0 : index
      %c0_123 = arith.constant 0 : index
      %c0_124 = arith.constant 0 : index
      %164 = vector.load %arg9[%c0_122, %c0_123, %c0_124] : memref<4x16x1xf32, #tpu.memory_space<vmem>>, vector<1x16x1xf32>
      %165 = vector.shape_cast %164 : vector<1x16x1xf32> to vector<16x1xf32>
      %166 = tpu.reciprocal %165 {approx = true} : vector<16x1xf32> -> vector<16x1xf32>
      %167 = vector.broadcast %166 : vector<16x1xf32> to vector<16x8xf32>
      %168 = arith.mulf %163, %167 : vector<16x8xf32>
      %c1_125 = arith.constant 1 : index
      %c0_126 = arith.constant 0 : index
      %c0_127 = arith.constant 0 : index
      %169 = vector.load %arg10[%c1_125, %c0_126, %c0_127] : memref<4x16x8xf32, #tpu.memory_space<vmem>>, vector<1x16x8xf32>
      %170 = vector.shape_cast %169 : vector<1x16x8xf32> to vector<16x8xf32>
      %c1_128 = arith.constant 1 : index
      %c0_129 = arith.constant 0 : index
      %c0_130 = arith.constant 0 : index
      %171 = vector.load %arg9[%c1_128, %c0_129, %c0_130] : memref<4x16x1xf32, #tpu.memory_space<vmem>>, vector<1x16x1xf32>
      %172 = vector.shape_cast %171 : vector<1x16x1xf32> to vector<16x1xf32>
      %173 = tpu.reciprocal %172 {approx = true} : vector<16x1xf32> -> vector<16x1xf32>
      %174 = vector.broadcast %173 : vector<16x1xf32> to vector<16x8xf32>
      %175 = arith.mulf %170, %174 : vector<16x8xf32>
      %c2_131 = arith.constant 2 : index
      %c0_132 = arith.constant 0 : index
      %c0_133 = arith.constant 0 : index
      %176 = vector.load %arg10[%c2_131, %c0_132, %c0_133] : memref<4x16x8xf32, #tpu.memory_space<vmem>>, vector<1x16x8xf32>
      %177 = vector.shape_cast %176 : vector<1x16x8xf32> to vector<16x8xf32>
      %c2_134 = arith.constant 2 : index
      %c0_135 = arith.constant 0 : index
      %c0_136 = arith.constant 0 : index
      %178 = vector.load %arg9[%c2_134, %c0_135, %c0_136] : memref<4x16x1xf32, #tpu.memory_space<vmem>>, vector<1x16x1xf32>
      %179 = vector.shape_cast %178 : vector<1x16x1xf32> to vector<16x1xf32>
      %180 = tpu.reciprocal %179 {approx = true} : vector<16x1xf32> -> vector<16x1xf32>
      %181 = vector.broadcast %180 : vector<16x1xf32> to vector<16x8xf32>
      %182 = arith.mulf %177, %181 : vector<16x8xf32>
      %c3_137 = arith.constant 3 : index
      %c0_138 = arith.constant 0 : index
      %c0_139 = arith.constant 0 : index
      %183 = vector.load %arg10[%c3_137, %c0_138, %c0_139] : memref<4x16x8xf32, #tpu.memory_space<vmem>>, vector<1x16x8xf32>
      %184 = vector.shape_cast %183 : vector<1x16x8xf32> to vector<16x8xf32>
      %c3_140 = arith.constant 3 : index
      %c0_141 = arith.constant 0 : index
      %c0_142 = arith.constant 0 : index
      %185 = vector.load %arg9[%c3_140, %c0_141, %c0_142] : memref<4x16x1xf32, #tpu.memory_space<vmem>>, vector<1x16x1xf32>
      %186 = vector.shape_cast %185 : vector<1x16x1xf32> to vector<16x1xf32>
      %187 = tpu.reciprocal %186 {approx = true} : vector<16x1xf32> -> vector<16x1xf32>
      %188 = vector.broadcast %187 : vector<16x1xf32> to vector<16x8xf32>
      %189 = arith.mulf %184, %188 : vector<16x8xf32>
      %190 = tpu.concatenate %168, %175, %182, %189 in 1 : vector<16x8xf32>, vector<16x8xf32>, vector<16x8xf32>, vector<16x8xf32> -> vector<16x32xf32>
      %191 = arith.truncf %190 : vector<16x32xf32> to vector<16x32xbf16>
      %c0_143 = arith.constant 0 : index
      %c0_144 = arith.constant 0 : index
      %c0_145 = arith.constant 0 : index
      %192 = vector.load %arg7[%c0_143, %c0_144, %c0_145] : memref<1x16x32xbf16, #tpu.memory_space<vmem>>, vector<1x16x32xbf16>
      %193 = vector.shape_cast %192 : vector<1x16x32xbf16> to vector<16x32xbf16>
      %194 = vector.shape_cast %191 : vector<16x32xbf16> to vector<1x16x32xbf16>
      tpu.vector_store %arg7[%c0_143, %c0_144, %c0_145], %194 {strides = array<i32>} : memref<1x16x32xbf16, #tpu.memory_space<vmem>>, vector<1x16x32xbf16>,
    } else {
    }
    return
  }
  func.func @transform_0(%arg0: i32, %arg1: i32, %arg2: i32, %arg3: i32) -> (i32, i32, i32) {
    %c0_i32 = arith.constant 0 : i32
    return %arg0, %arg2, %arg1 : i32, i32, i32
  }
  func.func @transform_1(%arg0: i32, %arg1: i32, %arg2: i32, %arg3: i32) -> (i32, i32, i32) {
    %c0_i32 = arith.constant 0 : i32
    return %arg0, %arg3, %arg1 : i32, i32, i32
  }
  func.func @transform_2(%arg0: i32, %arg1: i32, %arg2: i32, %arg3: i32) -> (i32, i32, i32) {
    %c0_i32 = arith.constant 0 : i32
    return %arg0, %arg3, %arg1 : i32, i32, i32
  }
  func.func @transform_3(%arg0: i32, %arg1: i32, %arg2: i32, %arg3: i32) -> (i32, i32, i32) {
    %c0_i32 = arith.constant 0 : i32
    return %arg0, %arg2, %arg1 : i32, i32, i32
  }
}

module attributes {stable_mosaic.version = 11 : i64} {
  func.func @_gemm_kernel(%arg0: i32, %arg1: memref<32x32xbf16, #tpu.memory_space<vmem>>, %arg2: memref<32x32xbf16, #tpu.memory_space<vmem>>, %arg3: memref<1x32xf32, #tpu.memory_space<vmem>>, %arg4: memref<32x32xf32, #tpu.memory_space<vmem>>, %arg5: memref<32x32xf32, #tpu.memory_space<vmem>>) attributes {dimension_semantics = [#tpu.dimension_semantics<parallel>], iteration_bounds = array<i64: 1>, scalar_prefetch = 0 : i64, scratch_operands = 0 : i64, tpu.core_type = #tpu.core_type<tc>, window_params = [{transform_indices = @transform_0, window_bounds = array<i64: 32, 32>}, {pipeline_mode = #tpu.pipeline_mode<synchronous>, transform_indices = @transform_1, window_bounds = array<i64: 32, 32>}, {pipeline_mode = #tpu.pipeline_mode<synchronous>, transform_indices = @transform_2, window_bounds = array<i64: 1, 32>}, {transform_indices = @transform_3, window_bounds = array<i64: 32, 32>}, {transform_indices = @transform_4, window_bounds = array<i64: 32, 32>}]} {
    %c0 = arith.constant 0 : index
    %c0_0 = arith.constant 0 : index
    %0 = vector.load %arg1[%c0, %c0_0] : memref<32x32xbf16, #tpu.memory_space<vmem>>, vector<32x32xbf16>
    %c0_1 = arith.constant 0 : index
    %c0_2 = arith.constant 0 : index
    %1 = vector.load %arg2[%c0_1, %c0_2] : memref<32x32xbf16, #tpu.memory_space<vmem>>, vector<32x32xbf16>
    %cst = arith.constant dense<0.000000e+00> : vector<32x32xf32>
    %2 = tpu.matmul %0, %1, %cst {dimension_numbers = #tpu.dot_dimension_numbers<[1], [0], [0], [1], [0, 0, 1, 1], [], []>} : vector<32x32xbf16>, vector<32x32xbf16>, vector<32x32xf32> -> vector<32x32xf32>
    %c0_3 = arith.constant 0 : index
    %c0_4 = arith.constant 0 : index
    %3 = vector.load %arg3[%c0_3, %c0_4] : memref<1x32xf32, #tpu.memory_space<vmem>>, vector<1x32xf32>
    %4 = vector.broadcast %3 : vector<1x32xf32> to vector<32x32xf32>
    %5 = arith.addf %2, %4 : vector<32x32xf32>
    %c0_5 = arith.constant 0 : index
    %c0_6 = arith.constant 0 : index
    %6 = vector.load %arg4[%c0_5, %c0_6] : memref<32x32xf32, #tpu.memory_space<vmem>>, vector<32x32xf32>
    %7 = arith.addf %5, %6 : vector<32x32xf32>
    %c0_7 = arith.constant 0 : index
    %c0_8 = arith.constant 0 : index
    %8 = vector.load %arg5[%c0_7, %c0_8] : memref<32x32xf32, #tpu.memory_space<vmem>>, vector<32x32xf32>
    tpu.vector_store %arg5[%c0_7, %c0_8], %7 {strides = array<i32>} : memref<32x32xf32, #tpu.memory_space<vmem>>, vector<32x32xf32>,
    return
  }
  func.func @transform_0(%arg0: i32) -> (i32, i32) {
    %c0_i32 = arith.constant 0 : i32
    %c0_i32_0 = arith.constant 0 : i32
    return %arg0, %c0_i32 : i32, i32
  }
  func.func @transform_1(%arg0: i32) -> (i32, i32) {
    %c0_i32 = arith.constant 0 : i32
    %c0_i32_0 = arith.constant 0 : i32
    %c0_i32_1 = arith.constant 0 : i32
    return %c0_i32, %c0_i32_0 : i32, i32
  }
  func.func @transform_2(%arg0: i32) -> (i32, i32) {
    %c0_i32 = arith.constant 0 : i32
    %c0_i32_0 = arith.constant 0 : i32
    %c0_i32_1 = arith.constant 0 : i32
    return %c0_i32, %c0_i32_0 : i32, i32
  }
  func.func @transform_3(%arg0: i32) -> (i32, i32) {
    %c0_i32 = arith.constant 0 : i32
    %c0_i32_0 = arith.constant 0 : i32
    return %arg0, %c0_i32 : i32, i32
  }
  func.func @transform_4(%arg0: i32) -> (i32, i32) {
    %c0_i32 = arith.constant 0 : i32
    %c0_i32_0 = arith.constant 0 : i32
    return %arg0, %c0_i32 : i32, i32
  }
}

module attributes {stable_mosaic.version = 11 : i64} {
  func.func @_gemm_kernel(%arg0: i32, %arg1: memref<32x32xf32, #tpu.memory_space<vmem>>, %arg2: memref<1x32xf32, #tpu.memory_space<vmem>>, %arg3: memref<1x32xf32, #tpu.memory_space<vmem>>, %arg4: memref<32x128xbf16, #tpu.memory_space<vmem>>, %arg5: memref<1x128xf32, #tpu.memory_space<vmem>>, %arg6: memref<32x128xbf16, #tpu.memory_space<vmem>>) attributes {dimension_semantics = [#tpu.dimension_semantics<parallel>], iteration_bounds = array<i64: 1>, scalar_prefetch = 0 : i64, scratch_operands = 0 : i64, tpu.core_type = #tpu.core_type<tc>, window_params = [{transform_indices = @transform_0, window_bounds = array<i64: 32, 32>}, {pipeline_mode = #tpu.pipeline_mode<synchronous>, transform_indices = @transform_1, window_bounds = array<i64: 1, 32>}, {pipeline_mode = #tpu.pipeline_mode<synchronous>, transform_indices = @transform_2, window_bounds = array<i64: 1, 32>}, {pipeline_mode = #tpu.pipeline_mode<synchronous>, transform_indices = @transform_3, window_bounds = array<i64: 32, 128>}, {pipeline_mode = #tpu.pipeline_mode<synchronous>, transform_indices = @transform_4, window_bounds = array<i64: 1, 128>}, {transform_indices = @transform_5, window_bounds = array<i64: 32, 128>}]} {
    %c0 = arith.constant 0 : index
    %c0_0 = arith.constant 0 : index
    %0 = vector.load %arg1[%c0, %c0_0] : memref<32x32xf32, #tpu.memory_space<vmem>>, vector<32x32xf32>
    %cst = arith.constant dense<0.000000e+00> : vector<32xf32>
    %1 = vector.multi_reduction <add>, %0, %cst [1] : vector<32x32xf32> to vector<32xf32>
    %2 = vector.shape_cast %1 : vector<32xf32> to vector<32x1xf32>
    %cst_1 = arith.constant 3.200000e+01 : f32
    %3 = vector.broadcast %cst_1 : f32 to vector<32x1xf32>
    %4 = arith.divf %2, %3 : vector<32x1xf32>
    %5 = vector.broadcast %4 : vector<32x1xf32> to vector<32x32xf32>
    %6 = arith.subf %0, %5 : vector<32x32xf32>
    %7 = arith.mulf %6, %6 : vector<32x32xf32>
    %cst_2 = arith.constant dense<0.000000e+00> : vector<32xf32>
    %8 = vector.multi_reduction <add>, %7, %cst_2 [1] : vector<32x32xf32> to vector<32xf32>
    %9 = vector.shape_cast %8 : vector<32xf32> to vector<32x1xf32>
    %cst_3 = arith.constant 3.200000e+01 : f32
    %10 = vector.broadcast %cst_3 : f32 to vector<32x1xf32>
    %11 = arith.divf %9, %10 : vector<32x1xf32>
    %cst_4 = arith.constant 9.99999974E-6 : f32
    %12 = vector.broadcast %cst_4 : f32 to vector<32x1xf32>
    %13 = arith.addf %11, %12 : vector<32x1xf32>
    %14 = math.rsqrt %13 : vector<32x1xf32>
    %15 = vector.broadcast %14 : vector<32x1xf32> to vector<32x32xf32>
    %16 = arith.mulf %6, %15 : vector<32x32xf32>
    %c0_5 = arith.constant 0 : index
    %c0_6 = arith.constant 0 : index
    %17 = vector.load %arg2[%c0_5, %c0_6] : memref<1x32xf32, #tpu.memory_space<vmem>>, vector<1x32xf32>
    %18 = vector.broadcast %17 : vector<1x32xf32> to vector<32x32xf32>
    %19 = arith.mulf %16, %18 : vector<32x32xf32>
    %c0_7 = arith.constant 0 : index
    %c0_8 = arith.constant 0 : index
    %20 = vector.load %arg3[%c0_7, %c0_8] : memref<1x32xf32, #tpu.memory_space<vmem>>, vector<1x32xf32>
    %21 = vector.broadcast %20 : vector<1x32xf32> to vector<32x32xf32>
    %22 = arith.addf %19, %21 : vector<32x32xf32>
    %23 = arith.truncf %22 : vector<32x32xf32> to vector<32x32xbf16>
    %c0_9 = arith.constant 0 : index
    %c0_10 = arith.constant 0 : index
    %24 = vector.load %arg4[%c0_9, %c0_10] : memref<32x128xbf16, #tpu.memory_space<vmem>>, vector<32x128xbf16>
    %cst_11 = arith.constant dense<0.000000e+00> : vector<32x128xf32>
    %25 = tpu.matmul %23, %24, %cst_11 {dimension_numbers = #tpu.dot_dimension_numbers<[1], [0], [0], [1], [0, 0, 1, 1], [], []>} : vector<32x32xbf16>, vector<32x128xbf16>, vector<32x128xf32> -> vector<32x128xf32>
    %c0_12 = arith.constant 0 : index
    %c0_13 = arith.constant 0 : index
    %26 = vector.load %arg5[%c0_12, %c0_13] : memref<1x128xf32, #tpu.memory_space<vmem>>, vector<1x128xf32>
    %27 = vector.broadcast %26 : vector<1x128xf32> to vector<32x128xf32>
    %28 = arith.addf %25, %27 : vector<32x128xf32>
    %29 = arith.mulf %28, %28 : vector<32x128xf32>
    %30 = arith.mulf %28, %29 : vector<32x128xf32>
    %cst_14 = arith.constant 4.471500e-02 : f32
    %31 = vector.broadcast %cst_14 : f32 to vector<32x128xf32>
    %32 = arith.mulf %31, %30 : vector<32x128xf32>
    %33 = arith.addf %28, %32 : vector<32x128xf32>
    %cst_15 = arith.constant 0.797884583 : f32
    %34 = vector.broadcast %cst_15 : f32 to vector<32x128xf32>
    %35 = arith.mulf %34, %33 : vector<32x128xf32>
    %36 = math.tanh %35 : vector<32x128xf32>
    %cst_16 = arith.constant 1.000000e+00 : f32
    %37 = vector.broadcast %cst_16 : f32 to vector<32x128xf32>
    %38 = arith.addf %37, %36 : vector<32x128xf32>
    %cst_17 = arith.constant 5.000000e-01 : f32
    %39 = vector.broadcast %cst_17 : f32 to vector<32x128xf32>
    %40 = arith.mulf %39, %38 : vector<32x128xf32>
    %41 = arith.mulf %28, %40 : vector<32x128xf32>
    %42 = arith.truncf %41 : vector<32x128xf32> to vector<32x128xbf16>
    %c0_18 = arith.constant 0 : index
    %c0_19 = arith.constant 0 : index
    %43 = vector.load %arg6[%c0_18, %c0_19] : memref<32x128xbf16, #tpu.memory_space<vmem>>, vector<32x128xbf16>
    tpu.vector_store %arg6[%c0_18, %c0_19], %42 {strides = array<i32>} : memref<32x128xbf16, #tpu.memory_space<vmem>>, vector<32x128xbf16>,
    return
  }
  func.func @transform_0(%arg0: i32) -> (i32, i32) {
    %c0_i32 = arith.constant 0 : i32
    %c0_i32_0 = arith.constant 0 : i32
    return %arg0, %c0_i32 : i32, i32
  }
  func.func @transform_1(%arg0: i32) -> (i32, i32) {
    %c0_i32 = arith.constant 0 : i32
    %c0_i32_0 = arith.constant 0 : i32
    %c0_i32_1 = arith.constant 0 : i32
    return %c0_i32, %c0_i32_0 : i32, i32
  }
  func.func @transform_2(%arg0: i32) -> (i32, i32) {
    %c0_i32 = arith.constant 0 : i32
    %c0_i32_0 = arith.constant 0 : i32
    %c0_i32_1 = arith.constant 0 : i32
    return %c0_i32, %c0_i32_0 : i32, i32
  }
  func.func @transform_3(%arg0: i32) -> (i32, i32) {
    %c0_i32 = arith.constant 0 : i32
    %c0_i32_0 = arith.constant 0 : i32
    %c0_i32_1 = arith.constant 0 : i32
    return %c0_i32, %c0_i32_0 : i32, i32
  }
  func.func @transform_4(%arg0: i32) -> (i32, i32) {
    %c0_i32 = arith.constant 0 : i32
    %c0_i32_0 = arith.constant 0 : i32
    %c0_i32_1 = arith.constant 0 : i32
    return %c0_i32, %c0_i32_0 : i32, i32
  }
  func.func @transform_5(%arg0: i32) -> (i32, i32) {
    %c0_i32 = arith.constant 0 : i32
    %c0_i32_0 = arith.constant 0 : i32
    return %arg0, %c0_i32 : i32, i32
  }
}

module attributes {stable_mosaic.version = 11 : i64} {
  func.func @_gemm_kernel(%arg0: i32, %arg1: memref<32x128xbf16, #tpu.memory_space<vmem>>, %arg2: memref<128x32xbf16, #tpu.memory_space<vmem>>, %arg3: memref<1x32xf32, #tpu.memory_space<vmem>>, %arg4: memref<32x32xf32, #tpu.memory_space<vmem>>, %arg5: memref<32x32xf32, #tpu.memory_space<vmem>>) attributes {dimension_semantics = [#tpu.dimension_semantics<parallel>], iteration_bounds = array<i64: 1>, scalar_prefetch = 0 : i64, scratch_operands = 0 : i64, tpu.core_type = #tpu.core_type<tc>, window_params = [{transform_indices = @transform_0, window_bounds = array<i64: 32, 128>}, {pipeline_mode = #tpu.pipeline_mode<synchronous>, transform_indices = @transform_1, window_bounds = array<i64: 128, 32>}, {pipeline_mode = #tpu.pipeline_mode<synchronous>, transform_indices = @transform_2, window_bounds = array<i64: 1, 32>}, {transform_indices = @transform_3, window_bounds = array<i64: 32, 32>}, {transform_indices = @transform_4, window_bounds = array<i64: 32, 32>}]} {
    %c0 = arith.constant 0 : index
    %c0_0 = arith.constant 0 : index
    %0 = vector.load %arg1[%c0, %c0_0] : memref<32x128xbf16, #tpu.memory_space<vmem>>, vector<32x128xbf16>
    %c0_1 = arith.constant 0 : index
    %c0_2 = arith.constant 0 : index
    %1 = vector.load %arg2[%c0_1, %c0_2] : memref<128x32xbf16, #tpu.memory_space<vmem>>, vector<128x32xbf16>
    %cst = arith.constant dense<0.000000e+00> : vector<32x32xf32>
    %2 = tpu.matmul %0, %1, %cst {dimension_numbers = #tpu.dot_dimension_numbers<[1], [0], [0], [1], [0, 0, 1, 1], [], []>} : vector<32x128xbf16>, vector<128x32xbf16>, vector<32x32xf32> -> vector<32x32xf32>
    %c0_3 = arith.constant 0 : index
    %c0_4 = arith.constant 0 : index
    %3 = vector.load %arg3[%c0_3, %c0_4] : memref<1x32xf32, #tpu.memory_space<vmem>>, vector<1x32xf32>
    %4 = vector.broadcast %3 : vector<1x32xf32> to vector<32x32xf32>
    %5 = arith.addf %2, %4 : vector<32x32xf32>
    %c0_5 = arith.constant 0 : index
    %c0_6 = arith.constant 0 : index
    %6 = vector.load %arg4[%c0_5, %c0_6] : memref<32x32xf32, #tpu.memory_space<vmem>>, vector<32x32xf32>
    %7 = arith.addf %5, %6 : vector<32x32xf32>
    %c0_7 = arith.constant 0 : index
    %c0_8 = arith.constant 0 : index
    %8 = vector.load %arg5[%c0_7, %c0_8] : memref<32x32xf32, #tpu.memory_space<vmem>>, vector<32x32xf32>
    tpu.vector_store %arg5[%c0_7, %c0_8], %7 {strides = array<i32>} : memref<32x32xf32, #tpu.memory_space<vmem>>, vector<32x32xf32>,
    return
  }
  func.func @transform_0(%arg0: i32) -> (i32, i32) {
    %c0_i32 = arith.constant 0 : i32
    %c0_i32_0 = arith.constant 0 : i32
    return %arg0, %c0_i32 : i32, i32
  }
  func.func @transform_1(%arg0: i32) -> (i32, i32) {
    %c0_i32 = arith.constant 0 : i32
    %c0_i32_0 = arith.constant 0 : i32
    %c0_i32_1 = arith.constant 0 : i32
    return %c0_i32, %c0_i32_0 : i32, i32
  }
  func.func @transform_2(%arg0: i32) -> (i32, i32) {
    %c0_i32 = arith.constant 0 : i32
    %c0_i32_0 = arith.constant 0 : i32
    %c0_i32_1 = arith.constant 0 : i32
    return %c0_i32, %c0_i32_0 : i32, i32
  }
  func.func @transform_3(%arg0: i32) -> (i32, i32) {
    %c0_i32 = arith.constant 0 : i32
    %c0_i32_0 = arith.constant 0 : i32
    return %arg0, %c0_i32 : i32, i32
  }
  func.func @transform_4(%arg0: i32) -> (i32, i32) {
    %c0_i32 = arith.constant 0 : i32
    %c0_i32_0 = arith.constant 0 : i32
    return %arg0, %c0_i32 : i32, i32
  }
}

module attributes {stable_mosaic.version = 11 : i64} {
  func.func @_gemm_kernel(%arg0: i32, %arg1: memref<16x32xf32, #tpu.memory_space<vmem>>, %arg2: memref<1x32xf32, #tpu.memory_space<vmem>>, %arg3: memref<1x32xf32, #tpu.memory_space<vmem>>, %arg4: memref<32x128xbf16, #tpu.memory_space<vmem>>, %arg5: memref<1x128xf32, #tpu.memory_space<vmem>>, %arg6: memref<16x128xf32, #tpu.memory_space<vmem>>) attributes {dimension_semantics = [#tpu.dimension_semantics<parallel>], iteration_bounds = array<i64: 1>, scalar_prefetch = 0 : i64, scratch_operands = 0 : i64, tpu.core_type = #tpu.core_type<tc>, window_params = [{transform_indices = @transform_0, window_bounds = array<i64: 16, 32>}, {pipeline_mode = #tpu.pipeline_mode<synchronous>, transform_indices = @transform_1, window_bounds = array<i64: 1, 32>}, {pipeline_mode = #tpu.pipeline_mode<synchronous>, transform_indices = @transform_2, window_bounds = array<i64: 1, 32>}, {pipeline_mode = #tpu.pipeline_mode<synchronous>, transform_indices = @transform_3, window_bounds = array<i64: 32, 128>}, {pipeline_mode = #tpu.pipeline_mode<synchronous>, transform_indices = @transform_4, window_bounds = array<i64: 1, 128>}, {transform_indices = @transform_5, window_bounds = array<i64: 16, 128>}]} {
    %c0 = arith.constant 0 : index
    %c0_0 = arith.constant 0 : index
    %0 = vector.load %arg1[%c0, %c0_0] : memref<16x32xf32, #tpu.memory_space<vmem>>, vector<16x32xf32>
    %cst = arith.constant dense<0.000000e+00> : vector<16xf32>
    %1 = vector.multi_reduction <add>, %0, %cst [1] : vector<16x32xf32> to vector<16xf32>
    %2 = vector.shape_cast %1 : vector<16xf32> to vector<16x1xf32>
    %cst_1 = arith.constant 3.200000e+01 : f32
    %3 = vector.broadcast %cst_1 : f32 to vector<16x1xf32>
    %4 = arith.divf %2, %3 : vector<16x1xf32>
    %5 = vector.broadcast %4 : vector<16x1xf32> to vector<16x32xf32>
    %6 = arith.subf %0, %5 : vector<16x32xf32>
    %7 = arith.mulf %6, %6 : vector<16x32xf32>
    %cst_2 = arith.constant dense<0.000000e+00> : vector<16xf32>
    %8 = vector.multi_reduction <add>, %7, %cst_2 [1] : vector<16x32xf32> to vector<16xf32>
    %9 = vector.shape_cast %8 : vector<16xf32> to vector<16x1xf32>
    %cst_3 = arith.constant 3.200000e+01 : f32
    %10 = vector.broadcast %cst_3 : f32 to vector<16x1xf32>
    %11 = arith.divf %9, %10 : vector<16x1xf32>
    %cst_4 = arith.constant 9.99999974E-6 : f32
    %12 = vector.broadcast %cst_4 : f32 to vector<16x1xf32>
    %13 = arith.addf %11, %12 : vector<16x1xf32>
    %14 = math.rsqrt %13 : vector<16x1xf32>
    %15 = vector.broadcast %14 : vector<16x1xf32> to vector<16x32xf32>
    %16 = arith.mulf %6, %15 : vector<16x32xf32>
    %c0_5 = arith.constant 0 : index
    %c0_6 = arith.constant 0 : index
    %17 = vector.load %arg2[%c0_5, %c0_6] : memref<1x32xf32, #tpu.memory_space<vmem>>, vector<1x32xf32>
    %18 = vector.broadcast %17 : vector<1x32xf32> to vector<16x32xf32>
    %19 = arith.mulf %16, %18 : vector<16x32xf32>
    %c0_7 = arith.constant 0 : index
    %c0_8 = arith.constant 0 : index
    %20 = vector.load %arg3[%c0_7, %c0_8] : memref<1x32xf32, #tpu.memory_space<vmem>>, vector<1x32xf32>
    %21 = vector.broadcast %20 : vector<1x32xf32> to vector<16x32xf32>
    %22 = arith.addf %19, %21 : vector<16x32xf32>
    %23 = arith.truncf %22 : vector<16x32xf32> to vector<16x32xbf16>
    %c0_9 = arith.constant 0 : index
    %c0_10 = arith.constant 0 : index
    %24 = vector.load %arg4[%c0_9, %c0_10] : memref<32x128xbf16, #tpu.memory_space<vmem>>, vector<32x128xbf16>
    %cst_11 = arith.constant dense<0.000000e+00> : vector<16x128xf32>
    %25 = tpu.matmul %23, %24, %cst_11 {dimension_numbers = #tpu.dot_dimension_numbers<[1], [0], [0], [1], [0, 0, 1, 1], [], []>} : vector<16x32xbf16>, vector<32x128xbf16>, vector<16x128xf32> -> vector<16x128xf32>
    %c0_12 = arith.constant 0 : index
    %c0_13 = arith.constant 0 : index
    %26 = vector.load %arg5[%c0_12, %c0_13] : memref<1x128xf32, #tpu.memory_space<vmem>>, vector<1x128xf32>
    %27 = vector.broadcast %26 : vector<1x128xf32> to vector<16x128xf32>
    %28 = arith.addf %25, %27 : vector<16x128xf32>
    %c0_14 = arith.constant 0 : index
    %c0_15 = arith.constant 0 : index
    %29 = vector.load %arg6[%c0_14, %c0_15] : memref<16x128xf32, #tpu.memory_space<vmem>>, vector<16x128xf32>
    tpu.vector_store %arg6[%c0_14, %c0_15], %28 {strides = array<i32>} : memref<16x128xf32, #tpu.memory_space<vmem>>, vector<16x128xf32>,
    return
  }
  func.func @transform_0(%arg0: i32) -> (i32, i32) {
    %c0_i32 = arith.constant 0 : i32
    %c0_i32_0 = arith.constant 0 : i32
    return %arg0, %c0_i32 : i32, i32
  }
  func.func @transform_1(%arg0: i32) -> (i32, i32) {
    %c0_i32 = arith.constant 0 : i32
    %c0_i32_0 = arith.constant 0 : i32
    %c0_i32_1 = arith.constant 0 : i32
    return %c0_i32, %c0_i32_0 : i32, i32
  }
  func.func @transform_2(%arg0: i32) -> (i32, i32) {
    %c0_i32 = arith.constant 0 : i32
    %c0_i32_0 = arith.constant 0 : i32
    %c0_i32_1 = arith.constant 0 : i32
    return %c0_i32, %c0_i32_0 : i32, i32
  }
  func.func @transform_3(%arg0: i32) -> (i32, i32) {
    %c0_i32 = arith.constant 0 : i32
    %c0_i32_0 = arith.constant 0 : i32
    %c0_i32_1 = arith.constant 0 : i32
    return %c0_i32, %c0_i32_0 : i32, i32
  }
  func.func @transform_4(%arg0: i32) -> (i32, i32) {
    %c0_i32 = arith.constant 0 : i32
    %c0_i32_0 = arith.constant 0 : i32
    %c0_i32_1 = arith.constant 0 : i32
    return %c0_i32, %c0_i32_0 : i32, i32
  }
  func.func @transform_5(%arg0: i32) -> (i32, i32) {
    %c0_i32 = arith.constant 0 : i32
    %c0_i32_0 = arith.constant 0 : i32
    return %arg0, %c0_i32 : i32, i32
  }
}

</mosaic_0001>

<llo_original>
// kernel: forward.15
$region0: #{forward.15}
  #allocation0 [shape = 'u32[]', space=smem, size = 0x4, offset = 0x4, fixed_abs, tag = 'smem constant byte address 0x4 - core index']
  #allocation1 [shape = 'u32[72,128]{1,0:T(1,128)}', space=vmem, size = 0x9000, scoped, tag = 'internal scratch']
  %s0 = inlined_call_operand.vmem [shape: f32[16,3], index: 0, kind: input, shape index: {}]
  %s1 = inlined_call_operand.vmem [shape: bf16[3,32], index: 1, kind: input, shape index: {}]
  %s2 = inlined_call_operand.vmem [shape: f32[1,32], index: 2, kind: input, shape index: {}]
  %s3 = inlined_call_operand.vmem [shape: f32[16,32], index: 3, kind: output, shape index: {}]
  %s4 = sld [smem:[#allocation0]]
  $region22: #{forward.15} parent=0
    _
  %s6 = ssub.s32 1, %s4
  %s7 = scalar_select 0, %s6, %s4
  // Predicated region
  $region2: #{forward.15} parent=0 // pred_check
    _
  $region3: #{forward.15} parent=0 // pred_check_branch
    %9 = sbr.rel (0) target = $region5
  $region4: #{forward.15} parent=0 // pred_region
    _
  $region5: #{forward.15} parent=0 // pred_fallthru
    _
  // Predicated region
  $region6: #{forward.15} parent=0 // pred_check
    _
  $region7: #{forward.15} parent=0 // pred_check_branch
    %11 = sbr.rel (0) target = $region9
  $region8: #{forward.15} parent=0 // pred_region
    _
  $region9: #{forward.15} parent=0 // pred_fallthru
    _
  // Predicated region
  $region10: #{forward.15} parent=0 // pred_check
    _
  $region11: #{forward.15} parent=0 // pred_check_branch
    %13 = sbr.rel (0) target = $region13
  $region12: #{forward.15} parent=0 // pred_region
    _
  $region13: #{forward.15} parent=0 // pred_fallthru
    _
  %v15 = vld [vmem:[%s0] sm:$0xff]
  %v16 = vld [vmem:[%s0 + $0x8] sm:$0xff]
  %v17 = vpack.c.bf16 %v16, %v15
  %v18 = vld [vmem:[%s1] sm:$0x3]
  %v19 = vld [vmem:[%s2] sm:$0x1]
  %v21 = vperm.slane %v19, 0
  %vm23 = vcmask 23552
  %v25 = vsel %vm23, %v17, 0
  %vm27 = vcmask 1040384
  %vm28 = vcmask 1041408
  %v29 = vsel %vm27, 4294967295, 65535
  %v30 = vsel %vm28, %v29, 0
  %v32 = vand.u32 %v18, %v30
  %34 = vmatpush.bf16.msra.mxu0 0
  %35 = vmatpush.bf16.msra.mxu0 0
  %36 = vmatpush.bf16.msra.mxu0 0
  %37 = vmatpush.bf16.msra.mxu0 0
  %38 = vmatpush.bf16.msra.mxu0 0
  %39 = vmatpush.bf16.msra.mxu0 0
  %40 = vmatpush.bf16.msra.mxu0 0
  %41 = vmatpush.bf16.msra.mxu0 %v32
  %42 = vmatmul.bf16.gmra.mxu0 %v25
  %v43 = vpop.f32.mrf.mxu0
  %v44 = vadd.f32 %v21, %v43
  %v45 = vpop.f32.mrf.mxu0
  %v46 = vadd.f32 %v21, %v45
  %47 = vdwg.mxu0
  %vm48 = vcmask 261120
  %49 = vst.msk [vmem:[%s3] sm:$0xff] %vm48, %v44
  %50 = vst.msk [vmem:[%s3 + $0x8] sm:$0xff] %vm48, %v46
  // Predicated region
  $region14: #{forward.15} parent=0 // pred_check
    _
  $region15: #{forward.15} parent=0 // pred_check_branch
    %52 = sbr.rel (0) target = $region17
  $region16: #{forward.15} parent=0 // pred_region
    _
  $region17: #{forward.15} parent=0 // pred_fallthru
    _
  // Predicated region
  $region18: #{forward.15} parent=0 // pred_check
    _
  $region19: #{forward.15} parent=0 // pred_check_branch
    %54 = sbr.rel (0) target = $region21
  $region20: #{forward.15} parent=0 // pred_region
    _
  $region21: #{forward.15} parent=0 // pred_fallthru
    _

// kernel: forward.16
$region0: #{forward.16}
  #allocation0 [shape = 'u32[]', space=smem, size = 0x4, offset = 0x4, fixed_abs, tag = 'smem constant byte address 0x4 - core index']
  #allocation1 [shape = 'u32[72,128]{1,0:T(1,128)}', space=vmem, size = 0x9000, scoped, tag = 'internal scratch']
  %s0 = inlined_call_operand.vmem [shape: f32[32,32], index: 0, kind: input, shape index: {}]
  %s1 = inlined_call_operand.vmem [shape: f32[1,32], index: 1, kind: input, shape index: {}]
  %s2 = inlined_call_operand.vmem [shape: f32[1,32], index: 2, kind: input, shape index: {}]
  %s3 = inlined_call_operand.vmem [shape: f32[32,32], index: 3, kind: output, shape index: {}]
  %s4 = sld [smem:[#allocation0]]
  $region22: #{forward.16} parent=0
    _
  %s6 = ssub.s32 1, %s4
  %s7 = scalar_select 0, %s6, %s4
  // Predicated region
  $region2: #{forward.16} parent=0 // pred_check
    _
  $region3: #{forward.16} parent=0 // pred_check_branch
    %9 = sbr.rel (0) target = $region5
  $region4: #{forward.16} parent=0 // pred_region
    _
  $region5: #{forward.16} parent=0 // pred_fallthru
    _
  // Predicated region
  $region6: #{forward.16} parent=0 // pred_check
    _
  $region7: #{forward.16} parent=0 // pred_check_branch
    %11 = sbr.rel (0) target = $region9
  $region8: #{forward.16} parent=0 // pred_region
    _
  $region9: #{forward.16} parent=0 // pred_fallthru
    _
  // Predicated region
  $region10: #{forward.16} parent=0 // pred_check
    _
  $region11: #{forward.16} parent=0 // pred_check_branch
    %13 = sbr.rel (0) target = $region13
  $region12: #{forward.16} parent=0 // pred_region
    _
  $region13: #{forward.16} parent=0 // pred_fallthru
    _
  %v14 = vld [vmem:[%s0] sm:$0xff]
  %v15 = vld [vmem:[%s0 + $0x8] sm:$0xff]
  %v16 = vld [vmem:[%s0 + $0x10] sm:$0xff]
  %v17 = vld [vmem:[%s0 + $0x18] sm:$0xff]
  %vm18 = vcmask 261120
  %v19 = vsel %vm18, %v14, 0.0
  %20 = vadd.xlane.f32.xlu0 %v19
  %v21 = vpop.xlane.xlu0 %20
  %v22 = vsel %vm18, %v15, 0.0
  %23 = vadd.xlane.f32.xlu0 %v22
  %v24 = vpop.xlane.xlu0 %23
  %v25 = vsel %vm18, %v16, 0.0
  %26 = vadd.xlane.f32.xlu0 %v25
  %v27 = vpop.xlane.xlu0 %26
  %v28 = vsel %vm18, %v17, 0.0
  %29 = vadd.xlane.f32.xlu0 %v28
  %v30 = vpop.xlane.xlu0 %29
  %v31 = vrcp.pop 32.0
  %v32 = vmul.f32 32.0, %v31
  %v33 = vsub.f32 1.0, %v32
  %v34 = vmul.f32 %v31, %v33
  %v35 = vadd.f32 %v31, %v34
  %vm36 = vweird.f32 %v31
  %v37 = vsel %vm36, %v31, %v35
  %v38 = vmul.f32 %v21, %v37
  %v39 = vmul.f32 %v24, %v37
  %v40 = vmul.f32 %v27, %v37
  %v41 = vmul.f32 %v30, %v37
  %v42 = vsub.f32 %v14, %v38
  %v43 = vsub.f32 %v15, %v39
  %v44 = vsub.f32 %v16, %v40
  %v45 = vsub.f32 %v17, %v41
  %v46 = vmul.f32 %v42, %v42
  %v47 = vmul.f32 %v43, %v43
  %v48 = vmul.f32 %v44, %v44
  %v49 = vmul.f32 %v45, %v45
  %v50 = vsel %vm18, %v46, 0.0
  %51 = vadd.xlane.f32.xlu0 %v50
  %v52 = vpop.xlane.xlu0 %51
  %v53 = vsel %vm18, %v47, 0.0
  %54 = vadd.xlane.f32.xlu0 %v53
  %v55 = vpop.xlane.xlu0 %54
  %v56 = vsel %vm18, %v48, 0.0
  %57 = vadd.xlane.f32.xlu0 %v56
  %v58 = vpop.xlane.xlu0 %57
  %v59 = vsel %vm18, %v49, 0.0
  %60 = vadd.xlane.f32.xlu0 %v59
  %v61 = vpop.xlane.xlu0 %60
  %v62 = vmul.f32 %v52, %v37
  %v63 = vmul.f32 %v55, %v37
  %v64 = vmul.f32 %v58, %v37
  %v65 = vmul.f32 %v61, %v37
  %v66 = vadd.f32 %v62, 1e-05
  %v67 = vadd.f32 %v63, 1e-05
  %v68 = vadd.f32 %v64, 1e-05
  %v69 = vadd.f32 %v65, 1e-05
  %v70 = vrsqrt.pop %v66
  %v71 = vmul.f32 %v70, %v66
  %v72 = vmul.f32 %v71, %v70
  %v73 = vmul.f32 0.5, %v72
  %v74 = vsub.f32 1.5, %v73
  %v75 = vmul.f32 %v70, %v74
  %vm76 = vweird.f32 %v66
  %vm77 = vweird.f32 %v70
  %vm78 = vmor %vm76, %vm77
  %v79 = vsel %vm78, %v70, %v75
  %v80 = vrsqrt.pop %v67
  %v81 = vmul.f32 %v80, %v67
  %v82 = vmul.f32 %v81, %v80
  %v83 = vmul.f32 0.5, %v82
  %v84 = vsub.f32 1.5, %v83
  %v85 = vmul.f32 %v80, %v84
  %vm86 = vweird.f32 %v67
  %vm87 = vweird.f32 %v80
  %vm88 = vmor %vm86, %vm87
  %v89 = vsel %vm88, %v80, %v85
  %v90 = vrsqrt.pop %v68
  %v91 = vmul.f32 %v90, %v68
  %v92 = vmul.f32 %v91, %v90
  %v93 = vmul.f32 0.5, %v92
  %v94 = vsub.f32 1.5, %v93
  %v95 = vmul.f32 %v90, %v94
  %vm96 = vweird.f32 %v68
  %vm97 = vweird.f32 %v90
  %vm98 = vmor %vm96, %vm97
  %v99 = vsel %vm98, %v90, %v95
  %v100 = vrsqrt.pop %v69
  %v101 = vmul.f32 %v100, %v69
  %v102 = vmul.f32 %v101, %v100
  %v103 = vmul.f32 0.5, %v102
  %v104 = vsub.f32 1.5, %v103
  %v105 = vmul.f32 %v100, %v104
  %vm106 = vweird.f32 %v69
  %vm107 = vweird.f32 %v100
  %vm108 = vmor %vm106, %vm107
  %v109 = vsel %vm108, %v100, %v105
  %v110 = vmul.f32 %v42, %v79
  %v111 = vmul.f32 %v43, %v89
  %v112 = vmul.f32 %v44, %v99
  %v113 = vmul.f32 %v45, %v109
  %v114 = vld [vmem:[%s1] sm:$0x1]
  %v116 = vperm.slane %v114, 0
  %v118 = vmul.f32 %v110, %v116
  %v119 = vmul.f32 %v111, %v116
  %v120 = vmul.f32 %v112, %v116
  %v121 = vmul.f32 %v113, %v116
  %v122 = vld [vmem:[%s2] sm:$0x1]
  %v124 = vperm.slane %v122, 0
  %v126 = vadd.f32 %v118, %v124
  %v127 = vadd.f32 %v119, %v124
  %v128 = vadd.f32 %v120, %v124
  %v129 = vadd.f32 %v121, %v124
  %130 = vst.msk [vmem:[%s3] sm:$0xff] %vm18, %v126
  %131 = vst.msk [vmem:[%s3 + $0x8] sm:$0xff] %vm18, %v127
  %132 = vst.msk [vmem:[%s3 + $0x10] sm:$0xff] %vm18, %v128
  %133 = vst.msk [vmem:[%s3 + $0x18] sm:$0xff] %vm18, %v129
  // Predicated region
  $region14: #{forward.16} parent=0 // pred_check
    _
  $region15: #{forward.16} parent=0 // pred_check_branch
    %135 = sbr.rel (0) target = $region17
  $region16: #{forward.16} parent=0 // pred_region
    _
  $region17: #{forward.16} parent=0 // pred_fallthru
    _
  // Predicated region
  $region18: #{forward.16} parent=0 // pred_check
    _
  $region19: #{forward.16} parent=0 // pred_check_branch
    %137 = sbr.rel (0) target = $region21
  $region20: #{forward.16} parent=0 // pred_region
    _
  $region21: #{forward.16} parent=0 // pred_fallthru
    _

// kernel: forward.17
$region0: #{forward.17}
  #allocation0 [shape = 'u32[]', space=smem, size = 0x4, offset = 0x4, fixed_abs, tag = 'smem constant byte address 0x4 - core index']
  #allocation1 [shape = 'u32[72,128]{1,0:T(1,128)}', space=vmem, size = 0x9000, scoped, tag = 'internal scratch']
  %s0 = inlined_call_operand.vmem [shape: f32[32,32], index: 0, kind: input, shape index: {}]
  %s1 = inlined_call_operand.vmem [shape: f32[1,32], index: 1, kind: input, shape index: {}]
  %s2 = inlined_call_operand.vmem [shape: f32[1,32], index: 2, kind: input, shape index: {}]
  %s3 = inlined_call_operand.vmem [shape: bf16[32,32], index: 3, kind: input, shape index: {}]
  %s4 = inlined_call_operand.vmem [shape: f32[1,32], index: 4, kind: input, shape index: {}]
  %s5 = inlined_call_operand.vmem [shape: bf16[32,32], index: 5, kind: input, shape index: {}]
  %s6 = inlined_call_operand.vmem [shape: f32[1,32], index: 6, kind: input, shape index: {}]
  %s7 = inlined_call_operand.vmem [shape: bf16[32,32], index: 7, kind: input, shape index: {}]
  %s8 = inlined_call_operand.vmem [shape: f32[1,32], index: 8, kind: input, shape index: {}]
  %s9 = inlined_call_operand.vmem [shape: bf16[32,32], index: 9, kind: output, shape index: {0}]
  %s10 = inlined_call_operand.vmem [shape: bf16[32,32], index: 10, kind: output, shape index: {1}]
  %s11 = inlined_call_operand.vmem [shape: bf16[32,32], index: 11, kind: output, shape index: {2}]
  %12 = xla_tuple %s9, %s10, %s11
  %s13 = sld [smem:[#allocation0]]
  $region62: #{forward.17} parent=0
    _
  %s15 = ssub.s32 1, %s13
  %s16 = scalar_select 0, %s15, %s13
  // Predicated region
  $region2: #{forward.17} parent=0 // pred_check
    _
  $region3: #{forward.17} parent=0 // pred_check_branch
    %18 = sbr.rel (0) target = $region5
  $region4: #{forward.17} parent=0 // pred_region
    _
  $region5: #{forward.17} parent=0 // pred_fallthru
    _
  // Predicated region
  $region6: #{forward.17} parent=0 // pred_check
    _
  $region7: #{forward.17} parent=0 // pred_check_branch
    %20 = sbr.rel (0) target = $region9
  $region8: #{forward.17} parent=0 // pred_region
    _
  $region9: #{forward.17} parent=0 // pred_fallthru
    _
  // Predicated region
  $region10: #{forward.17} parent=0 // pred_check
    _
  $region11: #{forward.17} parent=0 // pred_check_branch
    %22 = sbr.rel (0) target = $region13
  $region12: #{forward.17} parent=0 // pred_region
    _
  $region13: #{forward.17} parent=0 // pred_fallthru
    _
  // Predicated region
  $region14: #{forward.17} parent=0 // pred_check
    _
  $region15: #{forward.17} parent=0 // pred_check_branch
    %24 = sbr.rel (0) target = $region17
  $region16: #{forward.17} parent=0 // pred_region
    _
  $region17: #{forward.17} parent=0 // pred_fallthru
    _
  // Predicated region
  $region18: #{forward.17} parent=0 // pred_check
    _
  $region19: #{forward.17} parent=0 // pred_check_branch
    %26 = sbr.rel (0) target = $region21
  $region20: #{forward.17} parent=0 // pred_region
    _
  $region21: #{forward.17} parent=0 // pred_fallthru
    _
  // Predicated region
  $region22: #{forward.17} parent=0 // pred_check
    _
  $region23: #{forward.17} parent=0 // pred_check_branch
    %28 = sbr.rel (0) target = $region25
  $region24: #{forward.17} parent=0 // pred_region
    _
  $region25: #{forward.17} parent=0 // pred_fallthru
    _
  // Predicated region
  $region26: #{forward.17} parent=0 // pred_check
    _
  $region27: #{forward.17} parent=0 // pred_check_branch
    %30 = sbr.rel (0) target = $region29
  $region28: #{forward.17} parent=0 // pred_region
    _
  $region29: #{forward.17} parent=0 // pred_fallthru
    _
  // Predicated region
  $region30: #{forward.17} parent=0 // pred_check
    _
  $region31: #{forward.17} parent=0 // pred_check_branch
    %32 = sbr.rel (0) target = $region33
  $region32: #{forward.17} parent=0 // pred_region
    _
  $region33: #{forward.17} parent=0 // pred_fallthru
    _
  // Predicated region
  $region34: #{forward.17} parent=0 // pred_check
    _
  $region35: #{forward.17} parent=0 // pred_check_branch
    %34 = sbr.rel (0) target = $region37
  $region36: #{forward.17} parent=0 // pred_region
    _
  $region37: #{forward.17} parent=0 // pred_fallthru
    _
  %v36 = vld [vmem:[%s0] sm:$0xff]
  %v37 = vld [vmem:[%s0 + $0x8] sm:$0xff]
  %v38 = vld [vmem:[%s0 + $0x10] sm:$0xff]
  %v39 = vld [vmem:[%s0 + $0x18] sm:$0xff]
  %vm40 = vcmask 261120
  %v41 = vsel %vm40, %v36, 0.0
  %42 = vadd.xlane.f32.xlu0 %v41
  %v43 = vpop.xlane.xlu0 %42
  %v44 = vsel %vm40, %v37, 0.0
  %45 = vadd.xlane.f32.xlu0 %v44
  %v46 = vpop.xlane.xlu0 %45
  %v47 = vsel %vm40, %v38, 0.0
  %48 = vadd.xlane.f32.xlu0 %v47
  %v49 = vpop.xlane.xlu0 %48
  %v50 = vsel %vm40, %v39, 0.0
  %51 = vadd.xlane.f32.xlu0 %v50
  %v52 = vpop.xlane.xlu0 %51
  %v53 = vrcp.pop 32.0
  %v54 = vmul.f32 32.0, %v53
  %v55 = vsub.f32 1.0, %v54
  %v56 = vmul.f32 %v53, %v55
  %v57 = vadd.f32 %v53, %v56
  %vm58 = vweird.f32 %v53
  %v59 = vsel %vm58, %v53, %v57
  %v60 = vmul.f32 %v43, %v59
  %v61 = vmul.f32 %v46, %v59
  %v62 = vmul.f32 %v49, %v59
  %v63 = vmul.f32 %v52, %v59
  %v64 = vsub.f32 %v36, %v60
  %v65 = vsub.f32 %v37, %v61
  %v66 = vsub.f32 %v38, %v62
  %v67 = vsub.f32 %v39, %v63
  %v68 = vmul.f32 %v64, %v64
  %v69 = vmul.f32 %v65, %v65
  %v70 = vmul.f32 %v66, %v66
  %v71 = vmul.f32 %v67, %v67
  %v72 = vsel %vm40, %v68, 0.0
  %73 = vadd.xlane.f32.xlu0 %v72
  %v74 = vpop.xlane.xlu0 %73
  %v75 = vsel %vm40, %v69, 0.0
  %76 = vadd.xlane.f32.xlu0 %v75
  %v77 = vpop.xlane.xlu0 %76
  %v78 = vsel %vm40, %v70, 0.0
  %79 = vadd.xlane.f32.xlu0 %v78
  %v80 = vpop.xlane.xlu0 %79
  %v81 = vsel %vm40, %v71, 0.0
  %82 = vadd.xlane.f32.xlu0 %v81
  %v83 = vpop.xlane.xlu0 %82
  %v84 = vmul.f32 %v74, %v59
  %v85 = vmul.f32 %v77, %v59
  %v86 = vmul.f32 %v80, %v59
  %v87 = vmul.f32 %v83, %v59
  %v88 = vadd.f32 %v84, 1e-05
  %v89 = vadd.f32 %v85, 1e-05
  %v90 = vadd.f32 %v86, 1e-05
  %v91 = vadd.f32 %v87, 1e-05
  %v92 = vrsqrt.pop %v88
  %v93 = vmul.f32 %v92, %v88
  %v94 = vmul.f32 %v93, %v92
  %v95 = vmul.f32 0.5, %v94
  %v96 = vsub.f32 1.5, %v95
  %v97 = vmul.f32 %v92, %v96
  %vm98 = vweird.f32 %v88
  %vm99 = vweird.f32 %v92
  %vm100 = vmor %vm98, %vm99
  %v101 = vsel %vm100, %v92, %v97
  %v102 = vrsqrt.pop %v89
  %v103 = vmul.f32 %v102, %v89
  %v104 = vmul.f32 %v103, %v102
  %v105 = vmul.f32 0.5, %v104
  %v106 = vsub.f32 1.5, %v105
  %v107 = vmul.f32 %v102, %v106
  %vm108 = vweird.f32 %v89
  %vm109 = vweird.f32 %v102
  %vm110 = vmor %vm108, %vm109
  %v111 = vsel %vm110, %v102, %v107
  %v112 = vrsqrt.pop %v90
  %v113 = vmul.f32 %v112, %v90
  %v114 = vmul.f32 %v113, %v112
  %v115 = vmul.f32 0.5, %v114
  %v116 = vsub.f32 1.5, %v115
  %v117 = vmul.f32 %v112, %v116
  %vm118 = vweird.f32 %v90
  %vm119 = vweird.f32 %v112
  %vm120 = vmor %vm118, %vm119
  %v121 = vsel %vm120, %v112, %v117
  %v122 = vrsqrt.pop %v91
  %v123 = vmul.f32 %v122, %v91
  %v124 = vmul.f32 %v123, %v122
  %v125 = vmul.f32 0.5, %v124
  %v126 = vsub.f32 1.5, %v125
  %v127 = vmul.f32 %v122, %v126
  %vm128 = vweird.f32 %v91
  %vm129 = vweird.f32 %v122
  %vm130 = vmor %vm128, %vm129
  %v131 = vsel %vm130, %v122, %v127
  %v132 = vmul.f32 %v64, %v101
  %v133 = vmul.f32 %v65, %v111
  %v134 = vmul.f32 %v66, %v121
  %v135 = vmul.f32 %v67, %v131
  %v136 = vld [vmem:[%s1] sm:$0x1]
  %v138 = vperm.slane %v136, 0
  %v140 = vmul.f32 %v132, %v138
  %v141 = vmul.f32 %v133, %v138
  %v142 = vmul.f32 %v134, %v138
  %v143 = vmul.f32 %v135, %v138
  %v144 = vld [vmem:[%s2] sm:$0x1]
  %v146 = vperm.slane %v144, 0
  %v148 = vadd.f32 %v140, %v146
  %v149 = vadd.f32 %v141, %v146
  %v150 = vadd.f32 %v142, %v146
  %v151 = vadd.f32 %v143, %v146
  %v152 = vpack.c.bf16 %v149, %v148
  %v153 = vpack.c.bf16 %v151, %v150
  %v154 = vld [vmem:[%s3] sm:$0xf]
  %v155 = vld [vmem:[%s3 + $0x4] sm:$0xf]
  %v156 = vld [vmem:[%s3 + $0x8] sm:$0xf]
  %v157 = vld [vmem:[%s3 + $0xc] sm:$0xf]
  %v158 = vld [vmem:[%s4] sm:$0x1]
  %v160 = vperm.slane %v158, 0
  %v166 = vunpack.c.l.b16 %v154
  %v167 = vunpack.c.l.b16 %v155
  %v168 = vunpack.c.l.b16 %v156
  %v169 = vunpack.c.l.b16 %v157
  %v170 = vpack.c.b16 %v167, %v166
  %v171 = vpack.c.b16 %v169, %v168
  %v175 = vsel %vm40, %v152, 0
  %v178 = vsel %vm40, %v153, 0
  %180 = vmatpush.bf16.msra.mxu0 0
  %181 = vmatpush.bf16.msra.mxu0 0
  %182 = vmatpush.bf16.msra.mxu0 0
  %183 = vmatpush.bf16.msra.mxu0 0
  %184 = vmatpush.bf16.msra.mxu0 0
  %185 = vmatpush.bf16.msra.mxu0 0
  %186 = vmatpush.bf16.msra.mxu0 %v171
  %187 = vmatpush.bf16.msra.mxu0 %v170
  %188 = vmatmul.bf16.gmra.mxu0 %v175
  %v189 = vpop.f32.mrf.mxu0
  %v190 = vadd.f32 %v160, %v189
  %v191 = vpop.f32.mrf.mxu0
  %v192 = vadd.f32 %v160, %v191
  %193 = vmatmul.bf16.gmra.mxu0 %v178
  %v194 = vpop.f32.mrf.mxu0
  %v195 = vadd.f32 %v160, %v194
  %v196 = vpop.f32.mrf.mxu0
  %v197 = vadd.f32 %v160, %v196
  %198 = vdwg.mxu0
  %v199 = vpack.c.bf16 %v190, %v190
  %v200 = vpack.c.bf16 %v192, %v192
  %v201 = vpack.c.bf16 %v195, %v195
  %v202 = vpack.c.bf16 %v197, %v197
  %vm203 = vcmask 257024
  %204 = vst.msk [vmem:[%s9] sm:$0xf] %vm203, %v199
  %205 = vst.msk [vmem:[%s9 + $0x4] sm:$0xf] %vm203, %v200
  %206 = vst.msk [vmem:[%s9 + $0x8] sm:$0xf] %vm203, %v201
  %207 = vst.msk [vmem:[%s9 + $0xc] sm:$0xf] %vm203, %v202
  %v208 = vld [vmem:[%s5] sm:$0xf]
  %v209 = vld [vmem:[%s5 + $0x4] sm:$0xf]
  %v210 = vld [vmem:[%s5 + $0x8] sm:$0xf]
  %v211 = vld [vmem:[%s5 + $0xc] sm:$0xf]
  %v212 = vld [vmem:[%s6] sm:$0x1]
  %v214 = vperm.slane %v212, 0
  %v220 = vunpack.c.l.b16 %v208
  %v221 = vunpack.c.l.b16 %v209
  %v222 = vunpack.c.l.b16 %v210
  %v223 = vunpack.c.l.b16 %v211
  %v224 = vpack.c.b16 %v221, %v220
  %v225 = vpack.c.b16 %v223, %v222
  %228 = vmatpush.bf16.msra.mxu0 0
  %229 = vmatpush.bf16.msra.mxu0 0
  %230 = vmatpush.bf16.msra.mxu0 0
  %231 = vmatpush.bf16.msra.mxu0 0
  %232 = vmatpush.bf16.msra.mxu0 0
  %233 = vmatpush.bf16.msra.mxu0 0
  %234 = vmatpush.bf16.msra.mxu0 %v225
  %235 = vmatpush.bf16.msra.mxu0 %v224
  %236 = vmatmul.bf16.gmra.mxu0 %v175
  %v237 = vpop.f32.mrf.mxu0
  %v238 = vadd.f32 %v214, %v237
  %v239 = vpop.f32.mrf.mxu0
  %v240 = vadd.f32 %v214, %v239
  %241 = vmatmul.bf16.gmra.mxu0 %v178
  %v242 = vpop.f32.mrf.mxu0
  %v243 = vadd.f32 %v214, %v242
  %v244 = vpop.f32.mrf.mxu0
  %v245 = vadd.f32 %v214, %v244
  %246 = vdwg.mxu0
  %v247 = vpack.c.bf16 %v238, %v238
  %v248 = vpack.c.bf16 %v240, %v240
  %v249 = vpack.c.bf16 %v243, %v243
  %v250 = vpack.c.bf16 %v245, %v245
  %251 = vst.msk [vmem:[%s10] sm:$0xf] %vm203, %v247
  %252 = vst.msk [vmem:[%s10 + $0x4] sm:$0xf] %vm203, %v248
  %253 = vst.msk [vmem:[%s10 + $0x8] sm:$0xf] %vm203, %v249
  %254 = vst.msk [vmem:[%s10 + $0xc] sm:$0xf] %vm203, %v250
  %v255 = vld [vmem:[%s7] sm:$0xf]
  %v256 = vld [vmem:[%s7 + $0x4] sm:$0xf]
  %v257 = vld [vmem:[%s7 + $0x8] sm:$0xf]
  %v258 = vld [vmem:[%s7 + $0xc] sm:$0xf]
  %v259 = vld [vmem:[%s8] sm:$0x1]
  %v261 = vperm.slane %v259, 0
  %v267 = vunpack.c.l.b16 %v255
  %v268 = vunpack.c.l.b16 %v256
  %v269 = vunpack.c.l.b16 %v257
  %v270 = vunpack.c.l.b16 %v258
  %v271 = vpack.c.b16 %v268, %v267
  %v272 = vpack.c.b16 %v270, %v269
  %275 = vmatpush.bf16.msra.mxu0 0
  %276 = vmatpush.bf16.msra.mxu0 0
  %277 = vmatpush.bf16.msra.mxu0 0
  %278 = vmatpush.bf16.msra.mxu0 0
  %279 = vmatpush.bf16.msra.mxu0 0
  %280 = vmatpush.bf16.msra.mxu0 0
  %281 = vmatpush.bf16.msra.mxu0 %v272
  %282 = vmatpush.bf16.msra.mxu0 %v271
  %283 = vmatmul.bf16.gmra.mxu0 %v175
  %v284 = vpop.f32.mrf.mxu0
  %v285 = vadd.f32 %v261, %v284
  %v286 = vpop.f32.mrf.mxu0
  %v287 = vadd.f32 %v261, %v286
  %288 = vmatmul.bf16.gmra.mxu0 %v178
  %v289 = vpop.f32.mrf.mxu0
  %v290 = vadd.f32 %v261, %v289
  %v291 = vpop.f32.mrf.mxu0
  %v292 = vadd.f32 %v261, %v291
  %293 = vdwg.mxu0
  %v294 = vpack.c.bf16 %v285, %v285
  %v295 = vpack.c.bf16 %v287, %v287
  %v296 = vpack.c.bf16 %v290, %v290
  %v297 = vpack.c.bf16 %v292, %v292
  %298 = vst.msk [vmem:[%s11] sm:$0xf] %vm203, %v294
  %299 = vst.msk [vmem:[%s11 + $0x4] sm:$0xf] %vm203, %v295
  %300 = vst.msk [vmem:[%s11 + $0x8] sm:$0xf] %vm203, %v296
  %301 = vst.msk [vmem:[%s11 + $0xc] sm:$0xf] %vm203, %v297
  // Predicated region
  $region38: #{forward.17} parent=0 // pred_check
    _
  $region39: #{forward.17} parent=0 // pred_check_branch
    %303 = sbr.rel (0) target = $region41
  $region40: #{forward.17} parent=0 // pred_region
    _
  $region41: #{forward.17} parent=0 // pred_fallthru
    _
  // Predicated region
  $region42: #{forward.17} parent=0 // pred_check
    _
  $region43: #{forward.17} parent=0 // pred_check_branch
    %305 = sbr.rel (0) target = $region45
  $region44: #{forward.17} parent=0 // pred_region
    _
  $region45: #{forward.17} parent=0 // pred_fallthru
    _
  // Predicated region
  $region46: #{forward.17} parent=0 // pred_check
    _
  $region47: #{forward.17} parent=0 // pred_check_branch
    %307 = sbr.rel (0) target = $region49
  $region48: #{forward.17} parent=0 // pred_region
    _
  $region49: #{forward.17} parent=0 // pred_fallthru
    _
  // Predicated region
  $region50: #{forward.17} parent=0 // pred_check
    _
  $region51: #{forward.17} parent=0 // pred_check_branch
    %309 = sbr.rel (0) target = $region53
  $region52: #{forward.17} parent=0 // pred_region
    _
  $region53: #{forward.17} parent=0 // pred_fallthru
    _
  // Predicated region
  $region54: #{forward.17} parent=0 // pred_check
    _
  $region55: #{forward.17} parent=0 // pred_check_branch
    %311 = sbr.rel (0) target = $region57
  $region56: #{forward.17} parent=0 // pred_region
    _
  $region57: #{forward.17} parent=0 // pred_fallthru
    _
  // Predicated region
  $region58: #{forward.17} parent=0 // pred_check
    _
  $region59: #{forward.17} parent=0 // pred_check_branch
    %313 = sbr.rel (0) target = $region61
  $region60: #{forward.17} parent=0 // pred_region
    _
  $region61: #{forward.17} parent=0 // pred_fallthru
    _

// kernel: forward.19
$region0: #{forward.19}
  #allocation0 [shape = 'u32[]', space=smem, size = 0x4, offset = 0x4, fixed_abs, tag = 'smem constant byte address 0x4 - core index']
  #allocation1 [shape = 'u32[72,128]{1,0:T(1,128)}', space=vmem, size = 0x9000, scoped, tag = 'internal scratch']
  %s0 = inlined_call_operand.vmem [shape: bf16[32,32], index: 0, kind: input, shape index: {}]
  %s1 = inlined_call_operand.vmem [shape: bf16[32,32], index: 1, kind: input, shape index: {}]
  %s2 = inlined_call_operand.vmem [shape: f32[1,32], index: 2, kind: input, shape index: {}]
  %s3 = inlined_call_operand.vmem [shape: f32[32,32], index: 3, kind: input, shape index: {}]
  %s4 = inlined_call_operand.vmem [shape: f32[32,32], index: 4, kind: output, shape index: {}]
  %s5 = sld [smem:[#allocation0]]
  $region26: #{forward.19} parent=0
    _
  %s7 = ssub.s32 1, %s5
  %s8 = scalar_select 0, %s7, %s5
  // Predicated region
  $region2: #{forward.19} parent=0 // pred_check
    _
  $region3: #{forward.19} parent=0 // pred_check_branch
    %10 = sbr.rel (0) target = $region5
  $region4: #{forward.19} parent=0 // pred_region
    _
  $region5: #{forward.19} parent=0 // pred_fallthru
    _
  // Predicated region
  $region6: #{forward.19} parent=0 // pred_check
    _
  $region7: #{forward.19} parent=0 // pred_check_branch
    %12 = sbr.rel (0) target = $region9
  $region8: #{forward.19} parent=0 // pred_region
    _
  $region9: #{forward.19} parent=0 // pred_fallthru
    _
  // Predicated region
  $region10: #{forward.19} parent=0 // pred_check
    _
  $region11: #{forward.19} parent=0 // pred_check_branch
    %14 = sbr.rel (0) target = $region13
  $region12: #{forward.19} parent=0 // pred_region
    _
  $region13: #{forward.19} parent=0 // pred_fallthru
    _
  // Predicated region
  $region14: #{forward.19} parent=0 // pred_check
    _
  $region15: #{forward.19} parent=0 // pred_check_branch
    %16 = sbr.rel (0) target = $region17
  $region16: #{forward.19} parent=0 // pred_region
    _
  $region17: #{forward.19} parent=0 // pred_fallthru
    _
  %v18 = vld [vmem:[%s0] sm:$0xf]
  %v19 = vld [vmem:[%s0 + $0x4] sm:$0xf]
  %v20 = vld [vmem:[%s0 + $0x8] sm:$0xf]
  %v21 = vld [vmem:[%s0 + $0xc] sm:$0xf]
  %v22 = vld [vmem:[%s1] sm:$0xf]
  %v23 = vld [vmem:[%s1 + $0x4] sm:$0xf]
  %v24 = vld [vmem:[%s1 + $0x8] sm:$0xf]
  %v25 = vld [vmem:[%s1 + $0xc] sm:$0xf]
  %v26 = vld [vmem:[%s2] sm:$0x1]
  %v28 = vperm.slane %v26, 0
  %v34 = vunpack.c.l.b16 %v18
  %v35 = vunpack.c.l.b16 %v19
  %v36 = vunpack.c.l.b16 %v20
  %v37 = vunpack.c.l.b16 %v21
  %v38 = vpack.c.b16 %v35, %v34
  %v39 = vpack.c.b16 %v37, %v36
  %v44 = vunpack.c.l.b16 %v22
  %v45 = vunpack.c.l.b16 %v23
  %v46 = vunpack.c.l.b16 %v24
  %v47 = vunpack.c.l.b16 %v25
  %v48 = vpack.c.b16 %v45, %v44
  %v49 = vpack.c.b16 %v47, %v46
  %vm52 = vcmask 261120
  %v54 = vsel %vm52, %v38, 0
  %v57 = vsel %vm52, %v39, 0
  %59 = vmatpush.bf16.msra.mxu0 0
  %60 = vmatpush.bf16.msra.mxu0 0
  %61 = vmatpush.bf16.msra.mxu0 0
  %62 = vmatpush.bf16.msra.mxu0 0
  %63 = vmatpush.bf16.msra.mxu0 0
  %64 = vmatpush.bf16.msra.mxu0 0
  %65 = vmatpush.bf16.msra.mxu0 %v49
  %66 = vmatpush.bf16.msra.mxu0 %v48
  %67 = vmatmul.bf16.gmra.mxu0 %v54
  %v68 = vpop.f32.mrf.mxu0
  %v69 = vadd.f32 %v28, %v68
  %v70 = vpop.f32.mrf.mxu0
  %v71 = vadd.f32 %v28, %v70
  %72 = vmatmul.bf16.gmra.mxu0 %v57
  %v73 = vpop.f32.mrf.mxu0
  %v74 = vadd.f32 %v28, %v73
  %v75 = vpop.f32.mrf.mxu0
  %v76 = vadd.f32 %v28, %v75
  %77 = vdwg.mxu0
  %v78 = vld [vmem:[%s3] sm:$0xff]
  %v79 = vld [vmem:[%s3 + $0x8] sm:$0xff]
  %v80 = vld [vmem:[%s3 + $0x10] sm:$0xff]
  %v81 = vld [vmem:[%s3 + $0x18] sm:$0xff]
  %v82 = vadd.f32 %v69, %v78
  %v83 = vadd.f32 %v71, %v79
  %v84 = vadd.f32 %v74, %v80
  %v85 = vadd.f32 %v76, %v81
  %86 = vst.msk [vmem:[%s4] sm:$0xff] %vm52, %v82
  %87 = vst.msk [vmem:[%s4 + $0x8] sm:$0xff] %vm52, %v83
  %88 = vst.msk [vmem:[%s4 + $0x10] sm:$0xff] %vm52, %v84
  %89 = vst.msk [vmem:[%s4 + $0x18] sm:$0xff] %vm52, %v85
  // Predicated region
  $region18: #{forward.19} parent=0 // pred_check
    _
  $region19: #{forward.19} parent=0 // pred_check_branch
    %91 = sbr.rel (0) target = $region21
  $region20: #{forward.19} parent=0 // pred_region
    _
  $region21: #{forward.19} parent=0 // pred_fallthru
    _
  // Predicated region
  $region22: #{forward.19} parent=0 // pred_check
    _
  $region23: #{forward.19} parent=0 // pred_check_branch
    %93 = sbr.rel (0) target = $region25
  $region24: #{forward.19} parent=0 // pred_region
    _
  $region25: #{forward.19} parent=0 // pred_fallthru
    _

// kernel: forward.18
$region0: #{forward.18}
  #allocation0 [shape = 'u32[]', space=smem, size = 0x4, offset = 0x4, fixed_abs, tag = 'smem constant byte address 0x4 - core index']
  #allocation1 [shape = 'u32[72,128]{1,0:T(1,128)}', space=vmem, size = 0x9000, scoped, tag = 'internal scratch']
  #allocation2 [shape = 'f32[4,16,1]{2,1,0:T(8,128)}', space=vmem, size = 0x8000, scoped, tag = 'scratch operand']
  #allocation3 [shape = 'f32[4,16,1]{2,1,0:T(8,128)}', space=vmem, size = 0x8000, scoped, tag = 'scratch operand']
  #allocation4 [shape = 'f32[4,16,8]{2,1,0:T(8,128)}', space=vmem, size = 0x8000, scoped, tag = 'scratch operand']
  %s0 = inlined_call_operand.vmem [shape: bf16[2,16,32], index: 0, kind: input, shape index: {}]
  %s1 = inlined_call_operand.vmem [shape: bf16[2,16,32], index: 1, kind: input, shape index: {}]
  %s2 = inlined_call_operand.vmem [shape: bf16[2,16,32], index: 2, kind: input, shape index: {}]
  %s3 = inlined_call_operand.vmem [shape: bf16[2,16,32], index: 3, kind: output, shape index: {}]
  %s4 = sld [smem:[#allocation0]]
  $region53: #{forward.18} parent=0
    _
  %s6 = ssub.s32 1, %s4
  %s7 = scalar_select 0, %s6, %s4
  loop: start=0, step=1, limit=4
  $region2: #{forward.18} parent=0 // loop_pre_header
    _
  $region3: #{forward.18} parent=0 // loop_header
    %s9 = sphi 0, %s13
    %p10 = scmp.ge.s32.totalorder %s9, 4
    %s16 = sphi 0, %s42
    %s17 = sphi 0, %s38
    %s18 = sphi 0, %s34
    %s19 = sphi 0, %s30
    %s20 = sphi 0, %s16
    %s21 = sphi 0, %s17
    %s22 = sphi 0, %s18
    %s23 = sphi 0, %s19
    %s24 = sphi 0, %s20
    %s25 = sphi 0, %s21
    %s26 = sphi 0, %s22
    %s27 = sphi 0, %s23
    %s49 = sphi 0, %s51
    %s52 = sphi 0, %s49
    %s53 = sphi 0, %s52
    %s69 = sphi 0, %s53
    %s79 = sphi 0, %s81
    %s82 = sphi 0, %s79
    %s83 = sphi 0, %s82
    %s99 = sphi 0, %s83
    %s109 = sphi 0, %s111
    %s112 = sphi 0, %s109
    %s113 = sphi 0, %s112
    %s129 = sphi 0, %s113
    %s139 = sphi 0, %s141
    %s142 = sphi 0, %s139
    %s143 = sphi 0, %s142
    %s159 = sphi 0, %s143
  $region4: #{forward.18} parent=0 // loop_header_branch
    %12 = sbr.rel (%p10) target = $region8
  $region5: #{forward.18} parent=0 // loop_body
    %s14 = ssub.s32 %s9, 1
    %s15 = ssub.s32 %s9, 2
    %s28 = sadd.s32 1, %s19
    %p29 = scmp.ge.s32.totalorder %s28, 1
    %s30 = scalar_select %p29, 0, %s28
    %s31 = sadd.s32 1, %s18
    %s32 = scalar_select %p29, %s31, %s18
    %p33 = scmp.ge.s32.totalorder %s32, 1
    %s34 = scalar_select %p33, 0, %s32
    %s35 = sadd.s32 1, %s17
    %s36 = scalar_select %p33, %s35, %s17
    %p37 = scmp.ge.s32.totalorder %s36, 1
    %s38 = scalar_select %p37, 0, %s36
    %s39 = sadd.s32 1, %s16
    %s40 = scalar_select %p37, %s39, %s16
    %p41 = scmp.ge.s32.totalorder %s40, 2
    %s42 = scalar_select %p41, 0, %s40
    %s43 = ssub.s32 %s16, %s42
    %s44 = ssub.s32 %s18, %s34
    %s45 = sor.u32 %s43, %s44
    %s46 = ssub.s32 %s17, %s38
    %s47 = sor.u32 %s45, %s46
    %p48 = scmp.eq.s32.totalorder %s47, 0
    %s50 = sadd.s32 %s49, 1
    %s51 = scalar_select %p48, %s49, %s50
    %p54 = pneg %p48
    %p55 = scmp.eq.s32.totalorder %s9, 1
    %p56 = por %p54, %p55
    %p57 = scmp.ne.s32.totalorder %s49, %s52
    %p58 = scmp.eq.s32.totalorder %s9, 0
    %p59 = por %p57, %p58
    %p60 = scmp.ne.s32.totalorder %s49, %s52
    %p61 = scmp.eq.s32.totalorder %s14, 1
    %p62 = por %p60, %p61
    %p63 = scmp.ne.s32.totalorder %s52, %s53
    %p64 = scmp.eq.s32.totalorder %s14, 0
    %p65 = por %p63, %p64
    %p66 = scmp.ne.s32.totalorder %s52, %s53
    %p67 = scmp.eq.s32.totalorder %s15, 1
    %p68 = por %p66, %p67
    %p70 = scmp.ne.s32.totalorder %s53, %s69
    %p71 = scmp.eq.s32.totalorder %s15, 0
    %p72 = por %p70, %p71
    %s73 = ssub.s32 %s16, %s42
    %s74 = ssub.s32 %s19, %s30
    %s75 = sor.u32 %s73, %s74
    %s76 = ssub.s32 %s17, %s38
    %s77 = sor.u32 %s75, %s76
    %p78 = scmp.eq.s32.totalorder %s77, 0
    %s80 = sadd.s32 %s79, 1
    %s81 = scalar_select %p78, %s79, %s80
    %p84 = pneg %p78
    %p85 = scmp.eq.s32.totalorder %s9, 1
    %p86 = por %p84, %p85
    %p87 = scmp.ne.s32.totalorder %s79, %s82
    %p88 = scmp.eq.s32.totalorder %s9, 0
    %p89 = por %p87, %p88
    %p90 = scmp.ne.s32.totalorder %s79, %s82
    %p91 = scmp.eq.s32.totalorder %s14, 1
    %p92 = por %p90, %p91
    %p93 = scmp.ne.s32.totalorder %s82, %s83
    %p94 = scmp.eq.s32.totalorder %s14, 0
    %p95 = por %p93, %p94
    %p96 = scmp.ne.s32.totalorder %s82, %s83
    %p97 = scmp.eq.s32.totalorder %s15, 1
    %p98 = por %p96, %p97
    %p100 = scmp.ne.s32.totalorder %s83, %s99
    %p101 = scmp.eq.s32.totalorder %s15, 0
    %p102 = por %p100, %p101
    %s103 = ssub.s32 %s16, %s42
    %s104 = ssub.s32 %s19, %s30
    %s105 = sor.u32 %s103, %s104
    %s106 = ssub.s32 %s17, %s38
    %s107 = sor.u32 %s105, %s106
    %p108 = scmp.eq.s32.totalorder %s107, 0
    %s110 = sadd.s32 %s109, 1
    %s111 = scalar_select %p108, %s109, %s110
    %p114 = pneg %p108
    %p115 = scmp.eq.s32.totalorder %s9, 1
    %p116 = por %p114, %p115
    %p117 = scmp.ne.s32.totalorder %s109, %s112
    %p118 = scmp.eq.s32.totalorder %s9, 0
    %p119 = por %p117, %p118
    %p120 = scmp.ne.s32.totalorder %s109, %s112
    %p121 = scmp.eq.s32.totalorder %s14, 1
    %p122 = por %p120, %p121
    %p123 = scmp.ne.s32.totalorder %s112, %s113
    %p124 = scmp.eq.s32.totalorder %s14, 0
    %p125 = por %p123, %p124
    %p126 = scmp.ne.s32.totalorder %s112, %s113
    %p127 = scmp.eq.s32.totalorder %s15, 1
    %p128 = por %p126, %p127
    %p130 = scmp.ne.s32.totalorder %s113, %s129
    %p131 = scmp.eq.s32.totalorder %s15, 0
    %p132 = por %p130, %p131
    %s133 = ssub.s32 %s16, %s42
    %s134 = ssub.s32 %s18, %s34
    %s135 = sor.u32 %s133, %s134
    %s136 = ssub.s32 %s17, %s38
    %s137 = sor.u32 %s135, %s136
    %p138 = scmp.eq.s32.totalorder %s137, 0
    %s140 = sadd.s32 %s139, 1
    %s141 = scalar_select %p138, %s139, %s140
    %p144 = pneg %p138
    %p145 = scmp.eq.s32.totalorder %s9, 1
    %p146 = por %p144, %p145
    %p147 = scmp.ne.s32.totalorder %s139, %s142
    %p148 = scmp.eq.s32.totalorder %s9, 0
    %p149 = por %p147, %p148
    %p150 = scmp.ne.s32.totalorder %s139, %s142
    %p151 = scmp.eq.s32.totalorder %s14, 1
    %p152 = por %p150, %p151
    %p153 = scmp.ne.s32.totalorder %s142, %s143
    %p154 = scmp.eq.s32.totalorder %s14, 0
    %p155 = por %p153, %p154
    %p156 = scmp.ne.s32.totalorder %s142, %s143
    %p157 = scmp.eq.s32.totalorder %s15, 1
    %p158 = por %p156, %p157
    %p160 = scmp.ne.s32.totalorder %s143, %s159
    %p161 = scmp.eq.s32.totalorder %s15, 0
    %p162 = por %p160, %p161
    %p163 = scmp.le.s32.totalorder 1, %s9
    %p164 = scmp.lt.s32.totalorder %s9, 3
    %p165 = pnand %p163, %p164
    %p166 = pneg %p165
    // Predicated region
    $region9: #{forward.18} parent=5 // pred_check
      _
    $region10: #{forward.18} parent=5 // pred_check_branch
      %168 = sbr.rel (%p165) target = $region12
    $region11: #{forward.18} parent=5 // pred_region
      %s169 = ssub.s32 %s9, 1
    $region12: #{forward.18} parent=5 // pred_fallthru
      _
    %p170 = scmp.lt.s32.totalorder %s9, 2
    // Predicated region
    $region13: #{forward.18} parent=5 // pred_check
      %p171 = pneg %p170
    $region14: #{forward.18} parent=5 // pred_check_branch
      %173 = sbr.rel (%p171) target = $region16
    $region15: #{forward.18} parent=5 // pred_region
      // Predicated region
      $region17: #{forward.18} parent=15 // pred_check
        %p174 = pneg %p59
      $region18: #{forward.18} parent=15 // pred_check_branch
        %176 = sbr.rel (%p174) target = $region20
      $region19: #{forward.18} parent=15 // pred_region
        %s177 = smul.u32 2, %s18
        %p178 = scmp.lt.s32.totalorder %s16, 1
        %s179 = scalar_select %p178, %s16, 1
        %p180 = scmp.lt.s32.totalorder %s177, 1
        %s181 = scalar_select %p180, %s177, 1
        %p182 = scmp.lt.s32.totalorder %s17, 0
        %s183 = scalar_select %p182, %s17, 0
        %s184 = sadd.s32 %s183, %s181
        %s185 = smul.addr %s179, 2
        %s186 = sadd.s32 %s184, %s185
        %s187 = smul.addr %s186, 4
        %s188 = scalar_lea.vmem %s0, %s187
        %s189 = smul.u32 2, %s18
      $region20: #{forward.18} parent=15 // pred_fallthru
        _
      // Predicated region
      $region21: #{forward.18} parent=15 // pred_check
        %p190 = pneg %p89
      $region22: #{forward.18} parent=15 // pred_check_branch
        %192 = sbr.rel (%p190) target = $region24
      $region23: #{forward.18} parent=15 // pred_region
        %s193 = smul.u32 2, %s19
        %p194 = scmp.lt.s32.totalorder %s16, 1
        %s195 = scalar_select %p194, %s16, 1
        %p196 = scmp.lt.s32.totalorder %s193, 1
        %s197 = scalar_select %p196, %s193, 1
        %p198 = scmp.lt.s32.totalorder %s17, 0
        %s199 = scalar_select %p198, %s17, 0
        %s200 = sadd.s32 %s199, %s197
        %s201 = smul.addr %s195, 2
        %s202 = sadd.s32 %s200, %s201
        %s203 = smul.addr %s202, 4
        %s204 = scalar_lea.vmem %s1, %s203
        %s205 = smul.u32 2, %s19
      $region24: #{forward.18} parent=15 // pred_fallthru
        _
      // Predicated region
      $region25: #{forward.18} parent=15 // pred_check
        %p206 = pneg %p119
      $region26: #{forward.18} parent=15 // pred_check_branch
        %208 = sbr.rel (%p206) target = $region28
      $region27: #{forward.18} parent=15 // pred_region
        %s209 = smul.u32 2, %s19
        %p210 = scmp.lt.s32.totalorder %s16, 1
        %s211 = scalar_select %p210, %s16, 1
        %p212 = scmp.lt.s32.totalorder %s209, 1
        %s213 = scalar_select %p212, %s209, 1
        %p214 = scmp.lt.s32.totalorder %s17, 0
        %s215 = scalar_select %p214, %s17, 0
        %s216 = sadd.s32 %s215, %s213
        %s217 = smul.addr %s211, 2
        %s218 = sadd.s32 %s216, %s217
        %s219 = smul.addr %s218, 4
        %s220 = scalar_lea.vmem %s2, %s219
        %s221 = smul.u32 2, %s19
      $region28: #{forward.18} parent=15 // pred_fallthru
        _
    $region16: #{forward.18} parent=5 // pred_fallthru
      _
    %p222 = scmp.le.s32.totalorder 1, %s9
    %p223 = scmp.lt.s32.totalorder %s9, 3
    %p224 = pnand %p222, %p223
    %p225 = pneg %p224
    // Predicated region
    $region29: #{forward.18} parent=5 // pred_check
      _
    $region30: #{forward.18} parent=5 // pred_check_branch
      %227 = sbr.rel (%p224) target = $region32
    $region31: #{forward.18} parent=5 // pred_region
      %s228 = ssub.s32 %s9, 1
      %s229 = smul.u32 2, %s22
      %p230 = scmp.lt.s32.totalorder %s20, 1
      %s231 = scalar_select %p230, %s20, 1
      %p232 = scmp.lt.s32.totalorder %s229, 1
      %s233 = scalar_select %p232, %s229, 1
      %p234 = scmp.lt.s32.totalorder %s21, 0
      %s235 = scalar_select %p234, %s21, 0
      %s236 = sadd.s32 %s235, %s233
      %s237 = smul.addr %s231, 2
      %s238 = sadd.s32 %s236, %s237
      %s239 = smul.addr %s238, 4
      %s240 = scalar_lea.vmem %s0, %s239
      %p241 = pneg %p65
      %p242 = pneg %p62
      %s243 = smul.u32 2, %s23
      %p244 = scmp.lt.s32.totalorder %s20, 1
      %s245 = scalar_select %p244, %s20, 1
      %p246 = scmp.lt.s32.totalorder %s243, 1
      %s247 = scalar_select %p246, %s243, 1
      %p248 = scmp.lt.s32.totalorder %s21, 0
      %s249 = scalar_select %p248, %s21, 0
      %s250 = sadd.s32 %s249, %s247
      %s251 = smul.addr %s245, 2
      %s252 = sadd.s32 %s250, %s251
      %s253 = smul.addr %s252, 4
      %s254 = scalar_lea.vmem %s1, %s253
      %p255 = pneg %p95
      %p256 = pneg %p92
      %s257 = smul.u32 2, %s23
      %p258 = scmp.lt.s32.totalorder %s20, 1
      %s259 = scalar_select %p258, %s20, 1
      %p260 = scmp.lt.s32.totalorder %s257, 1
      %s261 = scalar_select %p260, %s257, 1
      %p262 = scmp.lt.s32.totalorder %s21, 0
      %s263 = scalar_select %p262, %s21, 0
      %s264 = sadd.s32 %s263, %s261
      %s265 = smul.addr %s259, 2
      %s266 = sadd.s32 %s264, %s265
      %s267 = smul.addr %s266, 4
      %s268 = scalar_lea.vmem %s2, %s267
      %p269 = pneg %p125
      %p270 = pneg %p122
      %p271 = pneg %p155
      %p272 = pneg %p152
      %s273 = smul.u32 2, %s22
      %p274 = scmp.lt.s32.totalorder %s20, 1
      %s275 = scalar_select %p274, %s20, 1
      %p276 = scmp.lt.s32.totalorder %s273, 1
      %s277 = scalar_select %p276, %s273, 1
      %p278 = scmp.lt.s32.totalorder %s21, 0
      %s279 = scalar_select %p278, %s21, 0
      %s280 = sadd.s32 %s279, %s277
      %s281 = smul.addr %s275, 2
      %s282 = sadd.s32 %s280, %s281
      %s283 = smul.addr %s282, 4
      %s284 = scalar_lea.vmem %s3, %s283
      %s285 = smul.u32 2, %s22
      %p286 = scmp.lt.s32.totalorder %s20, 1
      %s287 = scalar_select %p286, %s20, 1
      %p288 = scmp.lt.s32.totalorder %s285, 1
      %s289 = scalar_select %p288, %s285, 1
      %p290 = scmp.lt.s32.totalorder %s21, 0
      %s291 = scalar_select %p290, %s21, 0
      %s292 = sadd.s32 %s291, %s289
      %s293 = smul.addr %s287, 2
      %s294 = sadd.s32 %s292, %s293
      %s295 = smul.addr %s294, 4
      %s296 = scalar_lea.vmem %s0, %s295
      %s297 = smul.u32 2, %s22
      %s298 = smul.u32 2, %s23
      %p299 = scmp.lt.s32.totalorder %s20, 1
      %s300 = scalar_select %p299, %s20, 1
      %p301 = scmp.lt.s32.totalorder %s298, 1
      %s302 = scalar_select %p301, %s298, 1
      %p303 = scmp.lt.s32.totalorder %s21, 0
      %s304 = scalar_select %p303, %s21, 0
      %s305 = sadd.s32 %s304, %s302
      %s306 = smul.addr %s300, 2
      %s307 = sadd.s32 %s305, %s306
      %s308 = smul.addr %s307, 4
      %s309 = scalar_lea.vmem %s1, %s308
      %s310 = smul.u32 2, %s23
      %s311 = smul.u32 2, %s23
      %p312 = scmp.lt.s32.totalorder %s20, 1
      %s313 = scalar_select %p312, %s20, 1
      %p314 = scmp.lt.s32.totalorder %s311, 1
      %s315 = scalar_select %p314, %s311, 1
      %p316 = scmp.lt.s32.totalorder %s21, 0
      %s317 = scalar_select %p316, %s21, 0
      %s318 = sadd.s32 %s317, %s315
      %s319 = smul.addr %s313, 2
      %s320 = sadd.s32 %s318, %s319
      %s321 = smul.addr %s320, 4
      %s322 = scalar_lea.vmem %s2, %s321
      %s323 = smul.u32 2, %s23
      %s324 = smul.u32 2, %s22
      %p325 = scmp.lt.s32.totalorder %s20, 1
      %s326 = scalar_select %p325, %s20, 1
      %p327 = scmp.lt.s32.totalorder %s324, 1
      %s328 = scalar_select %p327, %s324, 1
      %p329 = scmp.lt.s32.totalorder %s21, 0
      %s330 = scalar_select %p329, %s21, 0
      %s331 = sadd.s32 %s330, %s328
      %s332 = smul.addr %s326, 2
      %s333 = sadd.s32 %s331, %s332
      %s334 = smul.addr %s333, 4
      %s335 = scalar_lea.vmem %s3, %s334
      %s336 = smul.u32 2, %s22
      %p338 = scmp.eq.s32.totalorder %s23, 0
      // Predicated region
      $region33: #{forward.18} parent=31 // pred_check
        %p339 = pneg %p338
      $region34: #{forward.18} parent=31 // pred_check_branch
        %341 = sbr.rel (%p339) target = $region36
      $region35: #{forward.18} parent=31 // pred_region
        %vm342 = vcmask 7168
        %343 = vst.msk [vmem:[#allocation2] sm:$0xff] %vm342, -inf
        %344 = vst.msk [vmem:[#allocation2 + $0x8] sm:$0xff] %vm342, -inf
        %345 = vst.msk [vmem:[#allocation2 + $0x10] sm:$0xff] %vm342, -inf
        %346 = vst.msk [vmem:[#allocation2 + $0x18] sm:$0xff] %vm342, -inf
        %347 = vst.msk [vmem:[#allocation2 + $0x20] sm:$0xff] %vm342, -inf
        %348 = vst.msk [vmem:[#allocation2 + $0x28] sm:$0xff] %vm342, -inf
        %349 = vst.msk [vmem:[#allocation2 + $0x30] sm:$0xff] %vm342, -inf
        %350 = vst.msk [vmem:[#allocation2 + $0x38] sm:$0xff] %vm342, -inf
        %351 = vst.msk [vmem:[#allocation3] sm:$0xff] %vm342, 0.0
        %352 = vst.msk [vmem:[#allocation3 + $0x8] sm:$0xff] %vm342, 0.0
        %353 = vst.msk [vmem:[#allocation3 + $0x10] sm:$0xff] %vm342, 0.0
        %354 = vst.msk [vmem:[#allocation3 + $0x18] sm:$0xff] %vm342, 0.0
        %355 = vst.msk [vmem:[#allocation3 + $0x20] sm:$0xff] %vm342, 0.0
        %356 = vst.msk [vmem:[#allocation3 + $0x28] sm:$0xff] %vm342, 0.0
        %357 = vst.msk [vmem:[#allocation3 + $0x30] sm:$0xff] %vm342, 0.0
        %358 = vst.msk [vmem:[#allocation3 + $0x38] sm:$0xff] %vm342, 0.0
        %vm359 = vcmask 64512
        %360 = vst.msk [vmem:[#allocation4] sm:$0xff] %vm359, 0.0
        %361 = vst.msk [vmem:[#allocation4 + $0x8] sm:$0xff] %vm359, 0.0
        %362 = vst.msk [vmem:[#allocation4 + $0x10] sm:$0xff] %vm359, 0.0
        %363 = vst.msk [vmem:[#allocation4 + $0x18] sm:$0xff] %vm359, 0.0
        %364 = vst.msk [vmem:[#allocation4 + $0x20] sm:$0xff] %vm359, 0.0
        %365 = vst.msk [vmem:[#allocation4 + $0x28] sm:$0xff] %vm359, 0.0
        %366 = vst.msk [vmem:[#allocation4 + $0x30] sm:$0xff] %vm359, 0.0
        %367 = vst.msk [vmem:[#allocation4 + $0x38] sm:$0xff] %vm359, 0.0
      $region36: #{forward.18} parent=31 // pred_fallthru
        _
      %v368 = vld [vmem:[%s296] sm:$0xf]
      %v369 = vld [vmem:[%s296 + $0x4] sm:$0xf]
      %v370 = vld [vmem:[%s309] sm:$0xf]
      %v371 = vld [vmem:[%s309 + $0x4] sm:$0xf]
      %v372 = vld [vmem:[%s322] sm:$0xf]
      %v373 = vld [vmem:[%s322 + $0x4] sm:$0xf]
      %v376 = vunpack.c.l.b16 %v368
      %v377 = vunpack.c.l.b16 %v369
      %v378 = vpack.c.b16 %v377, %v376
      %v381 = vunpack.c.l.b16 %v370
      %v382 = vunpack.c.l.b16 %v371
      %v383 = vpack.c.b16 %v382, %v381
      %vm384 = vcmask 64512
      %v386 = vsel %vm384, %v378, 0
      %v389 = vsel %vm384, %v383, 0
      %391 = vmatpush.bf16.xpose.msra.mxu0 0
      %392 = vmatpush.bf16.xpose.msra.mxu0 0
      %393 = vmatpush.bf16.xpose.msra.mxu0 0
      %394 = vmatpush.bf16.xpose.msra.mxu0 0
      %395 = vmatpush.bf16.xpose.msra.mxu0 0
      %396 = vmatpush.bf16.xpose.msra.mxu0 0
      %397 = vmatpush.bf16.xpose.msra.mxu0 0
      %398 = vmatpush.bf16.xpose.msra.mxu0 %v389
      %399 = vmatmul.bf16.gmra.mxu0 %v386
      %v400 = vpop.f32.mrf.mxu0
      %v401 = vadd.f32 0.0, %v400
      %v402 = vpop.f32.mrf.mxu0
      %v403 = vadd.f32 0.0, %v402
      %404 = vdwg.mxu0
      %v405 = vld [vmem:[#allocation2] sm:$0xff]
      %v406 = vld [vmem:[#allocation2 + $0x8] sm:$0xff]
      %vm407 = vcmask 130048
      %v408 = vsel %vm407, %v401, -inf
      %409 = vmax.xlane.f32.xlu0 %v408
      %v410 = vpop.xlane.xlu0 %409
      %v411 = vsel %vm407, %v403, -inf
      %412 = vmax.xlane.f32.xlu0 %v411
      %v413 = vpop.xlane.xlu0 %412
      %v414 = vmax.f32 %v405, %v410
      %v415 = vmax.f32 %v406, %v413
      %v416 = vsub.f32 %v405, %v414
      %v417 = vsub.f32 %v406, %v415
      %v418 = vmul.f32 %v416, 1.442695
      %v419 = vpow.pop %v418
      %v420 = vmul.f32 %v417, 1.442695
      %v421 = vpow.pop %v420
      %423 = vset.pattern.permute.xlu0 0
      %424 = vperm.xlu0 %423, %v414
      %v425 = vpop.permute.xlu0 %424
      %428 = vset.pattern.permute.xlu0 0
      %429 = vperm.xlu0 %428, %v415
      %v430 = vpop.permute.xlu0 %429
      %v432 = vsub.f32 %v401, %v425
      %v433 = vsub.f32 %v403, %v430
      %v434 = vmul.f32 %v432, 1.442695
      %v435 = vpow.pop %v434
      %v436 = vmul.f32 %v433, 1.442695
      %v437 = vpow.pop %v436
      %v438 = vld [vmem:[#allocation3] sm:$0xff]
      %v439 = vld [vmem:[#allocation3 + $0x8] sm:$0xff]
      %v440 = vmul.f32 %v419, %v438
      %v441 = vmul.f32 %v421, %v439
      %v442 = vsel %vm407, %v435, 0.0
      %443 = vadd.xlane.f32.xlu0 %v442
      %v444 = vpop.xlane.xlu0 %443
      %v445 = vsel %vm407, %v437, 0.0
      %446 = vadd.xlane.f32.xlu0 %v445
      %v447 = vpop.xlane.xlu0 %446
      %v448 = vadd.f32 %v440, %v444
      %v449 = vadd.f32 %v441, %v447
      %vm450 = vcmask 7168
      %451 = vst.msk [vmem:[#allocation3] sm:$0xff] %vm450, %v448
      %452 = vst.msk [vmem:[#allocation3 + $0x8] sm:$0xff] %vm450, %v449
      %v453 = vld [vmem:[#allocation4] sm:$0xff]
      %v454 = vld [vmem:[#allocation4 + $0x8] sm:$0xff]
      %456 = vset.pattern.permute.xlu0 0
      %457 = vperm.xlu0 %456, %v419
      %v458 = vpop.permute.xlu0 %457
      %461 = vset.pattern.permute.xlu0 0
      %462 = vperm.xlu0 %461, %v421
      %v463 = vpop.permute.xlu0 %462
      %v465 = vmul.f32 %v458, %v453
      %v466 = vmul.f32 %v463, %v454
      %v467 = vpack.c.bf16 %v437, %v435
      %v470 = vunpack.c.l.b16 %v372
      %v471 = vunpack.c.l.b16 %v373
      %v472 = vpack.c.b16 %v471, %v470
      %v475 = vsel %vm407, %v467, 0
      %477 = vmatpush.bf16.msra.mxu0 0
      %478 = vmatpush.bf16.msra.mxu0 0
      %479 = vmatpush.bf16.msra.mxu0 0
      %480 = vmatpush.bf16.msra.mxu0 0
      %481 = vmatpush.bf16.msra.mxu0 0
      %482 = vmatpush.bf16.msra.mxu0 0
      %483 = vmatpush.bf16.msra.mxu0 0
      %484 = vmatpush.bf16.msra.mxu0 %v472
      %485 = vmatmul.bf16.gmra.mxu0 %v475
      %v486 = vpop.f32.mrf.mxu0
      %v487 = vadd.f32 0.0, %v486
      %v488 = vpop.f32.mrf.mxu0
      %v489 = vadd.f32 0.0, %v488
      %490 = vdwg.mxu0
      %v491 = vadd.f32 %v465, %v487
      %v492 = vadd.f32 %v466, %v489
      %493 = vst.msk [vmem:[#allocation4] sm:$0xff] %vm384, %v491
      %494 = vst.msk [vmem:[#allocation4 + $0x8] sm:$0xff] %vm384, %v492
      %495 = vst.msk [vmem:[#allocation2] sm:$0xff] %vm450, %v414
      %496 = vst.msk [vmem:[#allocation2 + $0x8] sm:$0xff] %vm450, %v415
      %v497 = vld [vmem:[%s296] sm:$0xf]
      %v498 = vld [vmem:[%s296 + $0x4] sm:$0xf]
      %v499 = vld [vmem:[%s309] sm:$0xf]
      %v500 = vld [vmem:[%s309 + $0x4] sm:$0xf]
      %v501 = vld [vmem:[%s322] sm:$0xf]
      %v502 = vld [vmem:[%s322 + $0x4] sm:$0xf]
      %v505 = vunpack.c.l.b16 %v497
      %v506 = vunpack.c.l.b16 %v498
      %v507 = vpack.c.b16 %v506, %v505
      %508 = vrot.lane.b32.xlu0 %v507, 120
      %v509 = vpop.permute.xlu0 %508
      %v512 = vunpack.c.l.b16 %v499
      %v513 = vunpack.c.l.b16 %v500
      %v514 = vpack.c.b16 %v513, %v512
      %515 = vrot.lane.b32.xlu0 %v514, 120
      %v516 = vpop.permute.xlu0 %515
      %v518 = vsel %vm384, %v509, 0
      %v521 = vsel %vm384, %v516, 0
      %523 = vmatpush.bf16.xpose.msra.mxu0 0
      %524 = vmatpush.bf16.xpose.msra.mxu0 0
      %525 = vmatpush.bf16.xpose.msra.mxu0 0
      %526 = vmatpush.bf16.xpose.msra.mxu0 0
      %527 = vmatpush.bf16.xpose.msra.mxu0 0
      %528 = vmatpush.bf16.xpose.msra.mxu0 0
      %529 = vmatpush.bf16.xpose.msra.mxu0 0
      %530 = vmatpush.bf16.xpose.msra.mxu0 %v521
      %531 = vmatmul.bf16.gmra.mxu0 %v518
      %v532 = vpop.f32.mrf.mxu0
      %v533 = vadd.f32 0.0, %v532
      %v534 = vpop.f32.mrf.mxu0
      %v535 = vadd.f32 0.0, %v534
      %536 = vdwg.mxu0
      %s537 = scalar_lea.vmem [#allocation2], 16
      %v538 = vld [vmem:[%s537] sm:$0xff]
      %v539 = vld [vmem:[%s537 + $0x8] sm:$0xff]
      %v540 = vsel %vm407, %v533, -inf
      %541 = vmax.xlane.f32.xlu0 %v540
      %v542 = vpop.xlane.xlu0 %541
      %v543 = vsel %vm407, %v535, -inf
      %544 = vmax.xlane.f32.xlu0 %v543
      %v545 = vpop.xlane.xlu0 %544
      %v546 = vmax.f32 %v538, %v542
      %v547 = vmax.f32 %v539, %v545
      %v548 = vsub.f32 %v538, %v546
      %v549 = vsub.f32 %v539, %v547
      %v550 = vmul.f32 %v548, 1.442695
      %v551 = vpow.pop %v550
      %v552 = vmul.f32 %v549, 1.442695
      %v553 = vpow.pop %v552
      %555 = vset.pattern.permute.xlu0 0
      %556 = vperm.xlu0 %555, %v546
      %v557 = vpop.permute.xlu0 %556
      %560 = vset.pattern.permute.xlu0 0
      %561 = vperm.xlu0 %560, %v547
      %v562 = vpop.permute.xlu0 %561
      %v564 = vsub.f32 %v533, %v557
      %v565 = vsub.f32 %v535, %v562
      %v566 = vmul.f32 %v564, 1.442695
      %v567 = vpow.pop %v566
      %v568 = vmul.f32 %v565, 1.442695
      %v569 = vpow.pop %v568
      %s570 = scalar_lea.vmem [#allocation3], 16
      %v571 = vld [vmem:[%s570] sm:$0xff]
      %v572 = vld [vmem:[%s570 + $0x8] sm:$0xff]
      %v573 = vmul.f32 %v551, %v571
      %v574 = vmul.f32 %v553, %v572
      %v575 = vsel %vm407, %v567, 0.0
      %576 = vadd.xlane.f32.xlu0 %v575
      %v577 = vpop.xlane.xlu0 %576
      %v578 = vsel %vm407, %v569, 0.0
      %579 = vadd.xlane.f32.xlu0 %v578
      %v580 = vpop.xlane.xlu0 %579
      %v581 = vadd.f32 %v573, %v577
      %v582 = vadd.f32 %v574, %v580
      %583 = vst.msk [vmem:[%s570] sm:$0xff] %vm450, %v581
      %584 = vst.msk [vmem:[%s570 + $0x8] sm:$0xff] %vm450, %v582
      %s585 = scalar_lea.vmem [#allocation4], 16
      %v586 = vld [vmem:[%s585] sm:$0xff]
      %v587 = vld [vmem:[%s585 + $0x8] sm:$0xff]
      %589 = vset.pattern.permute.xlu0 0
      %590 = vperm.xlu0 %589, %v551
      %v591 = vpop.permute.xlu0 %590
      %594 = vset.pattern.permute.xlu0 0
      %595 = vperm.xlu0 %594, %v553
      %v596 = vpop.permute.xlu0 %595
      %v598 = vmul.f32 %v591, %v586
      %v599 = vmul.f32 %v596, %v587
      %v600 = vpack.c.bf16 %v569, %v567
      %v603 = vunpack.c.l.b16 %v501
      %v604 = vunpack.c.l.b16 %v502
      %v605 = vpack.c.b16 %v604, %v603
      %606 = vrot.lane.b32.xlu0 %v605, 120
      %v607 = vpop.permute.xlu0 %606
      %v610 = vsel %vm407, %v600, 0
      %612 = vmatpush.bf16.msra.mxu0 0
      %613 = vmatpush.bf16.msra.mxu0 0
      %614 = vmatpush.bf16.msra.mxu0 0
      %615 = vmatpush.bf16.msra.mxu0 0
      %616 = vmatpush.bf16.msra.mxu0 0
      %617 = vmatpush.bf16.msra.mxu0 0
      %618 = vmatpush.bf16.msra.mxu0 0
      %619 = vmatpush.bf16.msra.mxu0 %v607
      %620 = vmatmul.bf16.gmra.mxu0 %v610
      %v621 = vpop.f32.mrf.mxu0
      %v622 = vadd.f32 0.0, %v621
      %v623 = vpop.f32.mrf.mxu0
      %v624 = vadd.f32 0.0, %v623
      %625 = vdwg.mxu0
      %v626 = vadd.f32 %v598, %v622
      %v627 = vadd.f32 %v599, %v624
      %628 = vst.msk [vmem:[%s585] sm:$0xff] %vm384, %v626
      %629 = vst.msk [vmem:[%s585 + $0x8] sm:$0xff] %vm384, %v627
      %630 = vst.msk [vmem:[%s537] sm:$0xff] %vm450, %v546
      %631 = vst.msk [vmem:[%s537 + $0x8] sm:$0xff] %vm450, %v547
      %v632 = vld [vmem:[%s296] sm:$0xf]
      %v633 = vld [vmem:[%s296 + $0x4] sm:$0xf]
      %v634 = vld [vmem:[%s309] sm:$0xf]
      %v635 = vld [vmem:[%s309 + $0x4] sm:$0xf]
      %v636 = vld [vmem:[%s322] sm:$0xf]
      %v637 = vld [vmem:[%s322 + $0x4] sm:$0xf]
      %v640 = vunpack.c.l.b16 %v632
      %v641 = vunpack.c.l.b16 %v633
      %v642 = vpack.c.b16 %v641, %v640
      %643 = vrot.lane.b32.xlu0 %v642, 112
      %v644 = vpop.permute.xlu0 %643
      %v647 = vunpack.c.l.b16 %v634
      %v648 = vunpack.c.l.b16 %v635
      %v649 = vpack.c.b16 %v648, %v647
      %650 = vrot.lane.b32.xlu0 %v649, 112
      %v651 = vpop.permute.xlu0 %650
      %v653 = vsel %vm384, %v644, 0
      %v656 = vsel %vm384, %v651, 0
      %658 = vmatpush.bf16.xpose.msra.mxu0 0
      %659 = vmatpush.bf16.xpose.msra.mxu0 0
      %660 = vmatpush.bf16.xpose.msra.mxu0 0
      %661 = vmatpush.bf16.xpose.msra.mxu0 0
      %662 = vmatpush.bf16.xpose.msra.mxu0 0
      %663 = vmatpush.bf16.xpose.msra.mxu0 0
      %664 = vmatpush.bf16.xpose.msra.mxu0 0
      %665 = vmatpush.bf16.xpose.msra.mxu0 %v656
      %666 = vmatmul.bf16.gmra.mxu0 %v653
      %v667 = vpop.f32.mrf.mxu0
      %v668 = vadd.f32 0.0, %v667
      %v669 = vpop.f32.mrf.mxu0
      %v670 = vadd.f32 0.0, %v669
      %671 = vdwg.mxu0
      %s672 = scalar_lea.vmem [#allocation2], 32
      %v673 = vld [vmem:[%s672] sm:$0xff]
      %v674 = vld [vmem:[%s672 + $0x8] sm:$0xff]
      %v675 = vsel %vm407, %v668, -inf
      %676 = vmax.xlane.f32.xlu0 %v675
      %v677 = vpop.xlane.xlu0 %676
      %v678 = vsel %vm407, %v670, -inf
      %679 = vmax.xlane.f32.xlu0 %v678
      %v680 = vpop.xlane.xlu0 %679
      %v681 = vmax.f32 %v673, %v677
      %v682 = vmax.f32 %v674, %v680
      %v683 = vsub.f32 %v673, %v681
      %v684 = vsub.f32 %v674, %v682
      %v685 = vmul.f32 %v683, 1.442695
      %v686 = vpow.pop %v685
      %v687 = vmul.f32 %v684, 1.442695
      %v688 = vpow.pop %v687
      %690 = vset.pattern.permute.xlu0 0
      %691 = vperm.xlu0 %690, %v681
      %v692 = vpop.permute.xlu0 %691
      %695 = vset.pattern.permute.xlu0 0
      %696 = vperm.xlu0 %695, %v682
      %v697 = vpop.permute.xlu0 %696
      %v699 = vsub.f32 %v668, %v692
      %v700 = vsub.f32 %v670, %v697
      %v701 = vmul.f32 %v699, 1.442695
      %v702 = vpow.pop %v701
      %v703 = vmul.f32 %v700, 1.442695
      %v704 = vpow.pop %v703
      %s705 = scalar_lea.vmem [#allocation3], 32
      %v706 = vld [vmem:[%s705] sm:$0xff]
      %v707 = vld [vmem:[%s705 + $0x8] sm:$0xff]
      %v708 = vmul.f32 %v686, %v706
      %v709 = vmul.f32 %v688, %v707
      %v710 = vsel %vm407, %v702, 0.0
      %711 = vadd.xlane.f32.xlu0 %v710
      %v712 = vpop.xlane.xlu0 %711
      %v713 = vsel %vm407, %v704, 0.0
      %714 = vadd.xlane.f32.xlu0 %v713
      %v715 = vpop.xlane.xlu0 %714
      %v716 = vadd.f32 %v708, %v712
      %v717 = vadd.f32 %v709, %v715
      %718 = vst.msk [vmem:[%s705] sm:$0xff] %vm450, %v716
      %719 = vst.msk [vmem:[%s705 + $0x8] sm:$0xff] %vm450, %v717
      %s720 = scalar_lea.vmem [#allocation4], 32
      %v721 = vld [vmem:[%s720] sm:$0xff]
      %v722 = vld [vmem:[%s720 + $0x8] sm:$0xff]
      %724 = vset.pattern.permute.xlu0 0
      %725 = vperm.xlu0 %724, %v686
      %v726 = vpop.permute.xlu0 %725
      %729 = vset.pattern.permute.xlu0 0
      %730 = vperm.xlu0 %729, %v688
      %v731 = vpop.permute.xlu0 %730
      %v733 = vmul.f32 %v726, %v721
      %v734 = vmul.f32 %v731, %v722
      %v735 = vpack.c.bf16 %v704, %v702
      %v738 = vunpack.c.l.b16 %v636
      %v739 = vunpack.c.l.b16 %v637
      %v740 = vpack.c.b16 %v739, %v738
      %741 = vrot.lane.b32.xlu0 %v740, 112
      %v742 = vpop.permute.xlu0 %741
      %v745 = vsel %vm407, %v735, 0
      %747 = vmatpush.bf16.msra.mxu0 0
      %748 = vmatpush.bf16.msra.mxu0 0
      %749 = vmatpush.bf16.msra.mxu0 0
      %750 = vmatpush.bf16.msra.mxu0 0
      %751 = vmatpush.bf16.msra.mxu0 0
      %752 = vmatpush.bf16.msra.mxu0 0
      %753 = vmatpush.bf16.msra.mxu0 0
      %754 = vmatpush.bf16.msra.mxu0 %v742
      %755 = vmatmul.bf16.gmra.mxu0 %v745
      %v756 = vpop.f32.mrf.mxu0
      %v757 = vadd.f32 0.0, %v756
      %v758 = vpop.f32.mrf.mxu0
      %v759 = vadd.f32 0.0, %v758
      %760 = vdwg.mxu0
      %v761 = vadd.f32 %v733, %v757
      %v762 = vadd.f32 %v734, %v759
      %763 = vst.msk [vmem:[%s720] sm:$0xff] %vm384, %v761
      %764 = vst.msk [vmem:[%s720 + $0x8] sm:$0xff] %vm384, %v762
      %765 = vst.msk [vmem:[%s672] sm:$0xff] %vm450, %v681
      %766 = vst.msk [vmem:[%s672 + $0x8] sm:$0xff] %vm450, %v682
      %v767 = vld [vmem:[%s296] sm:$0xf]
      %v768 = vld [vmem:[%s296 + $0x4] sm:$0xf]
      %v769 = vld [vmem:[%s309] sm:$0xf]
      %v770 = vld [vmem:[%s309 + $0x4] sm:$0xf]
      %v771 = vld [vmem:[%s322] sm:$0xf]
      %v772 = vld [vmem:[%s322 + $0x4] sm:$0xf]
      %v775 = vunpack.c.l.b16 %v767
      %v776 = vunpack.c.l.b16 %v768
      %v777 = vpack.c.b16 %v776, %v775
      %778 = vrot.lane.b32.xlu0 %v777, 104
      %v779 = vpop.permute.xlu0 %778
      %v782 = vunpack.c.l.b16 %v769
      %v783 = vunpack.c.l.b16 %v770
      %v784 = vpack.c.b16 %v783, %v782
      %785 = vrot.lane.b32.xlu0 %v784, 104
      %v786 = vpop.permute.xlu0 %785
      %v788 = vsel %vm384, %v779, 0
      %v791 = vsel %vm384, %v786, 0
      %793 = vmatpush.bf16.xpose.msra.mxu0 0
      %794 = vmatpush.bf16.xpose.msra.mxu0 0
      %795 = vmatpush.bf16.xpose.msra.mxu0 0
      %796 = vmatpush.bf16.xpose.msra.mxu0 0
      %797 = vmatpush.bf16.xpose.msra.mxu0 0
      %798 = vmatpush.bf16.xpose.msra.mxu0 0
      %799 = vmatpush.bf16.xpose.msra.mxu0 0
      %800 = vmatpush.bf16.xpose.msra.mxu0 %v791
      %801 = vmatmul.bf16.gmra.mxu0 %v788
      %v802 = vpop.f32.mrf.mxu0
      %v803 = vadd.f32 0.0, %v802
      %v804 = vpop.f32.mrf.mxu0
      %v805 = vadd.f32 0.0, %v804
      %806 = vdwg.mxu0
      %s807 = scalar_lea.vmem [#allocation2], 48
      %v808 = vld [vmem:[%s807] sm:$0xff]
      %v809 = vld [vmem:[%s807 + $0x8] sm:$0xff]
      %v810 = vsel %vm407, %v803, -inf
      %811 = vmax.xlane.f32.xlu0 %v810
      %v812 = vpop.xlane.xlu0 %811
      %v813 = vsel %vm407, %v805, -inf
      %814 = vmax.xlane.f32.xlu0 %v813
      %v815 = vpop.xlane.xlu0 %814
      %v816 = vmax.f32 %v808, %v812
      %v817 = vmax.f32 %v809, %v815
      %v818 = vsub.f32 %v808, %v816
      %v819 = vsub.f32 %v809, %v817
      %v820 = vmul.f32 %v818, 1.442695
      %v821 = vpow.pop %v820
      %v822 = vmul.f32 %v819, 1.442695
      %v823 = vpow.pop %v822
      %825 = vset.pattern.permute.xlu0 0
      %826 = vperm.xlu0 %825, %v816
      %v827 = vpop.permute.xlu0 %826
      %830 = vset.pattern.permute.xlu0 0
      %831 = vperm.xlu0 %830, %v817
      %v832 = vpop.permute.xlu0 %831
      %v834 = vsub.f32 %v803, %v827
      %v835 = vsub.f32 %v805, %v832
      %v836 = vmul.f32 %v834, 1.442695
      %v837 = vpow.pop %v836
      %v838 = vmul.f32 %v835, 1.442695
      %v839 = vpow.pop %v838
      %s840 = scalar_lea.vmem [#allocation3], 48
      %v841 = vld [vmem:[%s840] sm:$0xff]
      %v842 = vld [vmem:[%s840 + $0x8] sm:$0xff]
      %v843 = vmul.f32 %v821, %v841
      %v844 = vmul.f32 %v823, %v842
      %v845 = vsel %vm407, %v837, 0.0
      %846 = vadd.xlane.f32.xlu0 %v845
      %v847 = vpop.xlane.xlu0 %846
      %v848 = vsel %vm407, %v839, 0.0
      %849 = vadd.xlane.f32.xlu0 %v848
      %v850 = vpop.xlane.xlu0 %849
      %v851 = vadd.f32 %v843, %v847
      %v852 = vadd.f32 %v844, %v850
      %853 = vst.msk [vmem:[%s840] sm:$0xff] %vm450, %v851
      %854 = vst.msk [vmem:[%s840 + $0x8] sm:$0xff] %vm450, %v852
      %s855 = scalar_lea.vmem [#allocation4], 48
      %v856 = vld [vmem:[%s855] sm:$0xff]
      %v857 = vld [vmem:[%s855 + $0x8] sm:$0xff]
      %859 = vset.pattern.permute.xlu0 0
      %860 = vperm.xlu0 %859, %v821
      %v861 = vpop.permute.xlu0 %860
      %864 = vset.pattern.permute.xlu0 0
      %865 = vperm.xlu0 %864, %v823
      %v866 = vpop.permute.xlu0 %865
      %v868 = vmul.f32 %v861, %v856
      %v869 = vmul.f32 %v866, %v857
      %v870 = vpack.c.bf16 %v839, %v837
      %v873 = vunpack.c.l.b16 %v771
      %v874 = vunpack.c.l.b16 %v772
      %v875 = vpack.c.b16 %v874, %v873
      %876 = vrot.lane.b32.xlu0 %v875, 104
      %v877 = vpop.permute.xlu0 %876
      %v880 = vsel %vm407, %v870, 0
      %882 = vmatpush.bf16.msra.mxu0 0
      %883 = vmatpush.bf16.msra.mxu0 0
      %884 = vmatpush.bf16.msra.mxu0 0
      %885 = vmatpush.bf16.msra.mxu0 0
      %886 = vmatpush.bf16.msra.mxu0 0
      %887 = vmatpush.bf16.msra.mxu0 0
      %888 = vmatpush.bf16.msra.mxu0 0
      %889 = vmatpush.bf16.msra.mxu0 %v877
      %890 = vmatmul.bf16.gmra.mxu0 %v880
      %v891 = vpop.f32.mrf.mxu0
      %v892 = vadd.f32 0.0, %v891
      %v893 = vpop.f32.mrf.mxu0
      %v894 = vadd.f32 0.0, %v893
      %895 = vdwg.mxu0
      %v896 = vadd.f32 %v868, %v892
      %v897 = vadd.f32 %v869, %v894
      %898 = vst.msk [vmem:[%s855] sm:$0xff] %vm384, %v896
      %899 = vst.msk [vmem:[%s855 + $0x8] sm:$0xff] %vm384, %v897
      %900 = vst.msk [vmem:[%s807] sm:$0xff] %vm450, %v816
      %901 = vst.msk [vmem:[%s807 + $0x8] sm:$0xff] %vm450, %v817
      // Predicated region
      $region37: #{forward.18} parent=31 // pred_check
        %p902 = pneg %p338
      $region38: #{forward.18} parent=31 // pred_check_branch
        %904 = sbr.rel (%p902) target = $region40
      $region39: #{forward.18} parent=31 // pred_region
        %v905 = vld [vmem:[#allocation4] sm:$0xff]
        %v906 = vld [vmem:[#allocation4 + $0x8] sm:$0xff]
        %v907 = vld [vmem:[#allocation3] sm:$0xff]
        %v908 = vld [vmem:[#allocation3 + $0x8] sm:$0xff]
        %v909 = vrcp.pop %v907
        %v910 = vrcp.pop %v908
        %912 = vset.pattern.permute.xlu0 0
        %913 = vperm.xlu0 %912, %v909
        %v914 = vpop.permute.xlu0 %913
        %917 = vset.pattern.permute.xlu0 0
        %918 = vperm.xlu0 %917, %v910
        %v919 = vpop.permute.xlu0 %918
        %v921 = vmul.f32 %v905, %v914
        %v922 = vmul.f32 %v906, %v919
        %v923 = vld [vmem:[%s585] sm:$0xff]
        %v924 = vld [vmem:[%s585 + $0x8] sm:$0xff]
        %v925 = vld [vmem:[%s570] sm:$0xff]
        %v926 = vld [vmem:[%s570 + $0x8] sm:$0xff]
        %v927 = vrcp.pop %v925
        %v928 = vrcp.pop %v926
        %930 = vset.pattern.permute.xlu0 0
        %931 = vperm.xlu0 %930, %v927
        %v932 = vpop.permute.xlu0 %931
        %935 = vset.pattern.permute.xlu0 0
        %936 = vperm.xlu0 %935, %v928
        %v937 = vpop.permute.xlu0 %936
        %v939 = vmul.f32 %v923, %v932
        %v940 = vmul.f32 %v924, %v937
        %v941 = vld [vmem:[%s720] sm:$0xff]
        %v942 = vld [vmem:[%s720 + $0x8] sm:$0xff]
        %v943 = vld [vmem:[%s705] sm:$0xff]
        %v944 = vld [vmem:[%s705 + $0x8] sm:$0xff]
        %v945 = vrcp.pop %v943
        %v946 = vrcp.pop %v944
        %948 = vset.pattern.permute.xlu0 0
        %949 = vperm.xlu0 %948, %v945
        %v950 = vpop.permute.xlu0 %949
        %953 = vset.pattern.permute.xlu0 0
        %954 = vperm.xlu0 %953, %v946
        %v955 = vpop.permute.xlu0 %954
        %v957 = vmul.f32 %v941, %v950
        %v958 = vmul.f32 %v942, %v955
        %v959 = vld [vmem:[%s855] sm:$0xff]
        %v960 = vld [vmem:[%s855 + $0x8] sm:$0xff]
        %v961 = vld [vmem:[%s840] sm:$0xff]
        %v962 = vld [vmem:[%s840 + $0x8] sm:$0xff]
        %v963 = vrcp.pop %v961
        %v964 = vrcp.pop %v962
        %966 = vset.pattern.permute.xlu0 0
        %967 = vperm.xlu0 %966, %v963
        %v968 = vpop.permute.xlu0 %967
        %971 = vset.pattern.permute.xlu0 0
        %972 = vperm.xlu0 %971, %v964
        %v973 = vpop.permute.xlu0 %972
        %v975 = vmul.f32 %v959, %v968
        %v976 = vmul.f32 %v960, %v973
        %979 = vrot.lane.b32.xlu0 %v939, 8
        %v980 = vpop.permute.xlu0 %979
        %981 = vrot.lane.b32.xlu0 %v940, 8
        %v982 = vpop.permute.xlu0 %981
        %987 = vrot.lane.b32.xlu0 %v957, 16
        %v988 = vpop.permute.xlu0 %987
        %989 = vrot.lane.b32.xlu0 %v958, 16
        %v990 = vpop.permute.xlu0 %989
        %995 = vrot.lane.b32.xlu0 %v975, 24
        %v996 = vpop.permute.xlu0 %995
        %997 = vrot.lane.b32.xlu0 %v976, 24
        %v998 = vpop.permute.xlu0 %997
        %v1001 = vsel %vm384, %v921, %v980
        %v1002 = vsel %vm384, %v922, %v982
        %v1003 = vsel %vm407, %v1001, %v988
        %v1004 = vsel %vm407, %v1002, %v990
        %vm1005 = vcmask 195584
        %v1006 = vsel %vm1005, %v1003, %v996
        %v1007 = vsel %vm1005, %v1004, %v998
        %v1008 = vpack.c.bf16 %v1006, %v1006
        %v1009 = vpack.c.bf16 %v1007, %v1007
        %vm1010 = vcmask 257024
        %1011 = vst.msk [vmem:[%s335] sm:$0xf] %vm1010, %v1008
        %1012 = vst.msk [vmem:[%s335 + $0x4] sm:$0xf] %vm1010, %v1009
      $region40: #{forward.18} parent=31 // pred_fallthru
        _
      %s1013 = smul.u32 2, %s22
      %p1014 = scmp.lt.s32.totalorder %s20, 1
      %s1015 = scalar_select %p1014, %s20, 1
      %p1016 = scmp.lt.s32.totalorder %s1013, 1
      %s1017 = scalar_select %p1016, %s1013, 1
      %p1018 = scmp.lt.s32.totalorder %s21, 0
      %s1019 = scalar_select %p1018, %s21, 0
      %s1020 = sadd.s32 %s1019, %s1017
      %s1021 = smul.addr %s1015, 2
      %s1022 = sadd.s32 %s1020, %s1021
      %s1023 = smul.addr %s1022, 4
      %s1024 = scalar_lea.vmem %s3, %s1023
      // Predicated region
      $region41: #{forward.18} parent=31 // pred_check
        %p1025 = pneg %p152
      $region42: #{forward.18} parent=31 // pred_check_branch
        %1027 = sbr.rel (%p1025) target = $region44
      $region43: #{forward.18} parent=31 // pred_region
        %s1028 = smul.u32 2, %s22
      $region44: #{forward.18} parent=31 // pred_fallthru
        _
    $region32: #{forward.18} parent=5 // pred_fallthru
      _
    %p1029 = scmp.le.s32.totalorder 2, %s9
    // Predicated region
    $region45: #{forward.18} parent=5 // pred_check
      %p1030 = pneg %p1029
    $region46: #{forward.18} parent=5 // pred_check_branch
      %1032 = sbr.rel (%p1030) target = $region48
    $region47: #{forward.18} parent=5 // pred_region
      %s1033 = ssub.s32 %s9, 2
      // Predicated region
      $region49: #{forward.18} parent=47 // pred_check
        %p1034 = pneg %p158
      $region50: #{forward.18} parent=47 // pred_check_branch
        %1036 = sbr.rel (%p1034) target = $region52
      $region51: #{forward.18} parent=47 // pred_region
        %s1037 = smul.u32 2, %s26
        %p1038 = scmp.lt.s32.totalorder %s24, 1
        %s1039 = scalar_select %p1038, %s24, 1
        %p1040 = scmp.lt.s32.totalorder %s1037, 1
        %s1041 = scalar_select %p1040, %s1037, 1
        %p1042 = scmp.lt.s32.totalorder %s25, 0
        %s1043 = scalar_select %p1042, %s25, 0
        %s1044 = sadd.s32 %s1043, %s1041
        %s1045 = smul.addr %s1039, 2
        %s1046 = sadd.s32 %s1044, %s1045
        %s1047 = smul.addr %s1046, 4
        %s1048 = scalar_lea.vmem %s3, %s1047
      $region52: #{forward.18} parent=47 // pred_fallthru
        _
    $region48: #{forward.18} parent=5 // pred_fallthru
      _
  $region6: #{forward.18} parent=0 // loop_footer
    %s13 = sadd.s32 1, %s9
  $region7: #{forward.18} parent=0 // loop_footer_branch
    %8 = sbr.rel target = $region3
  $region8: #{forward.18} parent=0 // loop_exit
    _

// kernel: forward.20
$region0: #{forward.20}
  #allocation0 [shape = 'u32[]', space=smem, size = 0x4, offset = 0x4, fixed_abs, tag = 'smem constant byte address 0x4 - core index']
  #allocation1 [shape = 'u32[72,128]{1,0:T(1,128)}', space=vmem, size = 0x9000, scoped, tag = 'internal scratch']
  %s0 = inlined_call_operand.vmem [shape: f32[32,32], index: 0, kind: input, shape index: {}]
  %s1 = inlined_call_operand.vmem [shape: f32[1,32], index: 1, kind: input, shape index: {}]
  %s2 = inlined_call_operand.vmem [shape: f32[1,32], index: 2, kind: input, shape index: {}]
  %s3 = inlined_call_operand.vmem [shape: bf16[32,128], index: 3, kind: input, shape index: {}]
  %s4 = inlined_call_operand.vmem [shape: f32[1,128], index: 4, kind: input, shape index: {}]
  %s5 = inlined_call_operand.vmem [shape: bf16[32,128], index: 5, kind: output, shape index: {}]
  %s6 = sld [smem:[#allocation0]]
  $region30: #{forward.20} parent=0
    _
  %s8 = ssub.s32 1, %s6
  %s9 = scalar_select 0, %s8, %s6
  // Predicated region
  $region2: #{forward.20} parent=0 // pred_check
    _
  $region3: #{forward.20} parent=0 // pred_check_branch
    %11 = sbr.rel (0) target = $region5
  $region4: #{forward.20} parent=0 // pred_region
    _
  $region5: #{forward.20} parent=0 // pred_fallthru
    _
  // Predicated region
  $region6: #{forward.20} parent=0 // pred_check
    _
  $region7: #{forward.20} parent=0 // pred_check_branch
    %13 = sbr.rel (0) target = $region9
  $region8: #{forward.20} parent=0 // pred_region
    _
  $region9: #{forward.20} parent=0 // pred_fallthru
    _
  // Predicated region
  $region10: #{forward.20} parent=0 // pred_check
    _
  $region11: #{forward.20} parent=0 // pred_check_branch
    %15 = sbr.rel (0) target = $region13
  $region12: #{forward.20} parent=0 // pred_region
    _
  $region13: #{forward.20} parent=0 // pred_fallthru
    _
  // Predicated region
  $region14: #{forward.20} parent=0 // pred_check
    _
  $region15: #{forward.20} parent=0 // pred_check_branch
    %17 = sbr.rel (0) target = $region17
  $region16: #{forward.20} parent=0 // pred_region
    _
  $region17: #{forward.20} parent=0 // pred_fallthru
    _
  // Predicated region
  $region18: #{forward.20} parent=0 // pred_check
    _
  $region19: #{forward.20} parent=0 // pred_check_branch
    %19 = sbr.rel (0) target = $region21
  $region20: #{forward.20} parent=0 // pred_region
    _
  $region21: #{forward.20} parent=0 // pred_fallthru
    _
  %v21 = vld [vmem:[%s0] sm:$0xff]
  %v22 = vld [vmem:[%s0 + $0x8] sm:$0xff]
  %v23 = vld [vmem:[%s0 + $0x10] sm:$0xff]
  %v24 = vld [vmem:[%s0 + $0x18] sm:$0xff]
  %vm25 = vcmask 261120
  %v26 = vsel %vm25, %v21, 0.0
  %27 = vadd.xlane.f32.xlu0 %v26
  %v28 = vpop.xlane.xlu0 %27
  %v29 = vsel %vm25, %v22, 0.0
  %30 = vadd.xlane.f32.xlu0 %v29
  %v31 = vpop.xlane.xlu0 %30
  %v32 = vsel %vm25, %v23, 0.0
  %33 = vadd.xlane.f32.xlu0 %v32
  %v34 = vpop.xlane.xlu0 %33
  %v35 = vsel %vm25, %v24, 0.0
  %36 = vadd.xlane.f32.xlu0 %v35
  %v37 = vpop.xlane.xlu0 %36
  %v38 = vrcp.pop 32.0
  %v39 = vmul.f32 32.0, %v38
  %v40 = vsub.f32 1.0, %v39
  %v41 = vmul.f32 %v38, %v40
  %v42 = vadd.f32 %v38, %v41
  %vm43 = vweird.f32 %v38
  %v44 = vsel %vm43, %v38, %v42
  %v45 = vmul.f32 %v28, %v44
  %v46 = vmul.f32 %v31, %v44
  %v47 = vmul.f32 %v34, %v44
  %v48 = vmul.f32 %v37, %v44
  %v49 = vsub.f32 %v21, %v45
  %v50 = vsub.f32 %v22, %v46
  %v51 = vsub.f32 %v23, %v47
  %v52 = vsub.f32 %v24, %v48
  %v53 = vmul.f32 %v49, %v49
  %v54 = vmul.f32 %v50, %v50
  %v55 = vmul.f32 %v51, %v51
  %v56 = vmul.f32 %v52, %v52
  %v57 = vsel %vm25, %v53, 0.0
  %58 = vadd.xlane.f32.xlu0 %v57
  %v59 = vpop.xlane.xlu0 %58
  %v60 = vsel %vm25, %v54, 0.0
  %61 = vadd.xlane.f32.xlu0 %v60
  %v62 = vpop.xlane.xlu0 %61
  %v63 = vsel %vm25, %v55, 0.0
  %64 = vadd.xlane.f32.xlu0 %v63
  %v65 = vpop.xlane.xlu0 %64
  %v66 = vsel %vm25, %v56, 0.0
  %67 = vadd.xlane.f32.xlu0 %v66
  %v68 = vpop.xlane.xlu0 %67
  %v69 = vmul.f32 %v59, %v44
  %v70 = vmul.f32 %v62, %v44
  %v71 = vmul.f32 %v65, %v44
  %v72 = vmul.f32 %v68, %v44
  %v73 = vadd.f32 %v69, 1e-05
  %v74 = vadd.f32 %v70, 1e-05
  %v75 = vadd.f32 %v71, 1e-05
  %v76 = vadd.f32 %v72, 1e-05
  %v77 = vrsqrt.pop %v73
  %v78 = vmul.f32 %v77, %v73
  %v79 = vmul.f32 %v78, %v77
  %v80 = vmul.f32 0.5, %v79
  %v81 = vsub.f32 1.5, %v80
  %v82 = vmul.f32 %v77, %v81
  %vm83 = vweird.f32 %v73
  %vm84 = vweird.f32 %v77
  %vm85 = vmor %vm83, %vm84
  %v86 = vsel %vm85, %v77, %v82
  %v87 = vrsqrt.pop %v74
  %v88 = vmul.f32 %v87, %v74
  %v89 = vmul.f32 %v88, %v87
  %v90 = vmul.f32 0.5, %v89
  %v91 = vsub.f32 1.5, %v90
  %v92 = vmul.f32 %v87, %v91
  %vm93 = vweird.f32 %v74
  %vm94 = vweird.f32 %v87
  %vm95 = vmor %vm93, %vm94
  %v96 = vsel %vm95, %v87, %v92
  %v97 = vrsqrt.pop %v75
  %v98 = vmul.f32 %v97, %v75
  %v99 = vmul.f32 %v98, %v97
  %v100 = vmul.f32 0.5, %v99
  %v101 = vsub.f32 1.5, %v100
  %v102 = vmul.f32 %v97, %v101
  %vm103 = vweird.f32 %v75
  %vm104 = vweird.f32 %v97
  %vm105 = vmor %vm103, %vm104
  %v106 = vsel %vm105, %v97, %v102
  %v107 = vrsqrt.pop %v76
  %v108 = vmul.f32 %v107, %v76
  %v109 = vmul.f32 %v108, %v107
  %v110 = vmul.f32 0.5, %v109
  %v111 = vsub.f32 1.5, %v110
  %v112 = vmul.f32 %v107, %v111
  %vm113 = vweird.f32 %v76
  %vm114 = vweird.f32 %v107
  %vm115 = vmor %vm113, %vm114
  %v116 = vsel %vm115, %v107, %v112
  %v117 = vmul.f32 %v49, %v86
  %v118 = vmul.f32 %v50, %v96
  %v119 = vmul.f32 %v51, %v106
  %v120 = vmul.f32 %v52, %v116
  %v121 = vld [vmem:[%s1] sm:$0x1]
  %v123 = vperm.slane %v121, 0
  %v125 = vmul.f32 %v117, %v123
  %v126 = vmul.f32 %v118, %v123
  %v127 = vmul.f32 %v119, %v123
  %v128 = vmul.f32 %v120, %v123
  %v129 = vld [vmem:[%s2] sm:$0x1]
  %v131 = vperm.slane %v129, 0
  %v133 = vadd.f32 %v125, %v131
  %v134 = vadd.f32 %v126, %v131
  %v135 = vadd.f32 %v127, %v131
  %v136 = vadd.f32 %v128, %v131
  %v137 = vpack.c.bf16 %v134, %v133
  %v138 = vpack.c.bf16 %v136, %v135
  %v139 = vld [vmem:[%s3] sm:$0xf]
  %v140 = vld [vmem:[%s3 + $0x4] sm:$0xf]
  %v141 = vld [vmem:[%s3 + $0x8] sm:$0xf]
  %v142 = vld [vmem:[%s3 + $0xc] sm:$0xf]
  %v143 = vld [vmem:[%s4] sm:$0x1]
  %v145 = vperm.slane %v143, 0
  %v151 = vunpack.c.l.b16 %v139
  %v152 = vunpack.c.l.b16 %v140
  %v153 = vunpack.c.l.b16 %v141
  %v154 = vunpack.c.l.b16 %v142
  %v155 = vpack.c.b16 %v152, %v151
  %v156 = vpack.c.b16 %v154, %v153
  %v160 = vsel %vm25, %v137, 0
  %v163 = vsel %vm25, %v138, 0
  %165 = vmatpush.bf16.msra.mxu0 0
  %166 = vmatpush.bf16.msra.mxu0 0
  %167 = vmatpush.bf16.msra.mxu0 0
  %168 = vmatpush.bf16.msra.mxu0 0
  %169 = vmatpush.bf16.msra.mxu0 0
  %170 = vmatpush.bf16.msra.mxu0 0
  %171 = vmatpush.bf16.msra.mxu0 %v156
  %172 = vmatpush.bf16.msra.mxu0 %v155
  %173 = vmatmul.bf16.gmra.mxu0 %v160
  %v174 = vpop.f32.mrf.mxu0
  %v175 = vadd.f32 %v145, %v174
  %v176 = vpop.f32.mrf.mxu0
  %v177 = vadd.f32 %v145, %v176
  %178 = vmatmul.bf16.gmra.mxu0 %v163
  %v179 = vpop.f32.mrf.mxu0
  %v180 = vadd.f32 %v145, %v179
  %v181 = vpop.f32.mrf.mxu0
  %v182 = vadd.f32 %v145, %v181
  %183 = vdwg.mxu0
  %v184 = vmul.f32 %v175, %v175
  %v185 = vmul.f32 %v177, %v177
  %v186 = vmul.f32 %v180, %v180
  %v187 = vmul.f32 %v182, %v182
  %v188 = vmul.f32 %v175, %v184
  %v189 = vmul.f32 %v177, %v185
  %v190 = vmul.f32 %v180, %v186
  %v191 = vmul.f32 %v182, %v187
  %v192 = vmul.f32 %v188, 0.044715
  %v193 = vmul.f32 %v189, 0.044715
  %v194 = vmul.f32 %v190, 0.044715
  %v195 = vmul.f32 %v191, 0.044715
  %v196 = vadd.f32 %v175, %v192
  %v197 = vadd.f32 %v177, %v193
  %v198 = vadd.f32 %v180, %v194
  %v199 = vadd.f32 %v182, %v195
  %v200 = vmul.f32 %v196, 0.7978846
  %v201 = vmul.f32 %v197, 0.7978846
  %v202 = vmul.f32 %v198, 0.7978846
  %v203 = vmul.f32 %v199, 0.7978846
  %v204 = vtanh.pop %v200
  %v205 = vtanh.pop %v201
  %v206 = vtanh.pop %v202
  %v207 = vtanh.pop %v203
  %v208 = vadd.f32 %v204, 1.0
  %v209 = vadd.f32 %v205, 1.0
  %v210 = vadd.f32 %v206, 1.0
  %v211 = vadd.f32 %v207, 1.0
  %v212 = vmul.f32 %v208, 0.5
  %v213 = vmul.f32 %v209, 0.5
  %v214 = vmul.f32 %v210, 0.5
  %v215 = vmul.f32 %v211, 0.5
  %v216 = vmul.f32 %v175, %v212
  %v217 = vmul.f32 %v177, %v213
  %v218 = vmul.f32 %v180, %v214
  %v219 = vmul.f32 %v182, %v215
  %v220 = vpack.c.bf16 %v216, %v216
  %v221 = vpack.c.bf16 %v217, %v217
  %v222 = vpack.c.bf16 %v218, %v218
  %v223 = vpack.c.bf16 %v219, %v219
  %224 = vst [vmem:[%s5] sm:$0xf] %v220
  %225 = vst [vmem:[%s5 + $0x4] sm:$0xf] %v221
  %226 = vst [vmem:[%s5 + $0x8] sm:$0xf] %v222
  %227 = vst [vmem:[%s5 + $0xc] sm:$0xf] %v223
  // Predicated region
  $region22: #{forward.20} parent=0 // pred_check
    _
  $region23: #{forward.20} parent=0 // pred_check_branch
    %229 = sbr.rel (0) target = $region25
  $region24: #{forward.20} parent=0 // pred_region
    _
  $region25: #{forward.20} parent=0 // pred_fallthru
    _
  // Predicated region
  $region26: #{forward.20} parent=0 // pred_check
    _
  $region27: #{forward.20} parent=0 // pred_check_branch
    %231 = sbr.rel (0) target = $region29
  $region28: #{forward.20} parent=0 // pred_region
    _
  $region29: #{forward.20} parent=0 // pred_fallthru
    _

// kernel: forward.21
$region0: #{forward.21}
  #allocation0 [shape = 'u32[]', space=smem, size = 0x4, offset = 0x4, fixed_abs, tag = 'smem constant byte address 0x4 - core index']
  #allocation1 [shape = 'u32[72,128]{1,0:T(1,128)}', space=vmem, size = 0x9000, scoped, tag = 'internal scratch']
  %s0 = inlined_call_operand.vmem [shape: bf16[32,128], index: 0, kind: input, shape index: {}]
  %s1 = inlined_call_operand.vmem [shape: bf16[128,32], index: 1, kind: input, shape index: {}]
  %s2 = inlined_call_operand.vmem [shape: f32[1,32], index: 2, kind: input, shape index: {}]
  %s3 = inlined_call_operand.vmem [shape: f32[32,32], index: 3, kind: input, shape index: {}]
  %s4 = inlined_call_operand.vmem [shape: f32[32,32], index: 4, kind: output, shape index: {}]
  %s5 = sld [smem:[#allocation0]]
  $region26: #{forward.21} parent=0
    _
  %s7 = ssub.s32 1, %s5
  %s8 = scalar_select 0, %s7, %s5
  // Predicated region
  $region2: #{forward.21} parent=0 // pred_check
    _
  $region3: #{forward.21} parent=0 // pred_check_branch
    %10 = sbr.rel (0) target = $region5
  $region4: #{forward.21} parent=0 // pred_region
    _
  $region5: #{forward.21} parent=0 // pred_fallthru
    _
  // Predicated region
  $region6: #{forward.21} parent=0 // pred_check
    _
  $region7: #{forward.21} parent=0 // pred_check_branch
    %12 = sbr.rel (0) target = $region9
  $region8: #{forward.21} parent=0 // pred_region
    _
  $region9: #{forward.21} parent=0 // pred_fallthru
    _
  // Predicated region
  $region10: #{forward.21} parent=0 // pred_check
    _
  $region11: #{forward.21} parent=0 // pred_check_branch
    %14 = sbr.rel (0) target = $region13
  $region12: #{forward.21} parent=0 // pred_region
    _
  $region13: #{forward.21} parent=0 // pred_fallthru
    _
  // Predicated region
  $region14: #{forward.21} parent=0 // pred_check
    _
  $region15: #{forward.21} parent=0 // pred_check_branch
    %16 = sbr.rel (0) target = $region17
  $region16: #{forward.21} parent=0 // pred_region
    _
  $region17: #{forward.21} parent=0 // pred_fallthru
    _
  %v17 = vld [vmem:[%s0] sm:$0xf]
  %v18 = vld [vmem:[%s0 + $0x4] sm:$0xf]
  %v19 = vld [vmem:[%s0 + $0x8] sm:$0xf]
  %v20 = vld [vmem:[%s0 + $0xc] sm:$0xf]
  %v21 = vld [vmem:[%s1] sm:$0xf]
  %v22 = vld [vmem:[%s1 + $0x4] sm:$0xf]
  %v23 = vld [vmem:[%s1 + $0x8] sm:$0xf]
  %v24 = vld [vmem:[%s1 + $0xc] sm:$0xf]
  %v25 = vld [vmem:[%s1 + $0x10] sm:$0xf]
  %v26 = vld [vmem:[%s1 + $0x14] sm:$0xf]
  %v27 = vld [vmem:[%s1 + $0x18] sm:$0xf]
  %v28 = vld [vmem:[%s1 + $0x1c] sm:$0xf]
  %v29 = vld [vmem:[%s1 + $0x20] sm:$0xf]
  %v30 = vld [vmem:[%s1 + $0x24] sm:$0xf]
  %v31 = vld [vmem:[%s1 + $0x28] sm:$0xf]
  %v32 = vld [vmem:[%s1 + $0x2c] sm:$0xf]
  %v33 = vld [vmem:[%s1 + $0x30] sm:$0xf]
  %v34 = vld [vmem:[%s1 + $0x34] sm:$0xf]
  %v35 = vld [vmem:[%s1 + $0x38] sm:$0xf]
  %v36 = vld [vmem:[%s1 + $0x3c] sm:$0xf]
  %v37 = vld [vmem:[%s2] sm:$0x1]
  %v39 = vperm.slane %v37, 0
  %v45 = vunpack.c.l.b16 %v17
  %v46 = vunpack.c.l.b16 %v18
  %v47 = vunpack.c.l.b16 %v19
  %v48 = vunpack.c.l.b16 %v20
  %v49 = vpack.c.b16 %v46, %v45
  %v50 = vpack.c.b16 %v48, %v47
  %v69 = vunpack.c.l.b16 %v21
  %v70 = vunpack.c.l.b16 %v22
  %v71 = vunpack.c.l.b16 %v23
  %v72 = vunpack.c.l.b16 %v24
  %v73 = vunpack.c.l.b16 %v25
  %v74 = vunpack.c.l.b16 %v26
  %v75 = vunpack.c.l.b16 %v27
  %v76 = vunpack.c.l.b16 %v28
  %v77 = vunpack.c.l.b16 %v29
  %v78 = vunpack.c.l.b16 %v30
  %v79 = vunpack.c.l.b16 %v31
  %v80 = vunpack.c.l.b16 %v32
  %v81 = vunpack.c.l.b16 %v33
  %v82 = vunpack.c.l.b16 %v34
  %v83 = vunpack.c.l.b16 %v35
  %v84 = vunpack.c.l.b16 %v36
  %v85 = vpack.c.b16 %v70, %v69
  %v86 = vpack.c.b16 %v72, %v71
  %v87 = vpack.c.b16 %v74, %v73
  %v88 = vpack.c.b16 %v76, %v75
  %v89 = vpack.c.b16 %v78, %v77
  %v90 = vpack.c.b16 %v80, %v79
  %v91 = vpack.c.b16 %v82, %v81
  %v92 = vpack.c.b16 %v84, %v83
  %101 = vmatpush.bf16.msra.mxu0 %v92
  %102 = vmatpush.bf16.msra.mxu0 %v91
  %103 = vmatpush.bf16.msra.mxu0 %v90
  %104 = vmatpush.bf16.msra.mxu0 %v89
  %105 = vmatpush.bf16.msra.mxu0 %v88
  %106 = vmatpush.bf16.msra.mxu0 %v87
  %107 = vmatpush.bf16.msra.mxu0 %v86
  %108 = vmatpush.bf16.msra.mxu0 %v85
  %109 = vmatmul.bf16.gmra.mxu0 %v49
  %v110 = vpop.f32.mrf.mxu0
  %v111 = vadd.f32 %v39, %v110
  %v112 = vpop.f32.mrf.mxu0
  %v113 = vadd.f32 %v39, %v112
  %114 = vmatmul.bf16.gmra.mxu0 %v50
  %v115 = vpop.f32.mrf.mxu0
  %v116 = vadd.f32 %v39, %v115
  %v117 = vpop.f32.mrf.mxu0
  %v118 = vadd.f32 %v39, %v117
  %119 = vdwg.mxu0
  %v120 = vld [vmem:[%s3] sm:$0xff]
  %v121 = vld [vmem:[%s3 + $0x8] sm:$0xff]
  %v122 = vld [vmem:[%s3 + $0x10] sm:$0xff]
  %v123 = vld [vmem:[%s3 + $0x18] sm:$0xff]
  %v124 = vadd.f32 %v111, %v120
  %v125 = vadd.f32 %v113, %v121
  %v126 = vadd.f32 %v116, %v122
  %v127 = vadd.f32 %v118, %v123
  %vm128 = vcmask 261120
  %129 = vst.msk [vmem:[%s4] sm:$0xff] %vm128, %v124
  %130 = vst.msk [vmem:[%s4 + $0x8] sm:$0xff] %vm128, %v125
  %131 = vst.msk [vmem:[%s4 + $0x10] sm:$0xff] %vm128, %v126
  %132 = vst.msk [vmem:[%s4 + $0x18] sm:$0xff] %vm128, %v127
  // Predicated region
  $region18: #{forward.21} parent=0 // pred_check
    _
  $region19: #{forward.21} parent=0 // pred_check_branch
    %134 = sbr.rel (0) target = $region21
  $region20: #{forward.21} parent=0 // pred_region
    _
  $region21: #{forward.21} parent=0 // pred_fallthru
    _
  // Predicated region
  $region22: #{forward.21} parent=0 // pred_check
    _
  $region23: #{forward.21} parent=0 // pred_check_branch
    %136 = sbr.rel (0) target = $region25
  $region24: #{forward.21} parent=0 // pred_region
    _
  $region25: #{forward.21} parent=0 // pred_fallthru
    _

// kernel: forward.27
$region0: #{forward.27}
  #allocation0 [shape = 'u32[]', space=smem, size = 0x4, offset = 0x4, fixed_abs, tag = 'smem constant byte address 0x4 - core index']
  #allocation1 [shape = 'u32[72,128]{1,0:T(1,128)}', space=vmem, size = 0x9000, scoped, tag = 'internal scratch']
  %s0 = inlined_call_operand.vmem [shape: f32[16,32], index: 0, kind: input, shape index: {}]
  %s1 = inlined_call_operand.vmem [shape: f32[1,32], index: 1, kind: input, shape index: {}]
  %s2 = inlined_call_operand.vmem [shape: f32[1,32], index: 2, kind: input, shape index: {}]
  %s3 = inlined_call_operand.vmem [shape: bf16[32,128], index: 3, kind: input, shape index: {}]
  %s4 = inlined_call_operand.vmem [shape: f32[1,128], index: 4, kind: input, shape index: {}]
  %s5 = inlined_call_operand.vmem [shape: f32[16,128], index: 5, kind: output, shape index: {}]
  %s6 = sld [smem:[#allocation0]]
  $region30: #{forward.27} parent=0
    _
  %s8 = ssub.s32 1, %s6
  %s9 = scalar_select 0, %s8, %s6
  // Predicated region
  $region2: #{forward.27} parent=0 // pred_check
    _
  $region3: #{forward.27} parent=0 // pred_check_branch
    %11 = sbr.rel (0) target = $region5
  $region4: #{forward.27} parent=0 // pred_region
    _
  $region5: #{forward.27} parent=0 // pred_fallthru
    _
  // Predicated region
  $region6: #{forward.27} parent=0 // pred_check
    _
  $region7: #{forward.27} parent=0 // pred_check_branch
    %13 = sbr.rel (0) target = $region9
  $region8: #{forward.27} parent=0 // pred_region
    _
  $region9: #{forward.27} parent=0 // pred_fallthru
    _
  // Predicated region
  $region10: #{forward.27} parent=0 // pred_check
    _
  $region11: #{forward.27} parent=0 // pred_check_branch
    %15 = sbr.rel (0) target = $region13
  $region12: #{forward.27} parent=0 // pred_region
    _
  $region13: #{forward.27} parent=0 // pred_fallthru
    _
  // Predicated region
  $region14: #{forward.27} parent=0 // pred_check
    _
  $region15: #{forward.27} parent=0 // pred_check_branch
    %17 = sbr.rel (0) target = $region17
  $region16: #{forward.27} parent=0 // pred_region
    _
  $region17: #{forward.27} parent=0 // pred_fallthru
    _
  // Predicated region
  $region18: #{forward.27} parent=0 // pred_check
    _
  $region19: #{forward.27} parent=0 // pred_check_branch
    %19 = sbr.rel (0) target = $region21
  $region20: #{forward.27} parent=0 // pred_region
    _
  $region21: #{forward.27} parent=0 // pred_fallthru
    _
  %v21 = vld [vmem:[%s0] sm:$0xff]
  %v22 = vld [vmem:[%s0 + $0x8] sm:$0xff]
  %vm23 = vcmask 261120
  %v24 = vsel %vm23, %v21, 0.0
  %25 = vadd.xlane.f32.xlu0 %v24
  %v26 = vpop.xlane.xlu0 %25
  %v27 = vsel %vm23, %v22, 0.0
  %28 = vadd.xlane.f32.xlu0 %v27
  %v29 = vpop.xlane.xlu0 %28
  %v30 = vrcp.pop 32.0
  %v31 = vmul.f32 32.0, %v30
  %v32 = vsub.f32 1.0, %v31
  %v33 = vmul.f32 %v30, %v32
  %v34 = vadd.f32 %v30, %v33
  %vm35 = vweird.f32 %v30
  %v36 = vsel %vm35, %v30, %v34
  %v37 = vmul.f32 %v26, %v36
  %v38 = vmul.f32 %v29, %v36
  %v39 = vsub.f32 %v21, %v37
  %v40 = vsub.f32 %v22, %v38
  %v41 = vmul.f32 %v39, %v39
  %v42 = vmul.f32 %v40, %v40
  %v43 = vsel %vm23, %v41, 0.0
  %44 = vadd.xlane.f32.xlu0 %v43
  %v45 = vpop.xlane.xlu0 %44
  %v46 = vsel %vm23, %v42, 0.0
  %47 = vadd.xlane.f32.xlu0 %v46
  %v48 = vpop.xlane.xlu0 %47
  %v49 = vmul.f32 %v45, %v36
  %v50 = vmul.f32 %v48, %v36
  %v51 = vadd.f32 %v49, 1e-05
  %v52 = vadd.f32 %v50, 1e-05
  %v53 = vrsqrt.pop %v51
  %v54 = vmul.f32 %v53, %v51
  %v55 = vmul.f32 %v54, %v53
  %v56 = vmul.f32 0.5, %v55
  %v57 = vsub.f32 1.5, %v56
  %v58 = vmul.f32 %v53, %v57
  %vm59 = vweird.f32 %v51
  %vm60 = vweird.f32 %v53
  %vm61 = vmor %vm59, %vm60
  %v62 = vsel %vm61, %v53, %v58
  %v63 = vrsqrt.pop %v52
  %v64 = vmul.f32 %v63, %v52
  %v65 = vmul.f32 %v64, %v63
  %v66 = vmul.f32 0.5, %v65
  %v67 = vsub.f32 1.5, %v66
  %v68 = vmul.f32 %v63, %v67
  %vm69 = vweird.f32 %v52
  %vm70 = vweird.f32 %v63
  %vm71 = vmor %vm69, %vm70
  %v72 = vsel %vm71, %v63, %v68
  %v73 = vmul.f32 %v39, %v62
  %v74 = vmul.f32 %v40, %v72
  %v75 = vld [vmem:[%s1] sm:$0x1]
  %v77 = vperm.slane %v75, 0
  %v79 = vmul.f32 %v73, %v77
  %v80 = vmul.f32 %v74, %v77
  %v81 = vld [vmem:[%s2] sm:$0x1]
  %v83 = vperm.slane %v81, 0
  %v85 = vadd.f32 %v79, %v83
  %v86 = vadd.f32 %v80, %v83
  %v87 = vpack.c.bf16 %v86, %v85
  %v88 = vld [vmem:[%s3] sm:$0xf]
  %v89 = vld [vmem:[%s3 + $0x4] sm:$0xf]
  %v90 = vld [vmem:[%s3 + $0x8] sm:$0xf]
  %v91 = vld [vmem:[%s3 + $0xc] sm:$0xf]
  %v92 = vld [vmem:[%s4] sm:$0x1]
  %v94 = vperm.slane %v92, 0
  %v100 = vunpack.c.l.b16 %v88
  %v101 = vunpack.c.l.b16 %v89
  %v102 = vunpack.c.l.b16 %v90
  %v103 = vunpack.c.l.b16 %v91
  %v104 = vpack.c.b16 %v101, %v100
  %v105 = vpack.c.b16 %v103, %v102
  %v109 = vsel %vm23, %v87, 0
  %111 = vmatpush.bf16.msra.mxu0 0
  %112 = vmatpush.bf16.msra.mxu0 0
  %113 = vmatpush.bf16.msra.mxu0 0
  %114 = vmatpush.bf16.msra.mxu0 0
  %115 = vmatpush.bf16.msra.mxu0 0
  %116 = vmatpush.bf16.msra.mxu0 0
  %117 = vmatpush.bf16.msra.mxu0 %v105
  %118 = vmatpush.bf16.msra.mxu0 %v104
  %119 = vmatmul.bf16.gmra.mxu0 %v109
  %v120 = vpop.f32.mrf.mxu0
  %v121 = vadd.f32 %v94, %v120
  %v122 = vpop.f32.mrf.mxu0
  %v123 = vadd.f32 %v94, %v122
  %124 = vdwg.mxu0
  %125 = vst [vmem:[%s5] sm:$0xff] %v121
  %126 = vst [vmem:[%s5 + $0x8] sm:$0xff] %v123
  // Predicated region
  $region22: #{forward.27} parent=0 // pred_check
    _
  $region23: #{forward.27} parent=0 // pred_check_branch
    %128 = sbr.rel (0) target = $region25
  $region24: #{forward.27} parent=0 // pred_region
    _
  $region25: #{forward.27} parent=0 // pred_fallthru
    _
  // Predicated region
  $region26: #{forward.27} parent=0 // pred_check
    _
  $region27: #{forward.27} parent=0 // pred_check_branch
    %130 = sbr.rel (0) target = $region29
  $region28: #{forward.27} parent=0 // pred_region
    _
  $region29: #{forward.27} parent=0 // pred_fallthru
    _

</llo_original>
